<compile_context>
chip_gen: v7x
topology: tpu7x:2x2x1
jax: 0.10.0
libtpu: 0.0.40
codegen_flags: <defaults>
</compile_context>

<pallas_src>
import functools

import numpy as np
import jax
import jax.numpy as jnp
from jax import lax
from jax.experimental import pallas as pl
from jax.experimental.pallas import tpu as pltpu


# ----------------------------------------------------------------------------
# Fused Pallas kernel: conv3x3(+folded BN) + ReLU + SCSE + merged polyphase deconv
# ----------------------------------------------------------------------------
def _fused_kernel(H, W, Cin, Cmid, Cout,
                  x_ref,        # (1, H+2, W+2, Cin)   zero-padded NHWC input (bf16)
                  cw_ref,       # (9*Cin, Cmid)        conv weight * bn_scale, im2col (bf16)
                  bnb_ref,      # (1, Cmid)            folded BN shift (incl. conv bias) (f32)
                  sw1_ref,      # (Cmid, Cr)           channel-SE fc1 (f32)
                  sb1_ref,      # (1, Cr)
                  sw2_ref,      # (Cr, Cmid)           channel-SE fc2 (f32)
                  sb2_ref,      # (1, Cmid)
                  wsp_ref,      # (1, Cmid)            spatial-SE 1x1 weight (f32)
                  dw_ref,       # (9*Cmid, 4*Cout)     merged polyphase deconv weight (bf16)
                  db_ref,       # (1, 4*Cout)          deconv bias, tiled per parity (f32)
                  o_ref,        # (1, 4*Cout, H*W)     lane-dense output (bf16)
                  zpad_ref):    # VMEM scratch (H+2, W+2, Cmid) f32
    HW = H * W
    # Upcast once: all sublane-offset slicing below happens on f32 (avoids
    # packed-bf16 unaligned-slice relayouts); MXU operands are cast back to
    # bf16 right before each dot.
    xp = x_ref[0].astype(jnp.float32)                           # (H+2, W+2, Cin)

    # ---- stage 1: 3x3 conv as ONE fat-K im2col matmul (K = 9*Cin) ----
    taps = [xp[dy:dy + H, dx:dx + W, :].reshape(HW, Cin)
            for dy in range(3) for dx in range(3)]
    patches = jnp.concatenate(taps, axis=-1).astype(jnp.bfloat16)    # (HW, 9*Cin)
    y = jnp.dot(patches, cw_ref[...], preferred_element_type=jnp.float32)
    # BN scale already folded into cw; only shift + ReLU remain (f32 VPU)
    y = jnp.maximum(y + bnb_ref[...], 0.0)                            # (HW, Cmid)

    # ---- SCSE ----
    pooled = jnp.mean(y, axis=0, keepdims=True)                       # (1, Cmid)
    h = jnp.maximum(jnp.dot(pooled, sw1_ref[...],
                            preferred_element_type=jnp.float32) + sb1_ref[...], 0.0)
    chn = jax.nn.sigmoid(jnp.dot(h, sw2_ref[...],
                                 preferred_element_type=jnp.float32) + sb2_ref[...])
    # spatial SE: VPU multiply + lane reduce (no N=1 MXU pass)
    spa = jax.nn.sigmoid(jnp.sum(y * wsp_ref[...], axis=-1, keepdims=True))  # (HW, 1)
    z = y * (chn + spa)                                               # (HW, Cmid) f32

    # ---- stage 2: ConvTranspose2d(k=4, s=2, p=1) as one merged 9-window matmul ----
    # Re-zero only the 1-wide border of the persistent scratch (interior is fully
    # overwritten every step); no full-buffer memset.
    zero_row = jnp.zeros((1, W + 2, Cmid), jnp.float32)
    zero_col = jnp.zeros((H + 2, 1, Cmid), jnp.float32)
    zpad_ref[0:1] = zero_row
    zpad_ref[H + 1:H + 2] = zero_row
    zpad_ref[:, 0:1] = zero_col
    zpad_ref[:, W + 1:W + 2] = zero_col
    zpad_ref[1:H + 1, 1:W + 1, :] = z.reshape(H, W, Cmid)
    zp = zpad_ref[...]                                                # (H+2, W+2, Cmid)

    taps2 = [zp[sy:sy + H, sx:sx + W, :].reshape(HW, Cmid)
             for sy in range(3) for sx in range(3)]
    patch2 = jnp.concatenate(taps2, axis=-1).astype(jnp.bfloat16)     # (HW, 9*Cmid)
    r = jnp.dot(patch2, dw_ref[...],
                preferred_element_type=jnp.float32) + db_ref[...]     # (HW, 4*Cout)
    # One small XLU transpose -> fully lane-dense store (4*Cout, HW).
    o_ref[0] = r.T.astype(o_ref.dtype)


# ----------------------------------------------------------------------------
# Wrapper: concat, NHWC transpose + pad, BN folding, polyphase weight packing,
#          pallas_call, and the final depth-to-space back to NCHW.
# ----------------------------------------------------------------------------
def decoder_unet_scse_forward(params, *args_nchw):
    eps = 1e-5
    x = jnp.concatenate(args_nchw, axis=1)                    # (N, Cin, H, W) NCHW
    N, Cin, H, W = x.shape
    xh = jnp.transpose(x, (0, 2, 3, 1))                       # NHWC
    xp = jnp.pad(xh, ((0, 0), (1, 1), (1, 1), (0, 0))).astype(jnp.bfloat16)

    Cmid = params['conv_w'].shape[-1]
    Cout = params['deconv_w'].shape[1]
    Cr = params['se_w1'].shape[1]
    HW = H * W

    # fold BN (eval) into the conv weights / bias (in f32, then cast to bf16)
    bn_scale = params['bn_gamma'] / jnp.sqrt(params['bn_var'] + eps)
    bn_shift = (params['conv_b'] - params['bn_mean']) * bn_scale + params['bn_beta']
    cw = (params['conv_w'] * bn_scale).reshape(9 * Cin, Cmid).astype(jnp.bfloat16)

    # merged polyphase deconv weight: window (sy,sx) in {0..2}^2 over padded z,
    # output column = parity p=ry*2+rx (major) x Cout (minor).
    # tap kernel indices ky = k_of[ry][sy-ry], kx = k_of[rx][sx-rx] (else zero).
    k_of = ((3, 1), (2, 0))
    zero_blk = jnp.zeros((Cmid, Cout), jnp.float32)
    rows = []
    for sy in range(3):
        for sx in range(3):
            cols = []
            for ry in range(2):
                for rx in range(2):
                    dy, dx = sy - ry, sx - rx
                    if 0 <= dy <= 1 and 0 <= dx <= 1:
                        cols.append(params['deconv_w'][:, :, k_of[ry][dy], k_of[rx][dx]])
                    else:
                        cols.append(zero_blk)
            rows.append(jnp.concatenate(cols, axis=1))        # (Cmid, 4*Cout)
    dw = jnp.concatenate(rows, axis=0).astype(jnp.bfloat16)   # (9*Cmid, 4*Cout)
    db = jnp.tile(params['deconv_b'], 4).reshape(1, 4 * Cout)

    # advisory cost estimate for XLA scheduling
    flops = int(2 * N * HW * (9 * Cin * Cmid + 9 * Cmid * 4 * Cout)
                + 4 * N * Cmid * Cr + 8 * N * HW * Cmid)
    transcendentals = int(N * (HW + Cmid))
    bytes_accessed = int(N * (H + 2) * (W + 2) * Cin * 2       # bf16 input
                         + N * 4 * Cout * HW * 2               # bf16 output
                         + (9 * Cin * Cmid + 9 * Cmid * 4 * Cout) * 2
                         + 4 * (Cmid + 2 * Cmid * Cr + Cr + 2 * Cmid + 4 * Cout))

    kernel = functools.partial(_fused_kernel, H, W, Cin, Cmid, Cout)
    out = pl.pallas_call(
        kernel,
        out_shape=jax.ShapeDtypeStruct((N, 4 * Cout, HW), jnp.bfloat16),
        grid=(N,),
        in_specs=[
            pl.BlockSpec((1, H + 2, W + 2, Cin), lambda b: (b, 0, 0, 0)),
            pl.BlockSpec((9 * Cin, Cmid), lambda b: (0, 0)),
            pl.BlockSpec((1, Cmid), lambda b: (0, 0)),
            pl.BlockSpec((Cmid, Cr), lambda b: (0, 0)),
            pl.BlockSpec((1, Cr), lambda b: (0, 0)),
            pl.BlockSpec((Cr, Cmid), lambda b: (0, 0)),
            pl.BlockSpec((1, Cmid), lambda b: (0, 0)),
            pl.BlockSpec((1, Cmid), lambda b: (0, 0)),
            pl.BlockSpec((9 * Cmid, 4 * Cout), lambda b: (0, 0)),
            pl.BlockSpec((1, 4 * Cout), lambda b: (0, 0)),
        ],
        out_specs=pl.BlockSpec((1, 4 * Cout, HW), lambda b: (b, 0, 0)),
        scratch_shapes=[pltpu.VMEM((H + 2, W + 2, Cmid), jnp.float32)],
        compiler_params=pltpu.CompilerParams(
            dimension_semantics=("parallel",)),
        cost_estimate=pl.CostEstimate(flops=flops,
                                      transcendentals=transcendentals,
                                      bytes_accessed=bytes_accessed),
    )(xp, cw, bn_shift.reshape(1, Cmid),
      params['se_w1'], params['se_b1'].reshape(1, Cr),
      params['se_w2'], params['se_b2'].reshape(1, Cmid),
      params['se_spatial_w'].reshape(1, Cmid),
      dw, db)

    # depth-to-space: (N, (ry, rx, co), h*W + w) -> NCHW (N, Cout, 2H, 2W)
    out = out.reshape(N, 2, 2, Cout, H, W)
    out = jnp.transpose(out, (0, 3, 4, 1, 5, 2)).reshape(N, Cout, 2 * H, 2 * W)
    return out.astype(jnp.float32)


# ----------------------------------------------------------------------------
# Pure-JAX reference (f32, HIGHEST precision) for correctness check
# ----------------------------------------------------------------------------
def reference_forward(params, *args_nchw):
    eps = 1e-5
    x = jnp.concatenate(args_nchw, axis=1)
    y = jnp.transpose(x, (0, 2, 3, 1)).astype(jnp.float32)
    y = lax.conv_general_dilated(
        y, params['conv_w'], (1, 1), ((1, 1), (1, 1)),
        dimension_numbers=('NHWC', 'HWIO', 'NHWC'),
        precision=lax.Precision.HIGHEST) + params['conv_b']
    y = (y - params['bn_mean']) / jnp.sqrt(params['bn_var'] + eps) * \
        params['bn_gamma'] + params['bn_beta']
    y = jnp.maximum(y, 0.0)
    pooled = jnp.mean(y, axis=(1, 2))
    h = jnp.maximum(pooled @ params['se_w1'] + params['se_b1'], 0.0)
    chn = jax.nn.sigmoid(h @ params['se_w2'] + params['se_b2'])
    spa = jax.nn.sigmoid(jnp.einsum('nhwc,cd->nhwd', y, params['se_spatial_w']))
    z = y * chn[:, None, None, :] + y * spa
    w_corr = jnp.transpose(params['deconv_w'], (2, 3, 0, 1))[::-1, ::-1]
    o = lax.conv_general_dilated(
        z, w_corr, (1, 1), ((2, 2), (2, 2)), lhs_dilation=(2, 2),
        dimension_numbers=('NHWC', 'HWIO', 'NHWC'),
        precision=lax.Precision.HIGHEST) + params['deconv_b']
    return jnp.transpose(o, (0, 3, 1, 2))


# ----------------------------------------------------------------------------
# Deterministic parameter init (synthetic; shapes follow the nn.Module)
# ----------------------------------------------------------------------------
def init_params(key, in_channels, middle_channels, out_channels, reduction=16):
    cr = max(middle_channels // reduction, 1)
    ks = jax.random.split(key, 13)
    p = {
        'conv_w': 0.05 * jax.random.normal(ks[0], (3, 3, in_channels, middle_channels), jnp.float32),
        'conv_b': 0.05 * jax.random.normal(ks[1], (middle_channels,), jnp.float32),
        'bn_gamma': 1.0 + 0.1 * jax.random.normal(ks[2], (middle_channels,), jnp.float32),
        'bn_beta': 0.1 * jax.random.normal(ks[3], (middle_channels,), jnp.float32),
        'bn_mean': 0.1 * jax.random.normal(ks[4], (middle_channels,), jnp.float32),
        'bn_var': 1.0 + 0.5 * jax.random.uniform(ks[5], (middle_channels,), jnp.float32),
        'se_w1': 0.1 * jax.random.normal(ks[6], (middle_channels, cr), jnp.float32),
        'se_b1': 0.1 * jax.random.normal(ks[7], (cr,), jnp.float32),
        'se_w2': 0.1 * jax.random.normal(ks[8], (cr, middle_channels), jnp.float32),
        'se_b2': 0.1 * jax.random.normal(ks[9], (middle_channels,), jnp.float32),
        'se_spatial_w': 0.1 * jax.random.normal(ks[10], (middle_channels, 1), jnp.float32),
        'deconv_w': 0.05 * jax.random.normal(ks[11], (middle_channels, out_channels, 4, 4), jnp.float32),
        'deconv_b': 0.05 * jax.random.normal(ks[12], (out_channels,), jnp.float32),
    }
    return p


if __name__ == "__main__":
    key = jax.random.PRNGKey(0)
    N, H, W = 2, 16, 16
    c1, c2 = 4, 12                       # forward concatenates its inputs on channels
    in_channels = c1 + c2
    middle_channels = 32
    out_channels = 8

    k_p, k_x1, k_x2 = jax.random.split(key, 3)
    params = init_params(k_p, in_channels, middle_channels, out_channels)
    x1 = jax.random.normal(k_x1, (N, c1, H, W), jnp.float32)
    x2 = jax.random.normal(k_x2, (N, c2, H, W), jnp.float32)

    fwd = jax.jit(decoder_unet_scse_forward)
    out = fwd(params, x1, x2)
    out = jax.block_until_ready(out)

    assert out.shape == (N, out_channels, 2 * H, 2 * W), out.shape

    ref = jax.block_until_ready(reference_forward(params, x1, x2))
    # bf16 MXU operands + bf16 I/O vs. the f32 HIGHEST reference -> loose tolerance.
    np.testing.assert_allclose(np.asarray(out), np.asarray(ref), rtol=2e-2, atol=2e-2)

    print("KERNEL_OK")
</pallas_src>

<mosaic_0001>
module attributes {stable_mosaic.version = 11 : i64} {
  func.func @_fused_kernel(%arg0: i32, %arg1: memref<1x18x18x16xbf16, #tpu.memory_space<vmem>>, %arg2: memref<144x32xbf16, #tpu.memory_space<vmem>>, %arg3: memref<1x32xf32, #tpu.memory_space<vmem>>, %arg4: memref<32x2xf32, #tpu.memory_space<vmem>>, %arg5: memref<1x2xf32, #tpu.memory_space<vmem>>, %arg6: memref<2x32xf32, #tpu.memory_space<vmem>>, %arg7: memref<1x32xf32, #tpu.memory_space<vmem>>, %arg8: memref<1x32xf32, #tpu.memory_space<vmem>>, %arg9: memref<288x32xbf16, #tpu.memory_space<vmem>>, %arg10: memref<1x32xf32, #tpu.memory_space<vmem>>, %arg11: memref<1x32x256xbf16, #tpu.memory_space<vmem>>, %arg12: memref<18x18x32xf32, #tpu.memory_space<vmem>>) attributes {dimension_semantics = [#tpu.dimension_semantics<parallel>], iteration_bounds = array<i64: 2>, scalar_prefetch = 0 : i64, scratch_operands = 1 : i64, tpu.core_type = #tpu.core_type<tc>, window_params = [{transform_indices = @transform_0, window_bounds = array<i64: 1, 18, 18, 16>}, {pipeline_mode = #tpu.pipeline_mode<synchronous>, transform_indices = @transform_1, window_bounds = array<i64: 144, 32>}, {pipeline_mode = #tpu.pipeline_mode<synchronous>, transform_indices = @transform_2, window_bounds = array<i64: 1, 32>}, {pipeline_mode = #tpu.pipeline_mode<synchronous>, transform_indices = @transform_3, window_bounds = array<i64: 32, 2>}, {pipeline_mode = #tpu.pipeline_mode<synchronous>, transform_indices = @transform_4, window_bounds = array<i64: 1, 2>}, {pipeline_mode = #tpu.pipeline_mode<synchronous>, transform_indices = @transform_5, window_bounds = array<i64: 2, 32>}, {pipeline_mode = #tpu.pipeline_mode<synchronous>, transform_indices = @transform_6, window_bounds = array<i64: 1, 32>}, {pipeline_mode = #tpu.pipeline_mode<synchronous>, transform_indices = @transform_7, window_bounds = array<i64: 1, 32>}, {pipeline_mode = #tpu.pipeline_mode<synchronous>, transform_indices = @transform_8, window_bounds = array<i64: 288, 32>}, {pipeline_mode = #tpu.pipeline_mode<synchronous>, transform_indices = @transform_9, window_bounds = array<i64: 1, 32>}, {transform_indices = @transform_10, window_bounds = array<i64: 1, 32, 256>}]} {
    %c0 = arith.constant 0 : index
    %c0_0 = arith.constant 0 : index
    %c0_1 = arith.constant 0 : index
    %c0_2 = arith.constant 0 : index
    %0 = vector.load %arg1[%c0, %c0_0, %c0_1, %c0_2] : memref<1x18x18x16xbf16, #tpu.memory_space<vmem>>, vector<1x18x18x16xbf16>
    %1 = vector.shape_cast %0 : vector<1x18x18x16xbf16> to vector<18x18x16xbf16>
    %2 = arith.extf %1 : vector<18x18x16xbf16> to vector<18x18x16xf32>
    %3 = vector.extract_strided_slice %2 {offsets = [0, 0, 0], sizes = [16, 16, 16], strides = [1, 1, 1]} : vector<18x18x16xf32> to vector<16x16x16xf32>
    %4 = vector.shape_cast %3 : vector<16x16x16xf32> to vector<256x16xf32>
    %5 = vector.extract_strided_slice %2 {offsets = [0, 1, 0], sizes = [16, 16, 16], strides = [1, 1, 1]} : vector<18x18x16xf32> to vector<16x16x16xf32>
    %6 = vector.shape_cast %5 : vector<16x16x16xf32> to vector<256x16xf32>
    %7 = vector.extract_strided_slice %2 {offsets = [0, 2, 0], sizes = [16, 16, 16], strides = [1, 1, 1]} : vector<18x18x16xf32> to vector<16x16x16xf32>
    %8 = vector.shape_cast %7 : vector<16x16x16xf32> to vector<256x16xf32>
    %9 = vector.extract_strided_slice %2 {offsets = [1, 0, 0], sizes = [16, 16, 16], strides = [1, 1, 1]} : vector<18x18x16xf32> to vector<16x16x16xf32>
    %10 = vector.shape_cast %9 : vector<16x16x16xf32> to vector<256x16xf32>
    %11 = vector.extract_strided_slice %2 {offsets = [1, 1, 0], sizes = [16, 16, 16], strides = [1, 1, 1]} : vector<18x18x16xf32> to vector<16x16x16xf32>
    %12 = vector.shape_cast %11 : vector<16x16x16xf32> to vector<256x16xf32>
    %13 = vector.extract_strided_slice %2 {offsets = [1, 2, 0], sizes = [16, 16, 16], strides = [1, 1, 1]} : vector<18x18x16xf32> to vector<16x16x16xf32>
    %14 = vector.shape_cast %13 : vector<16x16x16xf32> to vector<256x16xf32>
    %15 = vector.extract_strided_slice %2 {offsets = [2, 0, 0], sizes = [16, 16, 16], strides = [1, 1, 1]} : vector<18x18x16xf32> to vector<16x16x16xf32>
    %16 = vector.shape_cast %15 : vector<16x16x16xf32> to vector<256x16xf32>
    %17 = vector.extract_strided_slice %2 {offsets = [2, 1, 0], sizes = [16, 16, 16], strides = [1, 1, 1]} : vector<18x18x16xf32> to vector<16x16x16xf32>
    %18 = vector.shape_cast %17 : vector<16x16x16xf32> to vector<256x16xf32>
    %19 = vector.extract_strided_slice %2 {offsets = [2, 2, 0], sizes = [16, 16, 16], strides = [1, 1, 1]} : vector<18x18x16xf32> to vector<16x16x16xf32>
    %20 = vector.shape_cast %19 : vector<16x16x16xf32> to vector<256x16xf32>
    %21 = tpu.concatenate %4, %6, %8, %10, %12, %14, %16, %18, %20 in 1 : vector<256x16xf32>, vector<256x16xf32>, vector<256x16xf32>, vector<256x16xf32>, vector<256x16xf32>, vector<256x16xf32>, vector<256x16xf32>, vector<256x16xf32>, vector<256x16xf32> -> vector<256x144xf32>
    %22 = arith.truncf %21 : vector<256x144xf32> to vector<256x144xbf16>
    %c0_3 = arith.constant 0 : index
    %c0_4 = arith.constant 0 : index
    %23 = vector.load %arg2[%c0_3, %c0_4] : memref<144x32xbf16, #tpu.memory_space<vmem>>, vector<144x32xbf16>
    %cst = arith.constant dense<0.000000e+00> : vector<256x32xf32>
    %24 = tpu.matmul %22, %23, %cst {dimension_numbers = #tpu.dot_dimension_numbers<[1], [0], [0], [1], [0, 0, 1, 1], [], []>} : vector<256x144xbf16>, vector<144x32xbf16>, vector<256x32xf32> -> vector<256x32xf32>
    %c0_5 = arith.constant 0 : index
    %c0_6 = arith.constant 0 : index
    %25 = vector.load %arg3[%c0_5, %c0_6] : memref<1x32xf32, #tpu.memory_space<vmem>>, vector<1x32xf32>
    %26 = vector.broadcast %25 : vector<1x32xf32> to vector<256x32xf32>
    %27 = arith.addf %24, %26 : vector<256x32xf32>
    %cst_7 = arith.constant 0.000000e+00 : f32
    %28 = vector.broadcast %cst_7 : f32 to vector<256x32xf32>
    %29 = arith.maximumf %27, %28 : vector<256x32xf32>
    %cst_8 = arith.constant dense<0.000000e+00> : vector<32xf32>
    %30 = vector.multi_reduction <add>, %29, %cst_8 [0] : vector<256x32xf32> to vector<32xf32>
    %31 = vector.shape_cast %30 : vector<32xf32> to vector<1x32xf32>
    %cst_9 = arith.constant 2.560000e+02 : f32
    %32 = vector.broadcast %cst_9 : f32 to vector<1x32xf32>
    %33 = arith.divf %31, %32 : vector<1x32xf32>
    %c0_10 = arith.constant 0 : index
    %c0_11 = arith.constant 0 : index
    %34 = vector.load %arg4[%c0_10, %c0_11] : memref<32x2xf32, #tpu.memory_space<vmem>>, vector<32x2xf32>
    %cst_12 = arith.constant dense<0.000000e+00> : vector<1x2xf32>
    %35 = tpu.matmul %33, %34, %cst_12 {dimension_numbers = #tpu.dot_dimension_numbers<[1], [0], [0], [1], [0, 0, 1, 1], [], []>} : vector<1x32xf32>, vector<32x2xf32>, vector<1x2xf32> -> vector<1x2xf32>
    %c0_13 = arith.constant 0 : index
    %c0_14 = arith.constant 0 : index
    %36 = vector.load %arg5[%c0_13, %c0_14] : memref<1x2xf32, #tpu.memory_space<vmem>>, vector<1x2xf32>
    %37 = arith.addf %35, %36 : vector<1x2xf32>
    %cst_15 = arith.constant 0.000000e+00 : f32
    %38 = vector.broadcast %cst_15 : f32 to vector<1x2xf32>
    %39 = arith.maximumf %37, %38 : vector<1x2xf32>
    %c0_16 = arith.constant 0 : index
    %c0_17 = arith.constant 0 : index
    %40 = vector.load %arg6[%c0_16, %c0_17] : memref<2x32xf32, #tpu.memory_space<vmem>>, vector<2x32xf32>
    %cst_18 = arith.constant dense<0.000000e+00> : vector<1x32xf32>
    %41 = tpu.matmul %39, %40, %cst_18 {dimension_numbers = #tpu.dot_dimension_numbers<[1], [0], [0], [1], [0, 0, 1, 1], [], []>} : vector<1x2xf32>, vector<2x32xf32>, vector<1x32xf32> -> vector<1x32xf32>
    %c0_19 = arith.constant 0 : index
    %c0_20 = arith.constant 0 : index
    %42 = vector.load %arg7[%c0_19, %c0_20] : memref<1x32xf32, #tpu.memory_space<vmem>>, vector<1x32xf32>
    %43 = arith.addf %41, %42 : vector<1x32xf32>
    %44 = arith.negf %43 : vector<1x32xf32>
    %45 = math.exp %44 : vector<1x32xf32>
    %cst_21 = arith.constant 1.000000e+00 : f32
    %46 = vector.broadcast %cst_21 : f32 to vector<1x32xf32>
    %47 = arith.addf %46, %45 : vector<1x32xf32>
    %48 = arith.divf %46, %47 : vector<1x32xf32>
    %c0_22 = arith.constant 0 : index
    %c0_23 = arith.constant 0 : index
    %49 = vector.load %arg8[%c0_22, %c0_23] : memref<1x32xf32, #tpu.memory_space<vmem>>, vector<1x32xf32>
    %50 = vector.broadcast %49 : vector<1x32xf32> to vector<256x32xf32>
    %51 = arith.mulf %29, %50 : vector<256x32xf32>
    %cst_24 = arith.constant dense<0.000000e+00> : vector<256xf32>
    %52 = vector.multi_reduction <add>, %51, %cst_24 [1] : vector<256x32xf32> to vector<256xf32>
    %53 = vector.shape_cast %52 : vector<256xf32> to vector<256x1xf32>
    %54 = arith.negf %53 : vector<256x1xf32>
    %55 = math.exp %54 : vector<256x1xf32>
    %cst_25 = arith.constant 1.000000e+00 : f32
    %56 = vector.broadcast %cst_25 : f32 to vector<256x1xf32>
    %57 = arith.addf %56, %55 : vector<256x1xf32>
    %58 = arith.divf %56, %57 : vector<256x1xf32>
    %59 = vector.broadcast %48 : vector<1x32xf32> to vector<256x32xf32>
    %60 = vector.broadcast %58 : vector<256x1xf32> to vector<256x32xf32>
    %61 = arith.addf %59, %60 : vector<256x32xf32>
    %62 = arith.mulf %29, %61 : vector<256x32xf32>
    %cst_26 = arith.constant 0.000000e+00 : f32
    %63 = vector.broadcast %cst_26 : f32 to vector<1x18x32xf32>
    %cst_27 = arith.constant 0.000000e+00 : f32
    %64 = vector.broadcast %cst_27 : f32 to vector<18x1x32xf32>
    %c0_28 = arith.constant 0 : index
    %c0_29 = arith.constant 0 : index
    %c0_30 = arith.constant 0 : index
    %65 = vector.load %arg12[%c0_28, %c0_29, %c0_30] : memref<18x18x32xf32, #tpu.memory_space<vmem>>, vector<1x18x32xf32>
    tpu.vector_store %arg12[%c0_28, %c0_29, %c0_30], %63 {strides = array<i32>} : memref<18x18x32xf32, #tpu.memory_space<vmem>>, vector<1x18x32xf32>,
    %c17 = arith.constant 17 : index
    %c0_31 = arith.constant 0 : index
    %c0_32 = arith.constant 0 : index
    %66 = vector.load %arg12[%c17, %c0_31, %c0_32] : memref<18x18x32xf32, #tpu.memory_space<vmem>>, vector<1x18x32xf32>
    tpu.vector_store %arg12[%c17, %c0_31, %c0_32], %63 {strides = array<i32>} : memref<18x18x32xf32, #tpu.memory_space<vmem>>, vector<1x18x32xf32>,
    %c0_33 = arith.constant 0 : index
    %c0_34 = arith.constant 0 : index
    %c0_35 = arith.constant 0 : index
    %67 = vector.load %arg12[%c0_33, %c0_34, %c0_35] : memref<18x18x32xf32, #tpu.memory_space<vmem>>, vector<18x1x32xf32>
    tpu.vector_store %arg12[%c0_33, %c0_34, %c0_35], %64 {strides = array<i32>} : memref<18x18x32xf32, #tpu.memory_space<vmem>>, vector<18x1x32xf32>,
    %c0_36 = arith.constant 0 : index
    %c17_37 = arith.constant 17 : index
    %c0_38 = arith.constant 0 : index
    %68 = vector.load %arg12[%c0_36, %c17_37, %c0_38] : memref<18x18x32xf32, #tpu.memory_space<vmem>>, vector<18x1x32xf32>
    tpu.vector_store %arg12[%c0_36, %c17_37, %c0_38], %64 {strides = array<i32>} : memref<18x18x32xf32, #tpu.memory_space<vmem>>, vector<18x1x32xf32>,
    %69 = vector.shape_cast %62 : vector<256x32xf32> to vector<16x16x32xf32>
    %c1 = arith.constant 1 : index
    %c1_39 = arith.constant 1 : index
    %c0_40 = arith.constant 0 : index
    %70 = vector.load %arg12[%c1, %c1_39, %c0_40] : memref<18x18x32xf32, #tpu.memory_space<vmem>>, vector<16x16x32xf32>
    tpu.vector_store %arg12[%c1, %c1_39, %c0_40], %69 {strides = array<i32>} : memref<18x18x32xf32, #tpu.memory_space<vmem>>, vector<16x16x32xf32>,
    %c0_41 = arith.constant 0 : index
    %c0_42 = arith.constant 0 : index
    %c0_43 = arith.constant 0 : index
    %71 = vector.load %arg12[%c0_41, %c0_42, %c0_43] : memref<18x18x32xf32, #tpu.memory_space<vmem>>, vector<18x18x32xf32>
    %72 = vector.extract_strided_slice %71 {offsets = [0, 0, 0], sizes = [16, 16, 32], strides = [1, 1, 1]} : vector<18x18x32xf32> to vector<16x16x32xf32>
    %73 = vector.shape_cast %72 : vector<16x16x32xf32> to vector<256x32xf32>
    %74 = vector.extract_strided_slice %71 {offsets = [0, 1, 0], sizes = [16, 16, 32], strides = [1, 1, 1]} : vector<18x18x32xf32> to vector<16x16x32xf32>
    %75 = vector.shape_cast %74 : vector<16x16x32xf32> to vector<256x32xf32>
    %76 = vector.extract_strided_slice %71 {offsets = [0, 2, 0], sizes = [16, 16, 32], strides = [1, 1, 1]} : vector<18x18x32xf32> to vector<16x16x32xf32>
    %77 = vector.shape_cast %76 : vector<16x16x32xf32> to vector<256x32xf32>
    %78 = vector.extract_strided_slice %71 {offsets = [1, 0, 0], sizes = [16, 16, 32], strides = [1, 1, 1]} : vector<18x18x32xf32> to vector<16x16x32xf32>
    %79 = vector.shape_cast %78 : vector<16x16x32xf32> to vector<256x32xf32>
    %80 = vector.extract_strided_slice %71 {offsets = [1, 1, 0], sizes = [16, 16, 32], strides = [1, 1, 1]} : vector<18x18x32xf32> to vector<16x16x32xf32>
    %81 = vector.shape_cast %80 : vector<16x16x32xf32> to vector<256x32xf32>
    %82 = vector.extract_strided_slice %71 {offsets = [1, 2, 0], sizes = [16, 16, 32], strides = [1, 1, 1]} : vector<18x18x32xf32> to vector<16x16x32xf32>
    %83 = vector.shape_cast %82 : vector<16x16x32xf32> to vector<256x32xf32>
    %84 = vector.extract_strided_slice %71 {offsets = [2, 0, 0], sizes = [16, 16, 32], strides = [1, 1, 1]} : vector<18x18x32xf32> to vector<16x16x32xf32>
    %85 = vector.shape_cast %84 : vector<16x16x32xf32> to vector<256x32xf32>
    %86 = vector.extract_strided_slice %71 {offsets = [2, 1, 0], sizes = [16, 16, 32], strides = [1, 1, 1]} : vector<18x18x32xf32> to vector<16x16x32xf32>
    %87 = vector.shape_cast %86 : vector<16x16x32xf32> to vector<256x32xf32>
    %88 = vector.extract_strided_slice %71 {offsets = [2, 2, 0], sizes = [16, 16, 32], strides = [1, 1, 1]} : vector<18x18x32xf32> to vector<16x16x32xf32>
    %89 = vector.shape_cast %88 : vector<16x16x32xf32> to vector<256x32xf32>
    %90 = tpu.concatenate %73, %75, %77, %79, %81, %83, %85, %87, %89 in 1 : vector<256x32xf32>, vector<256x32xf32>, vector<256x32xf32>, vector<256x32xf32>, vector<256x32xf32>, vector<256x32xf32>, vector<256x32xf32>, vector<256x32xf32>, vector<256x32xf32> -> vector<256x288xf32>
    %91 = arith.truncf %90 : vector<256x288xf32> to vector<256x288xbf16>
    %c0_44 = arith.constant 0 : index
    %c0_45 = arith.constant 0 : index
    %92 = vector.load %arg9[%c0_44, %c0_45] : memref<288x32xbf16, #tpu.memory_space<vmem>>, vector<288x32xbf16>
    %cst_46 = arith.constant dense<0.000000e+00> : vector<256x32xf32>
    %93 = tpu.matmul %91, %92, %cst_46 {dimension_numbers = #tpu.dot_dimension_numbers<[1], [0], [0], [1], [0, 0, 1, 1], [], []>} : vector<256x288xbf16>, vector<288x32xbf16>, vector<256x32xf32> -> vector<256x32xf32>
    %c0_47 = arith.constant 0 : index
    %c0_48 = arith.constant 0 : index
    %94 = vector.load %arg10[%c0_47, %c0_48] : memref<1x32xf32, #tpu.memory_space<vmem>>, vector<1x32xf32>
    %95 = vector.broadcast %94 : vector<1x32xf32> to vector<256x32xf32>
    %96 = arith.addf %93, %95 : vector<256x32xf32>
    %97 = tpu.transpose %96, [1, 0] : vector<256x32xf32> -> vector<32x256xf32>
    %98 = arith.truncf %97 : vector<32x256xf32> to vector<32x256xbf16>
    %c0_49 = arith.constant 0 : index
    %c0_50 = arith.constant 0 : index
    %c0_51 = arith.constant 0 : index
    %99 = vector.load %arg11[%c0_49, %c0_50, %c0_51] : memref<1x32x256xbf16, #tpu.memory_space<vmem>>, vector<1x32x256xbf16>
    %100 = vector.shape_cast %99 : vector<1x32x256xbf16> to vector<32x256xbf16>
    %101 = vector.shape_cast %98 : vector<32x256xbf16> to vector<1x32x256xbf16>
    tpu.vector_store %arg11[%c0_49, %c0_50, %c0_51], %101 {strides = array<i32>} : memref<1x32x256xbf16, #tpu.memory_space<vmem>>, vector<1x32x256xbf16>,
    return
  }
  func.func @transform_0(%arg0: i32) -> (i32, i32, i32, i32) {
    %c0_i32 = arith.constant 0 : i32
    %c0_i32_0 = arith.constant 0 : i32
    %c0_i32_1 = arith.constant 0 : i32
    %c0_i32_2 = arith.constant 0 : i32
    return %arg0, %c0_i32, %c0_i32_0, %c0_i32_1 : i32, i32, i32, i32
  }
  func.func @transform_1(%arg0: i32) -> (i32, i32) {
    %c0_i32 = arith.constant 0 : i32
    %c0_i32_0 = arith.constant 0 : i32
    %c0_i32_1 = arith.constant 0 : i32
    return %c0_i32, %c0_i32_0 : i32, i32
  }
  func.func @transform_2(%arg0: i32) -> (i32, i32) {
    %c0_i32 = arith.constant 0 : i32
    %c0_i32_0 = arith.constant 0 : i32
    %c0_i32_1 = arith.constant 0 : i32
    return %c0_i32, %c0_i32_0 : i32, i32
  }
  func.func @transform_3(%arg0: i32) -> (i32, i32) {
    %c0_i32 = arith.constant 0 : i32
    %c0_i32_0 = arith.constant 0 : i32
    %c0_i32_1 = arith.constant 0 : i32
    return %c0_i32, %c0_i32_0 : i32, i32
  }
  func.func @transform_4(%arg0: i32) -> (i32, i32) {
    %c0_i32 = arith.constant 0 : i32
    %c0_i32_0 = arith.constant 0 : i32
    %c0_i32_1 = arith.constant 0 : i32
    return %c0_i32, %c0_i32_0 : i32, i32
  }
  func.func @transform_5(%arg0: i32) -> (i32, i32) {
    %c0_i32 = arith.constant 0 : i32
    %c0_i32_0 = arith.constant 0 : i32
    %c0_i32_1 = arith.constant 0 : i32
    return %c0_i32, %c0_i32_0 : i32, i32
  }
  func.func @transform_6(%arg0: i32) -> (i32, i32) {
    %c0_i32 = arith.constant 0 : i32
    %c0_i32_0 = arith.constant 0 : i32
    %c0_i32_1 = arith.constant 0 : i32
    return %c0_i32, %c0_i32_0 : i32, i32
  }
  func.func @transform_7(%arg0: i32) -> (i32, i32) {
    %c0_i32 = arith.constant 0 : i32
    %c0_i32_0 = arith.constant 0 : i32
    %c0_i32_1 = arith.constant 0 : i32
    return %c0_i32, %c0_i32_0 : i32, i32
  }
  func.func @transform_8(%arg0: i32) -> (i32, i32) {
    %c0_i32 = arith.constant 0 : i32
    %c0_i32_0 = arith.constant 0 : i32
    %c0_i32_1 = arith.constant 0 : i32
    return %c0_i32, %c0_i32_0 : i32, i32
  }
  func.func @transform_9(%arg0: i32) -> (i32, i32) {
    %c0_i32 = arith.constant 0 : i32
    %c0_i32_0 = arith.constant 0 : i32
    %c0_i32_1 = arith.constant 0 : i32
    return %c0_i32, %c0_i32_0 : i32, i32
  }
  func.func @transform_10(%arg0: i32) -> (i32, i32, i32) {
    %c0_i32 = arith.constant 0 : i32
    %c0_i32_0 = arith.constant 0 : i32
    %c0_i32_1 = arith.constant 0 : i32
    return %arg0, %c0_i32, %c0_i32_0 : i32, i32, i32
  }
}

</mosaic_0001>

<llo_original>
// kernel: tile.8
$region0: #{tile.8}
  #allocation0 [shape = 's32[1]{0}', space=sflag, size = 0x4, scoped, tag = 'scoped memory for tile.8']
  %s0 = inlined_call_operand.vmem [shape: f32[8], index: 0, kind: input, shape index: {}]
  %s1 = inlined_call_operand.vmem [shape: f32[4,8], index: 1, kind: output, shape index: {}]
  // Predicated region
  $region2: #{tile.8} parent=0 // pred_check
    _
  $region3: #{tile.8} parent=0 // pred_check_branch
    %3 = sbr.rel (0) target = $region5
  $region4: #{tile.8} parent=0 // pred_region
    _
  $region5: #{tile.8} parent=0 // pred_fallthru
    _
  %v4 = vld [vmem:[%s0] ss:$0 sm:$0xff]
  %5 = vst [vmem:[%s1] sm:$0xf] %v4

// kernel: tile.9
$region0: #{tile.9}
  %s0 = inlined_call_operand.vmem [shape: f32[4,8], index: 0, kind: input, shape index: {}]
  %s1 = inlined_call_operand.vmem [shape: f32[1,32], index: 1, kind: output, shape index: {}]
  $region1: #{tile.9} parent=0
    #allocation0 [shape = 'u8[4096]{0}', space=vmem, size = 0x1000, scoped, tag = 'scoped mem for output reshape']
    #allocation1 [shape = 'u8[4096]{0}', space=vmem, size = 0x1000, scoped, tag = 'scoped mem for input reshape']
    %s3 = sshllo.u32 0, 4
    %v4 = vld [vmem:[%s0] sm:%s3]
    %5 = vst [vmem:[#allocation1] sm:%s3] %v4
    %v6 = vld [vmem:[#allocation1] sm:$0x1]
    %vm7 = vcmask 64512
    %8 = vst.msk [vmem:[#allocation0] sm:$0x1] %vm7, %v6
    %s9 = scalar_lea.vmem [#allocation1], 3
    %v10 = vld [vmem:[%s9] sm:$0x1]
    %11 = vrot.lane.b32.xlu0 %v10, 24
    %v12 = vpop.permute.xlu0 %11
    %vm13 = vcmask 261312
    %14 = vst.msk [vmem:[#allocation0] sm:$0x1] %vm13, %v12
    %s15 = scalar_lea.vmem [#allocation1], 2
    %v16 = vld [vmem:[%s15] sm:$0x1]
    %17 = vrot.lane.b32.xlu0 %v16, 16
    %v18 = vpop.permute.xlu0 %17
    %vm19 = vcmask 195712
    %20 = vst.msk [vmem:[#allocation0] sm:$0x1] %vm19, %v18
    %s21 = scalar_lea.vmem [#allocation1], 1
    %v22 = vld [vmem:[%s21] sm:$0x1]
    %23 = vrot.lane.b32.xlu0 %v22, 8
    %v24 = vpop.permute.xlu0 %23
    %vm25 = vcmask 130112
    %26 = vst.msk [vmem:[#allocation0] sm:$0x1] %vm25, %v24
    %s28 = sshllo.u32 0, 1
    %v30 = vld [vmem:[#allocation0] sm:%s28]
    %s31 = sshllo.u32 0, 1
    %32 = vst [vmem:[%s1] sm:%s31] %v30

// kernel: decoder_unet_scse_forward.1
$region0: #{decoder_unet_scse_forward.1}
  #allocation0 [shape = 'u32[]', space=smem, size = 0x4, offset = 0x4, fixed_abs, tag = 'smem constant byte address 0x4 - core index']
  #allocation1 [shape = 'u32[144,128]{1,0:T(1,128)}', space=vmem, size = 0x12000, scoped, tag = 'internal scratch']
  #allocation2 [shape = 'f32[18,18,32]{2,1,0:T(8,128)}', space=vmem, size = 0x36000, scoped, tag = 'scratch operand']
  %s0 = inlined_call_operand.vmem [shape: bf16[2,18,18,16], index: 0, kind: input, shape index: {}]
  %s1 = inlined_call_operand.vmem [shape: bf16[144,32], index: 1, kind: input, shape index: {}]
  %s2 = inlined_call_operand.vmem [shape: f32[1,32], index: 2, kind: input, shape index: {}]
  %s3 = inlined_call_operand.vmem [shape: f32[32,2], index: 3, kind: input, shape index: {}]
  %s4 = inlined_call_operand.vmem [shape: f32[1,2], index: 4, kind: input, shape index: {}]
  %s5 = inlined_call_operand.vmem [shape: f32[2,32], index: 5, kind: input, shape index: {}]
  %s6 = inlined_call_operand.vmem [shape: f32[1,32], index: 6, kind: input, shape index: {}]
  %s7 = inlined_call_operand.vmem [shape: f32[1,32], index: 7, kind: input, shape index: {}]
  %s8 = inlined_call_operand.vmem [shape: bf16[288,32], index: 8, kind: input, shape index: {}]
  %s9 = inlined_call_operand.vmem [shape: f32[1,32], index: 9, kind: input, shape index: {}]
  %s10 = inlined_call_operand.vmem [shape: bf16[2,32,256], index: 10, kind: output, shape index: {}]
  %s11 = sld [smem:[#allocation0]]
  $region73: #{decoder_unet_scse_forward.1} parent=0
    _
  %s13 = ssub.s32 1, %s11
  %s14 = scalar_select 0, %s13, %s11
  loop: start=0, step=1, limit=4
  $region2: #{decoder_unet_scse_forward.1} parent=0 // loop_pre_header
    _
  $region3: #{decoder_unet_scse_forward.1} parent=0 // loop_header
    %s16 = sphi 0, %s20
    %p17 = scmp.ge.s32.totalorder %s16, 4
    %s26 = sphi 0, %s28
    %s29 = sphi 0, %s26
    %s30 = sphi 0, %s29
    %s46 = sphi 0, %s30
    %s50 = sphi 0, %s50
    %s52 = sphi 0, %s50
    %s53 = sphi 0, %s52
    %s67 = sphi 0, %s53
    %s71 = sphi 0, %s71
    %s73 = sphi 0, %s71
    %s74 = sphi 0, %s73
    %s88 = sphi 0, %s74
    %s92 = sphi 0, %s92
    %s94 = sphi 0, %s92
    %s95 = sphi 0, %s94
    %s109 = sphi 0, %s95
    %s113 = sphi 0, %s113
    %s115 = sphi 0, %s113
    %s116 = sphi 0, %s115
    %s130 = sphi 0, %s116
    %s134 = sphi 0, %s134
    %s136 = sphi 0, %s134
    %s137 = sphi 0, %s136
    %s151 = sphi 0, %s137
    %s155 = sphi 0, %s155
    %s157 = sphi 0, %s155
    %s158 = sphi 0, %s157
    %s172 = sphi 0, %s158
    %s176 = sphi 0, %s176
    %s178 = sphi 0, %s176
    %s179 = sphi 0, %s178
    %s193 = sphi 0, %s179
    %s197 = sphi 0, %s197
    %s199 = sphi 0, %s197
    %s200 = sphi 0, %s199
    %s214 = sphi 0, %s200
    %s218 = sphi 0, %s218
    %s220 = sphi 0, %s218
    %s221 = sphi 0, %s220
    %s235 = sphi 0, %s221
    %s241 = sphi 0, %s243
    %s244 = sphi 0, %s241
    %s245 = sphi 0, %s244
    %s261 = sphi 0, %s245
  $region4: #{decoder_unet_scse_forward.1} parent=0 // loop_header_branch
    %19 = sbr.rel (%p17) target = $region8
  $region5: #{decoder_unet_scse_forward.1} parent=0 // loop_body
    %s21 = ssub.s32 %s16, 1
    %s22 = ssub.s32 %s16, 2
    %s23 = sadd.s32 %s16, 1
    %s24 = ssub.s32 %s16, %s23
    %p25 = scmp.eq.s32.totalorder %s24, 0
    %s27 = sadd.s32 %s26, 1
    %s28 = scalar_select %p25, %s26, %s27
    %p31 = pneg %p25
    %p32 = scmp.eq.s32.totalorder %s16, 1
    %p33 = por %p31, %p32
    %p34 = scmp.ne.s32.totalorder %s26, %s29
    %p35 = scmp.eq.s32.totalorder %s16, 0
    %p36 = por %p34, %p35
    %p37 = scmp.ne.s32.totalorder %s26, %s29
    %p38 = scmp.eq.s32.totalorder %s21, 1
    %p39 = por %p37, %p38
    %p40 = scmp.ne.s32.totalorder %s29, %s30
    %p41 = scmp.eq.s32.totalorder %s21, 0
    %p42 = por %p40, %p41
    %p43 = scmp.ne.s32.totalorder %s29, %s30
    %p44 = scmp.eq.s32.totalorder %s22, 1
    %p45 = por %p43, %p44
    %p47 = scmp.ne.s32.totalorder %s30, %s46
    %p48 = scmp.eq.s32.totalorder %s22, 0
    %p49 = por %p47, %p48
    %s51 = sadd.s32 %s50, 1
    %p54 = scmp.eq.s32.totalorder %s16, 1
    %p55 = scmp.ne.s32.totalorder %s50, %s52
    %p56 = scmp.eq.s32.totalorder %s16, 0
    %p57 = por %p55, %p56
    %p58 = scmp.ne.s32.totalorder %s50, %s52
    %p59 = scmp.eq.s32.totalorder %s21, 1
    %p60 = por %p58, %p59
    %p61 = scmp.ne.s32.totalorder %s52, %s53
    %p62 = scmp.eq.s32.totalorder %s21, 0
    %p63 = por %p61, %p62
    %p64 = scmp.ne.s32.totalorder %s52, %s53
    %p65 = scmp.eq.s32.totalorder %s22, 1
    %p66 = por %p64, %p65
    %p68 = scmp.ne.s32.totalorder %s53, %s67
    %p69 = scmp.eq.s32.totalorder %s22, 0
    %p70 = por %p68, %p69
    %s72 = sadd.s32 %s71, 1
    %p75 = scmp.eq.s32.totalorder %s16, 1
    %p76 = scmp.ne.s32.totalorder %s71, %s73
    %p77 = scmp.eq.s32.totalorder %s16, 0
    %p78 = por %p76, %p77
    %p79 = scmp.ne.s32.totalorder %s71, %s73
    %p80 = scmp.eq.s32.totalorder %s21, 1
    %p81 = por %p79, %p80
    %p82 = scmp.ne.s32.totalorder %s73, %s74
    %p83 = scmp.eq.s32.totalorder %s21, 0
    %p84 = por %p82, %p83
    %p85 = scmp.ne.s32.totalorder %s73, %s74
    %p86 = scmp.eq.s32.totalorder %s22, 1
    %p87 = por %p85, %p86
    %p89 = scmp.ne.s32.totalorder %s74, %s88
    %p90 = scmp.eq.s32.totalorder %s22, 0
    %p91 = por %p89, %p90
    %s93 = sadd.s32 %s92, 1
    %p96 = scmp.eq.s32.totalorder %s16, 1
    %p97 = scmp.ne.s32.totalorder %s92, %s94
    %p98 = scmp.eq.s32.totalorder %s16, 0
    %p99 = por %p97, %p98
    %p100 = scmp.ne.s32.totalorder %s92, %s94
    %p101 = scmp.eq.s32.totalorder %s21, 1
    %p102 = por %p100, %p101
    %p103 = scmp.ne.s32.totalorder %s94, %s95
    %p104 = scmp.eq.s32.totalorder %s21, 0
    %p105 = por %p103, %p104
    %p106 = scmp.ne.s32.totalorder %s94, %s95
    %p107 = scmp.eq.s32.totalorder %s22, 1
    %p108 = por %p106, %p107
    %p110 = scmp.ne.s32.totalorder %s95, %s109
    %p111 = scmp.eq.s32.totalorder %s22, 0
    %p112 = por %p110, %p111
    %s114 = sadd.s32 %s113, 1
    %p117 = scmp.eq.s32.totalorder %s16, 1
    %p118 = scmp.ne.s32.totalorder %s113, %s115
    %p119 = scmp.eq.s32.totalorder %s16, 0
    %p120 = por %p118, %p119
    %p121 = scmp.ne.s32.totalorder %s113, %s115
    %p122 = scmp.eq.s32.totalorder %s21, 1
    %p123 = por %p121, %p122
    %p124 = scmp.ne.s32.totalorder %s115, %s116
    %p125 = scmp.eq.s32.totalorder %s21, 0
    %p126 = por %p124, %p125
    %p127 = scmp.ne.s32.totalorder %s115, %s116
    %p128 = scmp.eq.s32.totalorder %s22, 1
    %p129 = por %p127, %p128
    %p131 = scmp.ne.s32.totalorder %s116, %s130
    %p132 = scmp.eq.s32.totalorder %s22, 0
    %p133 = por %p131, %p132
    %s135 = sadd.s32 %s134, 1
    %p138 = scmp.eq.s32.totalorder %s16, 1
    %p139 = scmp.ne.s32.totalorder %s134, %s136
    %p140 = scmp.eq.s32.totalorder %s16, 0
    %p141 = por %p139, %p140
    %p142 = scmp.ne.s32.totalorder %s134, %s136
    %p143 = scmp.eq.s32.totalorder %s21, 1
    %p144 = por %p142, %p143
    %p145 = scmp.ne.s32.totalorder %s136, %s137
    %p146 = scmp.eq.s32.totalorder %s21, 0
    %p147 = por %p145, %p146
    %p148 = scmp.ne.s32.totalorder %s136, %s137
    %p149 = scmp.eq.s32.totalorder %s22, 1
    %p150 = por %p148, %p149
    %p152 = scmp.ne.s32.totalorder %s137, %s151
    %p153 = scmp.eq.s32.totalorder %s22, 0
    %p154 = por %p152, %p153
    %s156 = sadd.s32 %s155, 1
    %p159 = scmp.eq.s32.totalorder %s16, 1
    %p160 = scmp.ne.s32.totalorder %s155, %s157
    %p161 = scmp.eq.s32.totalorder %s16, 0
    %p162 = por %p160, %p161
    %p163 = scmp.ne.s32.totalorder %s155, %s157
    %p164 = scmp.eq.s32.totalorder %s21, 1
    %p165 = por %p163, %p164
    %p166 = scmp.ne.s32.totalorder %s157, %s158
    %p167 = scmp.eq.s32.totalorder %s21, 0
    %p168 = por %p166, %p167
    %p169 = scmp.ne.s32.totalorder %s157, %s158
    %p170 = scmp.eq.s32.totalorder %s22, 1
    %p171 = por %p169, %p170
    %p173 = scmp.ne.s32.totalorder %s158, %s172
    %p174 = scmp.eq.s32.totalorder %s22, 0
    %p175 = por %p173, %p174
    %s177 = sadd.s32 %s176, 1
    %p180 = scmp.eq.s32.totalorder %s16, 1
    %p181 = scmp.ne.s32.totalorder %s176, %s178
    %p182 = scmp.eq.s32.totalorder %s16, 0
    %p183 = por %p181, %p182
    %p184 = scmp.ne.s32.totalorder %s176, %s178
    %p185 = scmp.eq.s32.totalorder %s21, 1
    %p186 = por %p184, %p185
    %p187 = scmp.ne.s32.totalorder %s178, %s179
    %p188 = scmp.eq.s32.totalorder %s21, 0
    %p189 = por %p187, %p188
    %p190 = scmp.ne.s32.totalorder %s178, %s179
    %p191 = scmp.eq.s32.totalorder %s22, 1
    %p192 = por %p190, %p191
    %p194 = scmp.ne.s32.totalorder %s179, %s193
    %p195 = scmp.eq.s32.totalorder %s22, 0
    %p196 = por %p194, %p195
    %s198 = sadd.s32 %s197, 1
    %p201 = scmp.eq.s32.totalorder %s16, 1
    %p202 = scmp.ne.s32.totalorder %s197, %s199
    %p203 = scmp.eq.s32.totalorder %s16, 0
    %p204 = por %p202, %p203
    %p205 = scmp.ne.s32.totalorder %s197, %s199
    %p206 = scmp.eq.s32.totalorder %s21, 1
    %p207 = por %p205, %p206
    %p208 = scmp.ne.s32.totalorder %s199, %s200
    %p209 = scmp.eq.s32.totalorder %s21, 0
    %p210 = por %p208, %p209
    %p211 = scmp.ne.s32.totalorder %s199, %s200
    %p212 = scmp.eq.s32.totalorder %s22, 1
    %p213 = por %p211, %p212
    %p215 = scmp.ne.s32.totalorder %s200, %s214
    %p216 = scmp.eq.s32.totalorder %s22, 0
    %p217 = por %p215, %p216
    %s219 = sadd.s32 %s218, 1
    %p222 = scmp.eq.s32.totalorder %s16, 1
    %p223 = scmp.ne.s32.totalorder %s218, %s220
    %p224 = scmp.eq.s32.totalorder %s16, 0
    %p225 = por %p223, %p224
    %p226 = scmp.ne.s32.totalorder %s218, %s220
    %p227 = scmp.eq.s32.totalorder %s21, 1
    %p228 = por %p226, %p227
    %p229 = scmp.ne.s32.totalorder %s220, %s221
    %p230 = scmp.eq.s32.totalorder %s21, 0
    %p231 = por %p229, %p230
    %p232 = scmp.ne.s32.totalorder %s220, %s221
    %p233 = scmp.eq.s32.totalorder %s22, 1
    %p234 = por %p232, %p233
    %p236 = scmp.ne.s32.totalorder %s221, %s235
    %p237 = scmp.eq.s32.totalorder %s22, 0
    %p238 = por %p236, %p237
    %s239 = ssub.s32 %s16, %s23
    %p240 = scmp.eq.s32.totalorder %s239, 0
    %s242 = sadd.s32 %s241, 1
    %s243 = scalar_select %p240, %s241, %s242
    %p246 = pneg %p240
    %p247 = scmp.eq.s32.totalorder %s16, 1
    %p248 = por %p246, %p247
    %p249 = scmp.ne.s32.totalorder %s241, %s244
    %p250 = scmp.eq.s32.totalorder %s16, 0
    %p251 = por %p249, %p250
    %p252 = scmp.ne.s32.totalorder %s241, %s244
    %p253 = scmp.eq.s32.totalorder %s21, 1
    %p254 = por %p252, %p253
    %p255 = scmp.ne.s32.totalorder %s244, %s245
    %p256 = scmp.eq.s32.totalorder %s21, 0
    %p257 = por %p255, %p256
    %p258 = scmp.ne.s32.totalorder %s244, %s245
    %p259 = scmp.eq.s32.totalorder %s22, 1
    %p260 = por %p258, %p259
    %p262 = scmp.ne.s32.totalorder %s245, %s261
    %p263 = scmp.eq.s32.totalorder %s22, 0
    %p264 = por %p262, %p263
    %p265 = scmp.le.s32.totalorder 1, %s16
    %p266 = scmp.lt.s32.totalorder %s16, 3
    %p267 = pnand %p265, %p266
    %p268 = pneg %p267
    // Predicated region
    $region9: #{decoder_unet_scse_forward.1} parent=5 // pred_check
      _
    $region10: #{decoder_unet_scse_forward.1} parent=5 // pred_check_branch
      %270 = sbr.rel (%p267) target = $region12
    $region11: #{decoder_unet_scse_forward.1} parent=5 // pred_region
      %s271 = ssub.s32 %s16, 1
      // Predicated region
      $region13: #{decoder_unet_scse_forward.1} parent=11 // pred_check
        %p272 = pneg %p63
      $region14: #{decoder_unet_scse_forward.1} parent=11 // pred_check_branch
        %274 = sbr.rel (%p272) target = $region16
      $region15: #{decoder_unet_scse_forward.1} parent=11 // pred_region
        _
      $region16: #{decoder_unet_scse_forward.1} parent=11 // pred_fallthru
        _
      // Predicated region
      $region17: #{decoder_unet_scse_forward.1} parent=11 // pred_check
        %p275 = pneg %p84
      $region18: #{decoder_unet_scse_forward.1} parent=11 // pred_check_branch
        %277 = sbr.rel (%p275) target = $region20
      $region19: #{decoder_unet_scse_forward.1} parent=11 // pred_region
        _
      $region20: #{decoder_unet_scse_forward.1} parent=11 // pred_fallthru
        _
      // Predicated region
      $region21: #{decoder_unet_scse_forward.1} parent=11 // pred_check
        %p278 = pneg %p105
      $region22: #{decoder_unet_scse_forward.1} parent=11 // pred_check_branch
        %280 = sbr.rel (%p278) target = $region24
      $region23: #{decoder_unet_scse_forward.1} parent=11 // pred_region
        _
      $region24: #{decoder_unet_scse_forward.1} parent=11 // pred_fallthru
        _
      // Predicated region
      $region25: #{decoder_unet_scse_forward.1} parent=11 // pred_check
        %p281 = pneg %p126
      $region26: #{decoder_unet_scse_forward.1} parent=11 // pred_check_branch
        %283 = sbr.rel (%p281) target = $region28
      $region27: #{decoder_unet_scse_forward.1} parent=11 // pred_region
        _
      $region28: #{decoder_unet_scse_forward.1} parent=11 // pred_fallthru
        _
      // Predicated region
      $region29: #{decoder_unet_scse_forward.1} parent=11 // pred_check
        %p284 = pneg %p147
      $region30: #{decoder_unet_scse_forward.1} parent=11 // pred_check_branch
        %286 = sbr.rel (%p284) target = $region32
      $region31: #{decoder_unet_scse_forward.1} parent=11 // pred_region
        _
      $region32: #{decoder_unet_scse_forward.1} parent=11 // pred_fallthru
        _
      // Predicated region
      $region33: #{decoder_unet_scse_forward.1} parent=11 // pred_check
        %p287 = pneg %p168
      $region34: #{decoder_unet_scse_forward.1} parent=11 // pred_check_branch
        %289 = sbr.rel (%p287) target = $region36
      $region35: #{decoder_unet_scse_forward.1} parent=11 // pred_region
        _
      $region36: #{decoder_unet_scse_forward.1} parent=11 // pred_fallthru
        _
      // Predicated region
      $region37: #{decoder_unet_scse_forward.1} parent=11 // pred_check
        %p290 = pneg %p189
      $region38: #{decoder_unet_scse_forward.1} parent=11 // pred_check_branch
        %292 = sbr.rel (%p290) target = $region40
      $region39: #{decoder_unet_scse_forward.1} parent=11 // pred_region
        _
      $region40: #{decoder_unet_scse_forward.1} parent=11 // pred_fallthru
        _
      // Predicated region
      $region41: #{decoder_unet_scse_forward.1} parent=11 // pred_check
        %p293 = pneg %p210
      $region42: #{decoder_unet_scse_forward.1} parent=11 // pred_check_branch
        %295 = sbr.rel (%p293) target = $region44
      $region43: #{decoder_unet_scse_forward.1} parent=11 // pred_region
        _
      $region44: #{decoder_unet_scse_forward.1} parent=11 // pred_fallthru
        _
      // Predicated region
      $region45: #{decoder_unet_scse_forward.1} parent=11 // pred_check
        %p296 = pneg %p231
      $region46: #{decoder_unet_scse_forward.1} parent=11 // pred_check_branch
        %298 = sbr.rel (%p296) target = $region48
      $region47: #{decoder_unet_scse_forward.1} parent=11 // pred_region
        _
      $region48: #{decoder_unet_scse_forward.1} parent=11 // pred_fallthru
        _
    $region12: #{decoder_unet_scse_forward.1} parent=5 // pred_fallthru
      _
    %p299 = scmp.lt.s32.totalorder %s16, 2
    // Predicated region
    $region49: #{decoder_unet_scse_forward.1} parent=5 // pred_check
      %p300 = pneg %p299
    $region50: #{decoder_unet_scse_forward.1} parent=5 // pred_check_branch
      %302 = sbr.rel (%p300) target = $region52
    $region51: #{decoder_unet_scse_forward.1} parent=5 // pred_region
      // Predicated region
      $region53: #{decoder_unet_scse_forward.1} parent=51 // pred_check
        %p303 = pneg %p36
      $region54: #{decoder_unet_scse_forward.1} parent=51 // pred_check_branch
        %305 = sbr.rel (%p303) target = $region56
      $region55: #{decoder_unet_scse_forward.1} parent=51 // pred_region
        %p306 = scmp.lt.s32.totalorder %s16, 1
        %s307 = scalar_select %p306, %s16, 1
        %s308 = smul.addr %s307, 54
        %s309 = smul.addr %s308, 4
        %s310 = scalar_lea.vmem %s0, %s309
      $region56: #{decoder_unet_scse_forward.1} parent=51 // pred_fallthru
        _
    $region52: #{decoder_unet_scse_forward.1} parent=5 // pred_fallthru
      _
    %p311 = scmp.le.s32.totalorder 1, %s16
    %p312 = scmp.lt.s32.totalorder %s16, 3
    %p313 = pnand %p311, %p312
    %p314 = pneg %p313
    // Predicated region
    $region57: #{decoder_unet_scse_forward.1} parent=5 // pred_check
      _
    $region58: #{decoder_unet_scse_forward.1} parent=5 // pred_check_branch
      %316 = sbr.rel (%p313) target = $region60
    $region59: #{decoder_unet_scse_forward.1} parent=5 // pred_region
      %s317 = ssub.s32 %s16, 1
      %p318 = scmp.lt.s32.totalorder %s21, 1
      %s319 = scalar_select %p318, %s21, 1
      %s320 = smul.addr %s319, 54
      %s321 = smul.addr %s320, 4
      %s322 = scalar_lea.vmem %s0, %s321
      %p323 = pneg %p42
      %p324 = pneg %p39
      %p325 = pneg %p63
      %p326 = pneg %p60
      %p327 = pneg %p84
      %p328 = pneg %p81
      %p329 = pneg %p105
      %p330 = pneg %p102
      %p331 = pneg %p126
      %p332 = pneg %p123
      %p333 = pneg %p147
      %p334 = pneg %p144
      %p335 = pneg %p168
      %p336 = pneg %p165
      %p337 = pneg %p189
      %p338 = pneg %p186
      %p339 = pneg %p210
      %p340 = pneg %p207
      %p341 = pneg %p231
      %p342 = pneg %p228
      %p343 = pneg %p257
      %p344 = pneg %p254
      %p345 = scmp.lt.s32.totalorder %s21, 1
      %s346 = scalar_select %p345, %s21, 1
      %s347 = smul.addr %s346, 8
      %s348 = smul.addr %s347, 4
      %s349 = scalar_lea.vmem %s10, %s348
      %p350 = scmp.lt.s32.totalorder %s21, 1
      %s351 = scalar_select %p350, %s21, 1
      %s352 = smul.addr %s351, 54
      %s353 = smul.addr %s352, 4
      %s354 = scalar_lea.vmem %s0, %s353
      %p355 = scmp.lt.s32.totalorder %s21, 1
      %s356 = scalar_select %p355, %s21, 1
      %s357 = smul.addr %s356, 8
      %s358 = smul.addr %s357, 4
      %s359 = scalar_lea.vmem %s10, %s358
      %v361 = vld [vmem:[%s354] sm:$0xf]
      %v362 = vld [vmem:[%s354 + $0x4] sm:$0xf]
      %v363 = vld [vmem:[%s354 + $0x8] sm:$0x1]
      %v364 = vld [vmem:[%s354 + $0xc] sm:$0xf]
      %v365 = vld [vmem:[%s354 + $0x10] sm:$0xf]
      %v366 = vld [vmem:[%s354 + $0x14] sm:$0x1]
      %v367 = vld [vmem:[%s354 + $0x18] sm:$0xf]
      %v368 = vld [vmem:[%s354 + $0x1c] sm:$0xf]
      %v369 = vld [vmem:[%s354 + $0x20] sm:$0x1]
      %v370 = vld [vmem:[%s354 + $0x24] sm:$0xf]
      %v371 = vld [vmem:[%s354 + $0x28] sm:$0xf]
      %v372 = vld [vmem:[%s354 + $0x2c] sm:$0x1]
      %v373 = vld [vmem:[%s354 + $0x30] sm:$0xf]
      %v374 = vld [vmem:[%s354 + $0x34] sm:$0xf]
      %v375 = vld [vmem:[%s354 + $0x38] sm:$0x1]
      %v376 = vld [vmem:[%s354 + $0x3c] sm:$0xf]
      %v377 = vld [vmem:[%s354 + $0x40] sm:$0xf]
      %v378 = vld [vmem:[%s354 + $0x44] sm:$0x1]
      %v379 = vld [vmem:[%s354 + $0x48] sm:$0xf]
      %v380 = vld [vmem:[%s354 + $0x4c] sm:$0xf]
      %v381 = vld [vmem:[%s354 + $0x50] sm:$0x1]
      %v382 = vld [vmem:[%s354 + $0x54] sm:$0xf]
      %v383 = vld [vmem:[%s354 + $0x58] sm:$0xf]
      %v384 = vld [vmem:[%s354 + $0x5c] sm:$0x1]
      %v385 = vld [vmem:[%s354 + $0x60] sm:$0xf]
      %v386 = vld [vmem:[%s354 + $0x64] sm:$0xf]
      %v387 = vld [vmem:[%s354 + $0x68] sm:$0x1]
      %v388 = vld [vmem:[%s354 + $0x6c] sm:$0xf]
      %v389 = vld [vmem:[%s354 + $0x70] sm:$0xf]
      %v390 = vld [vmem:[%s354 + $0x74] sm:$0x1]
      %v391 = vld [vmem:[%s354 + $0x78] sm:$0xf]
      %v392 = vld [vmem:[%s354 + $0x7c] sm:$0xf]
      %v393 = vld [vmem:[%s354 + $0x80] sm:$0x1]
      %v394 = vld [vmem:[%s354 + $0x84] sm:$0xf]
      %v395 = vld [vmem:[%s354 + $0x88] sm:$0xf]
      %v396 = vld [vmem:[%s354 + $0x8c] sm:$0x1]
      %v397 = vld [vmem:[%s354 + $0x90] sm:$0xf]
      %v398 = vld [vmem:[%s354 + $0x94] sm:$0xf]
      %v399 = vld [vmem:[%s354 + $0x98] sm:$0x1]
      %v400 = vld [vmem:[%s354 + $0x9c] sm:$0xf]
      %v401 = vld [vmem:[%s354 + $0xa0] sm:$0xf]
      %v402 = vld [vmem:[%s354 + $0xa4] sm:$0x1]
      %v403 = vld [vmem:[%s354 + $0xa8] sm:$0xf]
      %v404 = vld [vmem:[%s354 + $0xac] sm:$0xf]
      %v405 = vld [vmem:[%s354 + $0xb0] sm:$0x1]
      %v406 = vld [vmem:[%s354 + $0xb4] sm:$0xf]
      %v407 = vld [vmem:[%s354 + $0xb8] sm:$0xf]
      %v408 = vld [vmem:[%s354 + $0xbc] sm:$0x1]
      %v409 = vld [vmem:[%s354 + $0xc0] sm:$0xf]
      %v410 = vld [vmem:[%s354 + $0xc4] sm:$0xf]
      %v411 = vld [vmem:[%s354 + $0xc8] sm:$0x1]
      %v412 = vld [vmem:[%s354 + $0xcc] sm:$0xf]
      %v413 = vld [vmem:[%s354 + $0xd0] sm:$0xf]
      %v414 = vld [vmem:[%s354 + $0xd4] sm:$0x1]
      %v415 = vunpack.c.l.bf16 %v361
      %v416 = vunpack.c.l.bf16 %v362
      %v417 = vunpack.c.l.bf16 %v363
      %v418 = vunpack.c.l.bf16 %v364
      %v419 = vunpack.c.l.bf16 %v365
      %v420 = vunpack.c.l.bf16 %v366
      %v421 = vunpack.c.l.bf16 %v367
      %v422 = vunpack.c.l.bf16 %v368
      %v423 = vunpack.c.l.bf16 %v369
      %v424 = vunpack.c.l.bf16 %v370
      %v425 = vunpack.c.l.bf16 %v371
      %v426 = vunpack.c.l.bf16 %v372
      %v427 = vunpack.c.l.bf16 %v373
      %v428 = vunpack.c.l.bf16 %v374
      %v429 = vunpack.c.l.bf16 %v375
      %v430 = vunpack.c.l.bf16 %v376
      %v431 = vunpack.c.l.bf16 %v377
      %v432 = vunpack.c.l.bf16 %v378
      %v433 = vunpack.c.l.bf16 %v379
      %v434 = vunpack.c.l.bf16 %v380
      %v435 = vunpack.c.l.bf16 %v381
      %v436 = vunpack.c.l.bf16 %v382
      %v437 = vunpack.c.l.bf16 %v383
      %v438 = vunpack.c.l.bf16 %v384
      %v439 = vunpack.c.l.bf16 %v385
      %v440 = vunpack.c.l.bf16 %v386
      %v441 = vunpack.c.l.bf16 %v387
      %v442 = vunpack.c.l.bf16 %v388
      %v443 = vunpack.c.l.bf16 %v389
      %v444 = vunpack.c.l.bf16 %v390
      %v445 = vunpack.c.l.bf16 %v391
      %v446 = vunpack.c.l.bf16 %v392
      %v447 = vunpack.c.l.bf16 %v393
      %v448 = vunpack.c.l.bf16 %v394
      %v449 = vunpack.c.l.bf16 %v395
      %v450 = vunpack.c.l.bf16 %v396
      %v451 = vunpack.c.l.bf16 %v397
      %v452 = vunpack.c.l.bf16 %v398
      %v453 = vunpack.c.l.bf16 %v399
      %v454 = vunpack.c.l.bf16 %v400
      %v455 = vunpack.c.l.bf16 %v401
      %v456 = vunpack.c.l.bf16 %v402
      %v457 = vunpack.c.l.bf16 %v403
      %v458 = vunpack.c.l.bf16 %v404
      %v459 = vunpack.c.l.bf16 %v405
      %v460 = vunpack.c.l.bf16 %v406
      %v461 = vunpack.c.l.bf16 %v407
      %v462 = vunpack.c.l.bf16 %v408
      %v463 = vunpack.c.l.bf16 %v409
      %v464 = vunpack.c.l.bf16 %v410
      %v465 = vunpack.c.l.bf16 %v411
      %v466 = vunpack.c.l.bf16 %v412
      %v467 = vunpack.c.l.bf16 %v413
      %v468 = vunpack.c.l.bf16 %v414
      %vm517 = vcmask 1046528
      %v518 = vrot.slane %v415, 1
      %v519 = vrot.slane %v416, 1
      %v520 = vsel %vm517, %v518, %v519
      %v521 = vrot.slane %v417, 1
      %v522 = vsel %vm517, %v519, %v521
      %v523 = vrot.slane %v418, 1
      %v524 = vrot.slane %v419, 1
      %v525 = vsel %vm517, %v523, %v524
      %v526 = vrot.slane %v420, 1
      %v527 = vsel %vm517, %v524, %v526
      %v528 = vrot.slane %v421, 1
      %v529 = vrot.slane %v422, 1
      %v530 = vsel %vm517, %v528, %v529
      %v531 = vrot.slane %v423, 1
      %v532 = vsel %vm517, %v529, %v531
      %v533 = vrot.slane %v424, 1
      %v534 = vrot.slane %v425, 1
      %v535 = vsel %vm517, %v533, %v534
      %v536 = vrot.slane %v426, 1
      %v537 = vsel %vm517, %v534, %v536
      %v538 = vrot.slane %v427, 1
      %v539 = vrot.slane %v428, 1
      %v540 = vsel %vm517, %v538, %v539
      %v541 = vrot.slane %v429, 1
      %v542 = vsel %vm517, %v539, %v541
      %v543 = vrot.slane %v430, 1
      %v544 = vrot.slane %v431, 1
      %v545 = vsel %vm517, %v543, %v544
      %v546 = vrot.slane %v432, 1
      %v547 = vsel %vm517, %v544, %v546
      %v548 = vrot.slane %v433, 1
      %v549 = vrot.slane %v434, 1
      %v550 = vsel %vm517, %v548, %v549
      %v551 = vrot.slane %v435, 1
      %v552 = vsel %vm517, %v549, %v551
      %v553 = vrot.slane %v436, 1
      %v554 = vrot.slane %v437, 1
      %v555 = vsel %vm517, %v553, %v554
      %v556 = vrot.slane %v438, 1
      %v557 = vsel %vm517, %v554, %v556
      %v558 = vrot.slane %v439, 1
      %v559 = vrot.slane %v440, 1
      %v560 = vsel %vm517, %v558, %v559
      %v561 = vrot.slane %v441, 1
      %v562 = vsel %vm517, %v559, %v561
      %v563 = vrot.slane %v442, 1
      %v564 = vrot.slane %v443, 1
      %v565 = vsel %vm517, %v563, %v564
      %v566 = vrot.slane %v444, 1
      %v567 = vsel %vm517, %v564, %v566
      %v568 = vrot.slane %v445, 1
      %v569 = vrot.slane %v446, 1
      %v570 = vsel %vm517, %v568, %v569
      %v571 = vrot.slane %v447, 1
      %v572 = vsel %vm517, %v569, %v571
      %v573 = vrot.slane %v448, 1
      %v574 = vrot.slane %v449, 1
      %v575 = vsel %vm517, %v573, %v574
      %v576 = vrot.slane %v450, 1
      %v577 = vsel %vm517, %v574, %v576
      %v578 = vrot.slane %v451, 1
      %v579 = vrot.slane %v452, 1
      %v580 = vsel %vm517, %v578, %v579
      %v581 = vrot.slane %v453, 1
      %v582 = vsel %vm517, %v579, %v581
      %v583 = vrot.slane %v454, 1
      %v584 = vrot.slane %v455, 1
      %v585 = vsel %vm517, %v583, %v584
      %v586 = vrot.slane %v456, 1
      %v587 = vsel %vm517, %v584, %v586
      %v588 = vrot.slane %v457, 1
      %v589 = vrot.slane %v458, 1
      %v590 = vsel %vm517, %v588, %v589
      %v591 = vrot.slane %v459, 1
      %v592 = vsel %vm517, %v589, %v591
      %v593 = vrot.slane %v460, 1
      %v594 = vrot.slane %v461, 1
      %v595 = vsel %vm517, %v593, %v594
      %v596 = vrot.slane %v462, 1
      %v597 = vsel %vm517, %v594, %v596
      %vm598 = vcmask 1045504
      %v599 = vrot.slane %v415, 2
      %v600 = vrot.slane %v416, 2
      %v601 = vsel %vm598, %v599, %v600
      %v602 = vrot.slane %v417, 2
      %v603 = vsel %vm598, %v600, %v602
      %v604 = vrot.slane %v418, 2
      %v605 = vrot.slane %v419, 2
      %v606 = vsel %vm598, %v604, %v605
      %v607 = vrot.slane %v420, 2
      %v608 = vsel %vm598, %v605, %v607
      %v609 = vrot.slane %v421, 2
      %v610 = vrot.slane %v422, 2
      %v611 = vsel %vm598, %v609, %v610
      %v612 = vrot.slane %v423, 2
      %v613 = vsel %vm598, %v610, %v612
      %v614 = vrot.slane %v424, 2
      %v615 = vrot.slane %v425, 2
      %v616 = vsel %vm598, %v614, %v615
      %v617 = vrot.slane %v426, 2
      %v618 = vsel %vm598, %v615, %v617
      %v619 = vrot.slane %v427, 2
      %v620 = vrot.slane %v428, 2
      %v621 = vsel %vm598, %v619, %v620
      %v622 = vrot.slane %v429, 2
      %v623 = vsel %vm598, %v620, %v622
      %v624 = vrot.slane %v430, 2
      %v625 = vrot.slane %v431, 2
      %v626 = vsel %vm598, %v624, %v625
      %v627 = vrot.slane %v432, 2
      %v628 = vsel %vm598, %v625, %v627
      %v629 = vrot.slane %v433, 2
      %v630 = vrot.slane %v434, 2
      %v631 = vsel %vm598, %v629, %v630
      %v632 = vrot.slane %v435, 2
      %v633 = vsel %vm598, %v630, %v632
      %v634 = vrot.slane %v436, 2
      %v635 = vrot.slane %v437, 2
      %v636 = vsel %vm598, %v634, %v635
      %v637 = vrot.slane %v438, 2
      %v638 = vsel %vm598, %v635, %v637
      %v639 = vrot.slane %v439, 2
      %v640 = vrot.slane %v440, 2
      %v641 = vsel %vm598, %v639, %v640
      %v642 = vrot.slane %v441, 2
      %v643 = vsel %vm598, %v640, %v642
      %v644 = vrot.slane %v442, 2
      %v645 = vrot.slane %v443, 2
      %v646 = vsel %vm598, %v644, %v645
      %v647 = vrot.slane %v444, 2
      %v648 = vsel %vm598, %v645, %v647
      %v649 = vrot.slane %v445, 2
      %v650 = vrot.slane %v446, 2
      %v651 = vsel %vm598, %v649, %v650
      %v652 = vrot.slane %v447, 2
      %v653 = vsel %vm598, %v650, %v652
      %v654 = vrot.slane %v448, 2
      %v655 = vrot.slane %v449, 2
      %v656 = vsel %vm598, %v654, %v655
      %v657 = vrot.slane %v450, 2
      %v658 = vsel %vm598, %v655, %v657
      %v659 = vrot.slane %v451, 2
      %v660 = vrot.slane %v452, 2
      %v661 = vsel %vm598, %v659, %v660
      %v662 = vrot.slane %v453, 2
      %v663 = vsel %vm598, %v660, %v662
      %v664 = vrot.slane %v454, 2
      %v665 = vrot.slane %v455, 2
      %v666 = vsel %vm598, %v664, %v665
      %v667 = vrot.slane %v456, 2
      %v668 = vsel %vm598, %v665, %v667
      %v669 = vrot.slane %v457, 2
      %v670 = vrot.slane %v458, 2
      %v671 = vsel %vm598, %v669, %v670
      %v672 = vrot.slane %v459, 2
      %v673 = vsel %vm598, %v670, %v672
      %v674 = vrot.slane %v460, 2
      %v675 = vrot.slane %v461, 2
      %v676 = vsel %vm598, %v674, %v675
      %v677 = vrot.slane %v462, 2
      %v678 = vsel %vm598, %v675, %v677
      %v682 = vrot.slane %v463, 1
      %v683 = vrot.slane %v464, 1
      %v684 = vsel %vm517, %v682, %v683
      %v685 = vrot.slane %v465, 1
      %v686 = vsel %vm517, %v683, %v685
      %v687 = vrot.slane %v463, 2
      %v688 = vrot.slane %v464, 2
      %v689 = vsel %vm598, %v687, %v688
      %v690 = vrot.slane %v465, 2
      %v691 = vsel %vm598, %v688, %v690
      %v695 = vrot.slane %v466, 1
      %v696 = vrot.slane %v467, 1
      %v697 = vsel %vm517, %v695, %v696
      %v698 = vrot.slane %v468, 1
      %v699 = vsel %vm517, %v696, %v698
      %v700 = vrot.slane %v466, 2
      %v701 = vrot.slane %v467, 2
      %v702 = vsel %vm598, %v700, %v701
      %v703 = vrot.slane %v468, 2
      %v704 = vsel %vm598, %v701, %v703
      %737 = vrot.lane.b32.xlu0 %v520, 16
      %v738 = vpop.permute.xlu0 %737
      %739 = vrot.lane.b32.xlu0 %v522, 16
      %v740 = vpop.permute.xlu0 %739
      %741 = vrot.lane.b32.xlu0 %v525, 16
      %v742 = vpop.permute.xlu0 %741
      %743 = vrot.lane.b32.xlu0 %v527, 16
      %v744 = vpop.permute.xlu0 %743
      %745 = vrot.lane.b32.xlu0 %v530, 16
      %v746 = vpop.permute.xlu0 %745
      %747 = vrot.lane.b32.xlu0 %v532, 16
      %v748 = vpop.permute.xlu0 %747
      %749 = vrot.lane.b32.xlu0 %v535, 16
      %v750 = vpop.permute.xlu0 %749
      %751 = vrot.lane.b32.xlu0 %v537, 16
      %v752 = vpop.permute.xlu0 %751
      %753 = vrot.lane.b32.xlu0 %v540, 16
      %v754 = vpop.permute.xlu0 %753
      %755 = vrot.lane.b32.xlu0 %v542, 16
      %v756 = vpop.permute.xlu0 %755
      %757 = vrot.lane.b32.xlu0 %v545, 16
      %v758 = vpop.permute.xlu0 %757
      %759 = vrot.lane.b32.xlu0 %v547, 16
      %v760 = vpop.permute.xlu0 %759
      %761 = vrot.lane.b32.xlu0 %v550, 16
      %v762 = vpop.permute.xlu0 %761
      %763 = vrot.lane.b32.xlu0 %v552, 16
      %v764 = vpop.permute.xlu0 %763
      %765 = vrot.lane.b32.xlu0 %v555, 16
      %v766 = vpop.permute.xlu0 %765
      %767 = vrot.lane.b32.xlu0 %v557, 16
      %v768 = vpop.permute.xlu0 %767
      %769 = vrot.lane.b32.xlu0 %v560, 16
      %v770 = vpop.permute.xlu0 %769
      %771 = vrot.lane.b32.xlu0 %v562, 16
      %v772 = vpop.permute.xlu0 %771
      %773 = vrot.lane.b32.xlu0 %v565, 16
      %v774 = vpop.permute.xlu0 %773
      %775 = vrot.lane.b32.xlu0 %v567, 16
      %v776 = vpop.permute.xlu0 %775
      %777 = vrot.lane.b32.xlu0 %v570, 16
      %v778 = vpop.permute.xlu0 %777
      %779 = vrot.lane.b32.xlu0 %v572, 16
      %v780 = vpop.permute.xlu0 %779
      %781 = vrot.lane.b32.xlu0 %v575, 16
      %v782 = vpop.permute.xlu0 %781
      %783 = vrot.lane.b32.xlu0 %v577, 16
      %v784 = vpop.permute.xlu0 %783
      %785 = vrot.lane.b32.xlu0 %v580, 16
      %v786 = vpop.permute.xlu0 %785
      %787 = vrot.lane.b32.xlu0 %v582, 16
      %v788 = vpop.permute.xlu0 %787
      %789 = vrot.lane.b32.xlu0 %v585, 16
      %v790 = vpop.permute.xlu0 %789
      %791 = vrot.lane.b32.xlu0 %v587, 16
      %v792 = vpop.permute.xlu0 %791
      %793 = vrot.lane.b32.xlu0 %v590, 16
      %v794 = vpop.permute.xlu0 %793
      %795 = vrot.lane.b32.xlu0 %v592, 16
      %v796 = vpop.permute.xlu0 %795
      %797 = vrot.lane.b32.xlu0 %v595, 16
      %v798 = vpop.permute.xlu0 %797
      %799 = vrot.lane.b32.xlu0 %v597, 16
      %v800 = vpop.permute.xlu0 %799
      %833 = vrot.lane.b32.xlu0 %v601, 32
      %v834 = vpop.permute.xlu0 %833
      %835 = vrot.lane.b32.xlu0 %v603, 32
      %v836 = vpop.permute.xlu0 %835
      %837 = vrot.lane.b32.xlu0 %v606, 32
      %v838 = vpop.permute.xlu0 %837
      %839 = vrot.lane.b32.xlu0 %v608, 32
      %v840 = vpop.permute.xlu0 %839
      %841 = vrot.lane.b32.xlu0 %v611, 32
      %v842 = vpop.permute.xlu0 %841
      %843 = vrot.lane.b32.xlu0 %v613, 32
      %v844 = vpop.permute.xlu0 %843
      %845 = vrot.lane.b32.xlu0 %v616, 32
      %v846 = vpop.permute.xlu0 %845
      %847 = vrot.lane.b32.xlu0 %v618, 32
      %v848 = vpop.permute.xlu0 %847
      %849 = vrot.lane.b32.xlu0 %v621, 32
      %v850 = vpop.permute.xlu0 %849
      %851 = vrot.lane.b32.xlu0 %v623, 32
      %v852 = vpop.permute.xlu0 %851
      %853 = vrot.lane.b32.xlu0 %v626, 32
      %v854 = vpop.permute.xlu0 %853
      %855 = vrot.lane.b32.xlu0 %v628, 32
      %v856 = vpop.permute.xlu0 %855
      %857 = vrot.lane.b32.xlu0 %v631, 32
      %v858 = vpop.permute.xlu0 %857
      %859 = vrot.lane.b32.xlu0 %v633, 32
      %v860 = vpop.permute.xlu0 %859
      %861 = vrot.lane.b32.xlu0 %v636, 32
      %v862 = vpop.permute.xlu0 %861
      %863 = vrot.lane.b32.xlu0 %v638, 32
      %v864 = vpop.permute.xlu0 %863
      %865 = vrot.lane.b32.xlu0 %v641, 32
      %v866 = vpop.permute.xlu0 %865
      %867 = vrot.lane.b32.xlu0 %v643, 32
      %v868 = vpop.permute.xlu0 %867
      %869 = vrot.lane.b32.xlu0 %v646, 32
      %v870 = vpop.permute.xlu0 %869
      %871 = vrot.lane.b32.xlu0 %v648, 32
      %v872 = vpop.permute.xlu0 %871
      %873 = vrot.lane.b32.xlu0 %v651, 32
      %v874 = vpop.permute.xlu0 %873
      %875 = vrot.lane.b32.xlu0 %v653, 32
      %v876 = vpop.permute.xlu0 %875
      %877 = vrot.lane.b32.xlu0 %v656, 32
      %v878 = vpop.permute.xlu0 %877
      %879 = vrot.lane.b32.xlu0 %v658, 32
      %v880 = vpop.permute.xlu0 %879
      %881 = vrot.lane.b32.xlu0 %v661, 32
      %v882 = vpop.permute.xlu0 %881
      %883 = vrot.lane.b32.xlu0 %v663, 32
      %v884 = vpop.permute.xlu0 %883
      %885 = vrot.lane.b32.xlu0 %v666, 32
      %v886 = vpop.permute.xlu0 %885
      %887 = vrot.lane.b32.xlu0 %v668, 32
      %v888 = vpop.permute.xlu0 %887
      %889 = vrot.lane.b32.xlu0 %v671, 32
      %v890 = vpop.permute.xlu0 %889
      %891 = vrot.lane.b32.xlu0 %v673, 32
      %v892 = vpop.permute.xlu0 %891
      %893 = vrot.lane.b32.xlu0 %v676, 32
      %v894 = vpop.permute.xlu0 %893
      %895 = vrot.lane.b32.xlu0 %v678, 32
      %v896 = vpop.permute.xlu0 %895
      %929 = vrot.lane.b32.xlu0 %v418, 48
      %v930 = vpop.permute.xlu0 %929
      %931 = vrot.lane.b32.xlu0 %v419, 48
      %v932 = vpop.permute.xlu0 %931
      %933 = vrot.lane.b32.xlu0 %v421, 48
      %v934 = vpop.permute.xlu0 %933
      %935 = vrot.lane.b32.xlu0 %v422, 48
      %v936 = vpop.permute.xlu0 %935
      %937 = vrot.lane.b32.xlu0 %v424, 48
      %v938 = vpop.permute.xlu0 %937
      %939 = vrot.lane.b32.xlu0 %v425, 48
      %v940 = vpop.permute.xlu0 %939
      %941 = vrot.lane.b32.xlu0 %v427, 48
      %v942 = vpop.permute.xlu0 %941
      %943 = vrot.lane.b32.xlu0 %v428, 48
      %v944 = vpop.permute.xlu0 %943
      %945 = vrot.lane.b32.xlu0 %v430, 48
      %v946 = vpop.permute.xlu0 %945
      %947 = vrot.lane.b32.xlu0 %v431, 48
      %v948 = vpop.permute.xlu0 %947
      %949 = vrot.lane.b32.xlu0 %v433, 48
      %v950 = vpop.permute.xlu0 %949
      %951 = vrot.lane.b32.xlu0 %v434, 48
      %v952 = vpop.permute.xlu0 %951
      %953 = vrot.lane.b32.xlu0 %v436, 48
      %v954 = vpop.permute.xlu0 %953
      %955 = vrot.lane.b32.xlu0 %v437, 48
      %v956 = vpop.permute.xlu0 %955
      %957 = vrot.lane.b32.xlu0 %v439, 48
      %v958 = vpop.permute.xlu0 %957
      %959 = vrot.lane.b32.xlu0 %v440, 48
      %v960 = vpop.permute.xlu0 %959
      %961 = vrot.lane.b32.xlu0 %v442, 48
      %v962 = vpop.permute.xlu0 %961
      %963 = vrot.lane.b32.xlu0 %v443, 48
      %v964 = vpop.permute.xlu0 %963
      %965 = vrot.lane.b32.xlu0 %v445, 48
      %v966 = vpop.permute.xlu0 %965
      %967 = vrot.lane.b32.xlu0 %v446, 48
      %v968 = vpop.permute.xlu0 %967
      %969 = vrot.lane.b32.xlu0 %v448, 48
      %v970 = vpop.permute.xlu0 %969
      %971 = vrot.lane.b32.xlu0 %v449, 48
      %v972 = vpop.permute.xlu0 %971
      %973 = vrot.lane.b32.xlu0 %v451, 48
      %v974 = vpop.permute.xlu0 %973
      %975 = vrot.lane.b32.xlu0 %v452, 48
      %v976 = vpop.permute.xlu0 %975
      %977 = vrot.lane.b32.xlu0 %v454, 48
      %v978 = vpop.permute.xlu0 %977
      %979 = vrot.lane.b32.xlu0 %v455, 48
      %v980 = vpop.permute.xlu0 %979
      %981 = vrot.lane.b32.xlu0 %v457, 48
      %v982 = vpop.permute.xlu0 %981
      %983 = vrot.lane.b32.xlu0 %v458, 48
      %v984 = vpop.permute.xlu0 %983
      %985 = vrot.lane.b32.xlu0 %v460, 48
      %v986 = vpop.permute.xlu0 %985
      %987 = vrot.lane.b32.xlu0 %v461, 48
      %v988 = vpop.permute.xlu0 %987
      %989 = vrot.lane.b32.xlu0 %v463, 48
      %v990 = vpop.permute.xlu0 %989
      %991 = vrot.lane.b32.xlu0 %v464, 48
      %v992 = vpop.permute.xlu0 %991
      %1025 = vrot.lane.b32.xlu0 %v525, 64
      %v1026 = vpop.permute.xlu0 %1025
      %1027 = vrot.lane.b32.xlu0 %v527, 64
      %v1028 = vpop.permute.xlu0 %1027
      %1029 = vrot.lane.b32.xlu0 %v530, 64
      %v1030 = vpop.permute.xlu0 %1029
      %1031 = vrot.lane.b32.xlu0 %v532, 64
      %v1032 = vpop.permute.xlu0 %1031
      %1033 = vrot.lane.b32.xlu0 %v535, 64
      %v1034 = vpop.permute.xlu0 %1033
      %1035 = vrot.lane.b32.xlu0 %v537, 64
      %v1036 = vpop.permute.xlu0 %1035
      %1037 = vrot.lane.b32.xlu0 %v540, 64
      %v1038 = vpop.permute.xlu0 %1037
      %1039 = vrot.lane.b32.xlu0 %v542, 64
      %v1040 = vpop.permute.xlu0 %1039
      %1041 = vrot.lane.b32.xlu0 %v545, 64
      %v1042 = vpop.permute.xlu0 %1041
      %1043 = vrot.lane.b32.xlu0 %v547, 64
      %v1044 = vpop.permute.xlu0 %1043
      %1045 = vrot.lane.b32.xlu0 %v550, 64
      %v1046 = vpop.permute.xlu0 %1045
      %1047 = vrot.lane.b32.xlu0 %v552, 64
      %v1048 = vpop.permute.xlu0 %1047
      %1049 = vrot.lane.b32.xlu0 %v555, 64
      %v1050 = vpop.permute.xlu0 %1049
      %1051 = vrot.lane.b32.xlu0 %v557, 64
      %v1052 = vpop.permute.xlu0 %1051
      %1053 = vrot.lane.b32.xlu0 %v560, 64
      %v1054 = vpop.permute.xlu0 %1053
      %1055 = vrot.lane.b32.xlu0 %v562, 64
      %v1056 = vpop.permute.xlu0 %1055
      %1057 = vrot.lane.b32.xlu0 %v565, 64
      %v1058 = vpop.permute.xlu0 %1057
      %1059 = vrot.lane.b32.xlu0 %v567, 64
      %v1060 = vpop.permute.xlu0 %1059
      %1061 = vrot.lane.b32.xlu0 %v570, 64
      %v1062 = vpop.permute.xlu0 %1061
      %1063 = vrot.lane.b32.xlu0 %v572, 64
      %v1064 = vpop.permute.xlu0 %1063
      %1065 = vrot.lane.b32.xlu0 %v575, 64
      %v1066 = vpop.permute.xlu0 %1065
      %1067 = vrot.lane.b32.xlu0 %v577, 64
      %v1068 = vpop.permute.xlu0 %1067
      %1069 = vrot.lane.b32.xlu0 %v580, 64
      %v1070 = vpop.permute.xlu0 %1069
      %1071 = vrot.lane.b32.xlu0 %v582, 64
      %v1072 = vpop.permute.xlu0 %1071
      %1073 = vrot.lane.b32.xlu0 %v585, 64
      %v1074 = vpop.permute.xlu0 %1073
      %1075 = vrot.lane.b32.xlu0 %v587, 64
      %v1076 = vpop.permute.xlu0 %1075
      %1077 = vrot.lane.b32.xlu0 %v590, 64
      %v1078 = vpop.permute.xlu0 %1077
      %1079 = vrot.lane.b32.xlu0 %v592, 64
      %v1080 = vpop.permute.xlu0 %1079
      %1081 = vrot.lane.b32.xlu0 %v595, 64
      %v1082 = vpop.permute.xlu0 %1081
      %1083 = vrot.lane.b32.xlu0 %v597, 64
      %v1084 = vpop.permute.xlu0 %1083
      %1085 = vrot.lane.b32.xlu0 %v684, 64
      %v1086 = vpop.permute.xlu0 %1085
      %1087 = vrot.lane.b32.xlu0 %v686, 64
      %v1088 = vpop.permute.xlu0 %1087
      %1121 = vrot.lane.b32.xlu0 %v606, 80
      %v1122 = vpop.permute.xlu0 %1121
      %1123 = vrot.lane.b32.xlu0 %v608, 80
      %v1124 = vpop.permute.xlu0 %1123
      %1125 = vrot.lane.b32.xlu0 %v611, 80
      %v1126 = vpop.permute.xlu0 %1125
      %1127 = vrot.lane.b32.xlu0 %v613, 80
      %v1128 = vpop.permute.xlu0 %1127
      %1129 = vrot.lane.b32.xlu0 %v616, 80
      %v1130 = vpop.permute.xlu0 %1129
      %1131 = vrot.lane.b32.xlu0 %v618, 80
      %v1132 = vpop.permute.xlu0 %1131
      %1133 = vrot.lane.b32.xlu0 %v621, 80
      %v1134 = vpop.permute.xlu0 %1133
      %1135 = vrot.lane.b32.xlu0 %v623, 80
      %v1136 = vpop.permute.xlu0 %1135
      %1137 = vrot.lane.b32.xlu0 %v626, 80
      %v1138 = vpop.permute.xlu0 %1137
      %1139 = vrot.lane.b32.xlu0 %v628, 80
      %v1140 = vpop.permute.xlu0 %1139
      %1141 = vrot.lane.b32.xlu0 %v631, 80
      %v1142 = vpop.permute.xlu0 %1141
      %1143 = vrot.lane.b32.xlu0 %v633, 80
      %v1144 = vpop.permute.xlu0 %1143
      %1145 = vrot.lane.b32.xlu0 %v636, 80
      %v1146 = vpop.permute.xlu0 %1145
      %1147 = vrot.lane.b32.xlu0 %v638, 80
      %v1148 = vpop.permute.xlu0 %1147
      %1149 = vrot.lane.b32.xlu0 %v641, 80
      %v1150 = vpop.permute.xlu0 %1149
      %1151 = vrot.lane.b32.xlu0 %v643, 80
      %v1152 = vpop.permute.xlu0 %1151
      %1153 = vrot.lane.b32.xlu0 %v646, 80
      %v1154 = vpop.permute.xlu0 %1153
      %1155 = vrot.lane.b32.xlu0 %v648, 80
      %v1156 = vpop.permute.xlu0 %1155
      %1157 = vrot.lane.b32.xlu0 %v651, 80
      %v1158 = vpop.permute.xlu0 %1157
      %1159 = vrot.lane.b32.xlu0 %v653, 80
      %v1160 = vpop.permute.xlu0 %1159
      %1161 = vrot.lane.b32.xlu0 %v656, 80
      %v1162 = vpop.permute.xlu0 %1161
      %1163 = vrot.lane.b32.xlu0 %v658, 80
      %v1164 = vpop.permute.xlu0 %1163
      %1165 = vrot.lane.b32.xlu0 %v661, 80
      %v1166 = vpop.permute.xlu0 %1165
      %1167 = vrot.lane.b32.xlu0 %v663, 80
      %v1168 = vpop.permute.xlu0 %1167
      %1169 = vrot.lane.b32.xlu0 %v666, 80
      %v1170 = vpop.permute.xlu0 %1169
      %1171 = vrot.lane.b32.xlu0 %v668, 80
      %v1172 = vpop.permute.xlu0 %1171
      %1173 = vrot.lane.b32.xlu0 %v671, 80
      %v1174 = vpop.permute.xlu0 %1173
      %1175 = vrot.lane.b32.xlu0 %v673, 80
      %v1176 = vpop.permute.xlu0 %1175
      %1177 = vrot.lane.b32.xlu0 %v676, 80
      %v1178 = vpop.permute.xlu0 %1177
      %1179 = vrot.lane.b32.xlu0 %v678, 80
      %v1180 = vpop.permute.xlu0 %1179
      %1181 = vrot.lane.b32.xlu0 %v689, 80
      %v1182 = vpop.permute.xlu0 %1181
      %1183 = vrot.lane.b32.xlu0 %v691, 80
      %v1184 = vpop.permute.xlu0 %1183
      %1217 = vrot.lane.b32.xlu0 %v421, 96
      %v1218 = vpop.permute.xlu0 %1217
      %1219 = vrot.lane.b32.xlu0 %v422, 96
      %v1220 = vpop.permute.xlu0 %1219
      %1221 = vrot.lane.b32.xlu0 %v424, 96
      %v1222 = vpop.permute.xlu0 %1221
      %1223 = vrot.lane.b32.xlu0 %v425, 96
      %v1224 = vpop.permute.xlu0 %1223
      %1225 = vrot.lane.b32.xlu0 %v427, 96
      %v1226 = vpop.permute.xlu0 %1225
      %1227 = vrot.lane.b32.xlu0 %v428, 96
      %v1228 = vpop.permute.xlu0 %1227
      %1229 = vrot.lane.b32.xlu0 %v430, 96
      %v1230 = vpop.permute.xlu0 %1229
      %1231 = vrot.lane.b32.xlu0 %v431, 96
      %v1232 = vpop.permute.xlu0 %1231
      %1233 = vrot.lane.b32.xlu0 %v433, 96
      %v1234 = vpop.permute.xlu0 %1233
      %1235 = vrot.lane.b32.xlu0 %v434, 96
      %v1236 = vpop.permute.xlu0 %1235
      %1237 = vrot.lane.b32.xlu0 %v436, 96
      %v1238 = vpop.permute.xlu0 %1237
      %1239 = vrot.lane.b32.xlu0 %v437, 96
      %v1240 = vpop.permute.xlu0 %1239
      %1241 = vrot.lane.b32.xlu0 %v439, 96
      %v1242 = vpop.permute.xlu0 %1241
      %1243 = vrot.lane.b32.xlu0 %v440, 96
      %v1244 = vpop.permute.xlu0 %1243
      %1245 = vrot.lane.b32.xlu0 %v442, 96
      %v1246 = vpop.permute.xlu0 %1245
      %1247 = vrot.lane.b32.xlu0 %v443, 96
      %v1248 = vpop.permute.xlu0 %1247
      %1249 = vrot.lane.b32.xlu0 %v445, 96
      %v1250 = vpop.permute.xlu0 %1249
      %1251 = vrot.lane.b32.xlu0 %v446, 96
      %v1252 = vpop.permute.xlu0 %1251
      %1253 = vrot.lane.b32.xlu0 %v448, 96
      %v1254 = vpop.permute.xlu0 %1253
      %1255 = vrot.lane.b32.xlu0 %v449, 96
      %v1256 = vpop.permute.xlu0 %1255
      %1257 = vrot.lane.b32.xlu0 %v451, 96
      %v1258 = vpop.permute.xlu0 %1257
      %1259 = vrot.lane.b32.xlu0 %v452, 96
      %v1260 = vpop.permute.xlu0 %1259
      %1261 = vrot.lane.b32.xlu0 %v454, 96
      %v1262 = vpop.permute.xlu0 %1261
      %1263 = vrot.lane.b32.xlu0 %v455, 96
      %v1264 = vpop.permute.xlu0 %1263
      %1265 = vrot.lane.b32.xlu0 %v457, 96
      %v1266 = vpop.permute.xlu0 %1265
      %1267 = vrot.lane.b32.xlu0 %v458, 96
      %v1268 = vpop.permute.xlu0 %1267
      %1269 = vrot.lane.b32.xlu0 %v460, 96
      %v1270 = vpop.permute.xlu0 %1269
      %1271 = vrot.lane.b32.xlu0 %v461, 96
      %v1272 = vpop.permute.xlu0 %1271
      %1273 = vrot.lane.b32.xlu0 %v463, 96
      %v1274 = vpop.permute.xlu0 %1273
      %1275 = vrot.lane.b32.xlu0 %v464, 96
      %v1276 = vpop.permute.xlu0 %1275
      %1277 = vrot.lane.b32.xlu0 %v466, 96
      %v1278 = vpop.permute.xlu0 %1277
      %1279 = vrot.lane.b32.xlu0 %v467, 96
      %v1280 = vpop.permute.xlu0 %1279
      %1313 = vrot.lane.b32.xlu0 %v530, 112
      %v1314 = vpop.permute.xlu0 %1313
      %1315 = vrot.lane.b32.xlu0 %v532, 112
      %v1316 = vpop.permute.xlu0 %1315
      %1317 = vrot.lane.b32.xlu0 %v535, 112
      %v1318 = vpop.permute.xlu0 %1317
      %1319 = vrot.lane.b32.xlu0 %v537, 112
      %v1320 = vpop.permute.xlu0 %1319
      %1321 = vrot.lane.b32.xlu0 %v540, 112
      %v1322 = vpop.permute.xlu0 %1321
      %1323 = vrot.lane.b32.xlu0 %v542, 112
      %v1324 = vpop.permute.xlu0 %1323
      %1325 = vrot.lane.b32.xlu0 %v545, 112
      %v1326 = vpop.permute.xlu0 %1325
      %1327 = vrot.lane.b32.xlu0 %v547, 112
      %v1328 = vpop.permute.xlu0 %1327
      %1329 = vrot.lane.b32.xlu0 %v550, 112
      %v1330 = vpop.permute.xlu0 %1329
      %1331 = vrot.lane.b32.xlu0 %v552, 112
      %v1332 = vpop.permute.xlu0 %1331
      %1333 = vrot.lane.b32.xlu0 %v555, 112
      %v1334 = vpop.permute.xlu0 %1333
      %1335 = vrot.lane.b32.xlu0 %v557, 112
      %v1336 = vpop.permute.xlu0 %1335
      %1337 = vrot.lane.b32.xlu0 %v560, 112
      %v1338 = vpop.permute.xlu0 %1337
      %1339 = vrot.lane.b32.xlu0 %v562, 112
      %v1340 = vpop.permute.xlu0 %1339
      %1341 = vrot.lane.b32.xlu0 %v565, 112
      %v1342 = vpop.permute.xlu0 %1341
      %1343 = vrot.lane.b32.xlu0 %v567, 112
      %v1344 = vpop.permute.xlu0 %1343
      %1345 = vrot.lane.b32.xlu0 %v570, 112
      %v1346 = vpop.permute.xlu0 %1345
      %1347 = vrot.lane.b32.xlu0 %v572, 112
      %v1348 = vpop.permute.xlu0 %1347
      %1349 = vrot.lane.b32.xlu0 %v575, 112
      %v1350 = vpop.permute.xlu0 %1349
      %1351 = vrot.lane.b32.xlu0 %v577, 112
      %v1352 = vpop.permute.xlu0 %1351
      %1353 = vrot.lane.b32.xlu0 %v580, 112
      %v1354 = vpop.permute.xlu0 %1353
      %1355 = vrot.lane.b32.xlu0 %v582, 112
      %v1356 = vpop.permute.xlu0 %1355
      %1357 = vrot.lane.b32.xlu0 %v585, 112
      %v1358 = vpop.permute.xlu0 %1357
      %1359 = vrot.lane.b32.xlu0 %v587, 112
      %v1360 = vpop.permute.xlu0 %1359
      %1361 = vrot.lane.b32.xlu0 %v590, 112
      %v1362 = vpop.permute.xlu0 %1361
      %1363 = vrot.lane.b32.xlu0 %v592, 112
      %v1364 = vpop.permute.xlu0 %1363
      %1365 = vrot.lane.b32.xlu0 %v595, 112
      %v1366 = vpop.permute.xlu0 %1365
      %1367 = vrot.lane.b32.xlu0 %v597, 112
      %v1368 = vpop.permute.xlu0 %1367
      %1369 = vrot.lane.b32.xlu0 %v684, 112
      %v1370 = vpop.permute.xlu0 %1369
      %1371 = vrot.lane.b32.xlu0 %v686, 112
      %v1372 = vpop.permute.xlu0 %1371
      %1373 = vrot.lane.b32.xlu0 %v697, 112
      %v1374 = vpop.permute.xlu0 %1373
      %1375 = vrot.lane.b32.xlu0 %v699, 112
      %v1376 = vpop.permute.xlu0 %1375
      %vm1409 = vcmask 130048
      %v1410 = vsel %vm1409, %v415, %v738
      %v1411 = vsel %vm1409, %v416, %v740
      %v1412 = vsel %vm1409, %v418, %v742
      %v1413 = vsel %vm1409, %v419, %v744
      %v1414 = vsel %vm1409, %v421, %v746
      %v1415 = vsel %vm1409, %v422, %v748
      %v1416 = vsel %vm1409, %v424, %v750
      %v1417 = vsel %vm1409, %v425, %v752
      %v1418 = vsel %vm1409, %v427, %v754
      %v1419 = vsel %vm1409, %v428, %v756
      %v1420 = vsel %vm1409, %v430, %v758
      %v1421 = vsel %vm1409, %v431, %v760
      %v1422 = vsel %vm1409, %v433, %v762
      %v1423 = vsel %vm1409, %v434, %v764
      %v1424 = vsel %vm1409, %v436, %v766
      %v1425 = vsel %vm1409, %v437, %v768
      %v1426 = vsel %vm1409, %v439, %v770
      %v1427 = vsel %vm1409, %v440, %v772
      %v1428 = vsel %vm1409, %v442, %v774
      %v1429 = vsel %vm1409, %v443, %v776
      %v1430 = vsel %vm1409, %v445, %v778
      %v1431 = vsel %vm1409, %v446, %v780
      %v1432 = vsel %vm1409, %v448, %v782
      %v1433 = vsel %vm1409, %v449, %v784
      %v1434 = vsel %vm1409, %v451, %v786
      %v1435 = vsel %vm1409, %v452, %v788
      %v1436 = vsel %vm1409, %v454, %v790
      %v1437 = vsel %vm1409, %v455, %v792
      %v1438 = vsel %vm1409, %v457, %v794
      %v1439 = vsel %vm1409, %v458, %v796
      %v1440 = vsel %vm1409, %v460, %v798
      %v1441 = vsel %vm1409, %v461, %v800
      %vm1442 = vcmask 261120
      %v1443 = vsel %vm1442, %v1410, %v834
      %v1444 = vsel %vm1442, %v1411, %v836
      %v1445 = vsel %vm1442, %v1412, %v838
      %v1446 = vsel %vm1442, %v1413, %v840
      %v1447 = vsel %vm1442, %v1414, %v842
      %v1448 = vsel %vm1442, %v1415, %v844
      %v1449 = vsel %vm1442, %v1416, %v846
      %v1450 = vsel %vm1442, %v1417, %v848
      %v1451 = vsel %vm1442, %v1418, %v850
      %v1452 = vsel %vm1442, %v1419, %v852
      %v1453 = vsel %vm1442, %v1420, %v854
      %v1454 = vsel %vm1442, %v1421, %v856
      %v1455 = vsel %vm1442, %v1422, %v858
      %v1456 = vsel %vm1442, %v1423, %v860
      %v1457 = vsel %vm1442, %v1424, %v862
      %v1458 = vsel %vm1442, %v1425, %v864
      %v1459 = vsel %vm1442, %v1426, %v866
      %v1460 = vsel %vm1442, %v1427, %v868
      %v1461 = vsel %vm1442, %v1428, %v870
      %v1462 = vsel %vm1442, %v1429, %v872
      %v1463 = vsel %vm1442, %v1430, %v874
      %v1464 = vsel %vm1442, %v1431, %v876
      %v1465 = vsel %vm1442, %v1432, %v878
      %v1466 = vsel %vm1442, %v1433, %v880
      %v1467 = vsel %vm1442, %v1434, %v882
      %v1468 = vsel %vm1442, %v1435, %v884
      %v1469 = vsel %vm1442, %v1436, %v886
      %v1470 = vsel %vm1442, %v1437, %v888
      %v1471 = vsel %vm1442, %v1438, %v890
      %v1472 = vsel %vm1442, %v1439, %v892
      %v1473 = vsel %vm1442, %v1440, %v894
      %v1474 = vsel %vm1442, %v1441, %v896
      %vm1475 = vcmask 392192
      %v1476 = vsel %vm1475, %v1443, %v930
      %v1477 = vsel %vm1475, %v1444, %v932
      %v1478 = vsel %vm1475, %v1445, %v934
      %v1479 = vsel %vm1475, %v1446, %v936
      %v1480 = vsel %vm1475, %v1447, %v938
      %v1481 = vsel %vm1475, %v1448, %v940
      %v1482 = vsel %vm1475, %v1449, %v942
      %v1483 = vsel %vm1475, %v1450, %v944
      %v1484 = vsel %vm1475, %v1451, %v946
      %v1485 = vsel %vm1475, %v1452, %v948
      %v1486 = vsel %vm1475, %v1453, %v950
      %v1487 = vsel %vm1475, %v1454, %v952
      %v1488 = vsel %vm1475, %v1455, %v954
      %v1489 = vsel %vm1475, %v1456, %v956
      %v1490 = vsel %vm1475, %v1457, %v958
      %v1491 = vsel %vm1475, %v1458, %v960
      %v1492 = vsel %vm1475, %v1459, %v962
      %v1493 = vsel %vm1475, %v1460, %v964
      %v1494 = vsel %vm1475, %v1461, %v966
      %v1495 = vsel %vm1475, %v1462, %v968
      %v1496 = vsel %vm1475, %v1463, %v970
      %v1497 = vsel %vm1475, %v1464, %v972
      %v1498 = vsel %vm1475, %v1465, %v974
      %v1499 = vsel %vm1475, %v1466, %v976
      %v1500 = vsel %vm1475, %v1467, %v978
      %v1501 = vsel %vm1475, %v1468, %v980
      %v1502 = vsel %vm1475, %v1469, %v982
      %v1503 = vsel %vm1475, %v1470, %v984
      %v1504 = vsel %vm1475, %v1471, %v986
      %v1505 = vsel %vm1475, %v1472, %v988
      %v1506 = vsel %vm1475, %v1473, %v990
      %v1507 = vsel %vm1475, %v1474, %v992
      %vm1508 = vcmask 523264
      %v1509 = vsel %vm1508, %v1476, %v1026
      %v1510 = vsel %vm1508, %v1477, %v1028
      %v1511 = vsel %vm1508, %v1478, %v1030
      %v1512 = vsel %vm1508, %v1479, %v1032
      %v1513 = vsel %vm1508, %v1480, %v1034
      %v1514 = vsel %vm1508, %v1481, %v1036
      %v1515 = vsel %vm1508, %v1482, %v1038
      %v1516 = vsel %vm1508, %v1483, %v1040
      %v1517 = vsel %vm1508, %v1484, %v1042
      %v1518 = vsel %vm1508, %v1485, %v1044
      %v1519 = vsel %vm1508, %v1486, %v1046
      %v1520 = vsel %vm1508, %v1487, %v1048
      %v1521 = vsel %vm1508, %v1488, %v1050
      %v1522 = vsel %vm1508, %v1489, %v1052
      %v1523 = vsel %vm1508, %v1490, %v1054
      %v1524 = vsel %vm1508, %v1491, %v1056
      %v1525 = vsel %vm1508, %v1492, %v1058
      %v1526 = vsel %vm1508, %v1493, %v1060
      %v1527 = vsel %vm1508, %v1494, %v1062
      %v1528 = vsel %vm1508, %v1495, %v1064
      %v1529 = vsel %vm1508, %v1496, %v1066
      %v1530 = vsel %vm1508, %v1497, %v1068
      %v1531 = vsel %vm1508, %v1498, %v1070
      %v1532 = vsel %vm1508, %v1499, %v1072
      %v1533 = vsel %vm1508, %v1500, %v1074
      %v1534 = vsel %vm1508, %v1501, %v1076
      %v1535 = vsel %vm1508, %v1502, %v1078
      %v1536 = vsel %vm1508, %v1503, %v1080
      %v1537 = vsel %vm1508, %v1504, %v1082
      %v1538 = vsel %vm1508, %v1505, %v1084
      %v1539 = vsel %vm1508, %v1506, %v1086
      %v1540 = vsel %vm1508, %v1507, %v1088
      %vm1541 = vcmask 654336
      %v1542 = vsel %vm1541, %v1509, %v1122
      %v1543 = vsel %vm1541, %v1510, %v1124
      %v1544 = vsel %vm1541, %v1511, %v1126
      %v1545 = vsel %vm1541, %v1512, %v1128
      %v1546 = vsel %vm1541, %v1513, %v1130
      %v1547 = vsel %vm1541, %v1514, %v1132
      %v1548 = vsel %vm1541, %v1515, %v1134
      %v1549 = vsel %vm1541, %v1516, %v1136
      %v1550 = vsel %vm1541, %v1517, %v1138
      %v1551 = vsel %vm1541, %v1518, %v1140
      %v1552 = vsel %vm1541, %v1519, %v1142
      %v1553 = vsel %vm1541, %v1520, %v1144
      %v1554 = vsel %vm1541, %v1521, %v1146
      %v1555 = vsel %vm1541, %v1522, %v1148
      %v1556 = vsel %vm1541, %v1523, %v1150
      %v1557 = vsel %vm1541, %v1524, %v1152
      %v1558 = vsel %vm1541, %v1525, %v1154
      %v1559 = vsel %vm1541, %v1526, %v1156
      %v1560 = vsel %vm1541, %v1527, %v1158
      %v1561 = vsel %vm1541, %v1528, %v1160
      %v1562 = vsel %vm1541, %v1529, %v1162
      %v1563 = vsel %vm1541, %v1530, %v1164
      %v1564 = vsel %vm1541, %v1531, %v1166
      %v1565 = vsel %vm1541, %v1532, %v1168
      %v1566 = vsel %vm1541, %v1533, %v1170
      %v1567 = vsel %vm1541, %v1534, %v1172
      %v1568 = vsel %vm1541, %v1535, %v1174
      %v1569 = vsel %vm1541, %v1536, %v1176
      %v1570 = vsel %vm1541, %v1537, %v1178
      %v1571 = vsel %vm1541, %v1538, %v1180
      %v1572 = vsel %vm1541, %v1539, %v1182
      %v1573 = vsel %vm1541, %v1540, %v1184
      %vm1574 = vcmask 785408
      %v1575 = vsel %vm1574, %v1542, %v1218
      %v1576 = vsel %vm1574, %v1543, %v1220
      %v1577 = vsel %vm1574, %v1544, %v1222
      %v1578 = vsel %vm1574, %v1545, %v1224
      %v1579 = vsel %vm1574, %v1546, %v1226
      %v1580 = vsel %vm1574, %v1547, %v1228
      %v1581 = vsel %vm1574, %v1548, %v1230
      %v1582 = vsel %vm1574, %v1549, %v1232
      %v1583 = vsel %vm1574, %v1550, %v1234
      %v1584 = vsel %vm1574, %v1551, %v1236
      %v1585 = vsel %vm1574, %v1552, %v1238
      %v1586 = vsel %vm1574, %v1553, %v1240
      %v1587 = vsel %vm1574, %v1554, %v1242
      %v1588 = vsel %vm1574, %v1555, %v1244
      %v1589 = vsel %vm1574, %v1556, %v1246
      %v1590 = vsel %vm1574, %v1557, %v1248
      %v1591 = vsel %vm1574, %v1558, %v1250
      %v1592 = vsel %vm1574, %v1559, %v1252
      %v1593 = vsel %vm1574, %v1560, %v1254
      %v1594 = vsel %vm1574, %v1561, %v1256
      %v1595 = vsel %vm1574, %v1562, %v1258
      %v1596 = vsel %vm1574, %v1563, %v1260
      %v1597 = vsel %vm1574, %v1564, %v1262
      %v1598 = vsel %vm1574, %v1565, %v1264
      %v1599 = vsel %vm1574, %v1566, %v1266
      %v1600 = vsel %vm1574, %v1567, %v1268
      %v1601 = vsel %vm1574, %v1568, %v1270
      %v1602 = vsel %vm1574, %v1569, %v1272
      %v1603 = vsel %vm1574, %v1570, %v1274
      %v1604 = vsel %vm1574, %v1571, %v1276
      %v1605 = vsel %vm1574, %v1572, %v1278
      %v1606 = vsel %vm1574, %v1573, %v1280
      %vm1607 = vcmask 916480
      %v1608 = vsel %vm1607, %v1575, %v1314
      %v1609 = vsel %vm1607, %v1576, %v1316
      %v1610 = vsel %vm1607, %v1577, %v1318
      %v1611 = vsel %vm1607, %v1578, %v1320
      %v1612 = vsel %vm1607, %v1579, %v1322
      %v1613 = vsel %vm1607, %v1580, %v1324
      %v1614 = vsel %vm1607, %v1581, %v1326
      %v1615 = vsel %vm1607, %v1582, %v1328
      %v1616 = vsel %vm1607, %v1583, %v1330
      %v1617 = vsel %vm1607, %v1584, %v1332
      %v1618 = vsel %vm1607, %v1585, %v1334
      %v1619 = vsel %vm1607, %v1586, %v1336
      %v1620 = vsel %vm1607, %v1587, %v1338
      %v1621 = vsel %vm1607, %v1588, %v1340
      %v1622 = vsel %vm1607, %v1589, %v1342
      %v1623 = vsel %vm1607, %v1590, %v1344
      %v1624 = vsel %vm1607, %v1591, %v1346
      %v1625 = vsel %vm1607, %v1592, %v1348
      %v1626 = vsel %vm1607, %v1593, %v1350
      %v1627 = vsel %vm1607, %v1594, %v1352
      %v1628 = vsel %vm1607, %v1595, %v1354
      %v1629 = vsel %vm1607, %v1596, %v1356
      %v1630 = vsel %vm1607, %v1597, %v1358
      %v1631 = vsel %vm1607, %v1598, %v1360
      %v1632 = vsel %vm1607, %v1599, %v1362
      %v1633 = vsel %vm1607, %v1600, %v1364
      %v1634 = vsel %vm1607, %v1601, %v1366
      %v1635 = vsel %vm1607, %v1602, %v1368
      %v1636 = vsel %vm1607, %v1603, %v1370
      %v1637 = vsel %vm1607, %v1604, %v1372
      %v1638 = vsel %vm1607, %v1605, %v1374
      %v1639 = vsel %vm1607, %v1606, %v1376
      %v1640 = vpack.c.bf16 %v1609, %v1608
      %v1641 = vpack.c.bf16 %v613, %v611
      %v1642 = vpack.c.bf16 %v1611, %v1610
      %v1643 = vpack.c.bf16 %v618, %v616
      %v1644 = vpack.c.bf16 %v1613, %v1612
      %v1645 = vpack.c.bf16 %v623, %v621
      %v1646 = vpack.c.bf16 %v1615, %v1614
      %v1647 = vpack.c.bf16 %v628, %v626
      %v1648 = vpack.c.bf16 %v1617, %v1616
      %v1649 = vpack.c.bf16 %v633, %v631
      %v1650 = vpack.c.bf16 %v1619, %v1618
      %v1651 = vpack.c.bf16 %v638, %v636
      %v1652 = vpack.c.bf16 %v1621, %v1620
      %v1653 = vpack.c.bf16 %v643, %v641
      %v1654 = vpack.c.bf16 %v1623, %v1622
      %v1655 = vpack.c.bf16 %v648, %v646
      %v1656 = vpack.c.bf16 %v1625, %v1624
      %v1657 = vpack.c.bf16 %v653, %v651
      %v1658 = vpack.c.bf16 %v1627, %v1626
      %v1659 = vpack.c.bf16 %v658, %v656
      %v1660 = vpack.c.bf16 %v1629, %v1628
      %v1661 = vpack.c.bf16 %v663, %v661
      %v1662 = vpack.c.bf16 %v1631, %v1630
      %v1663 = vpack.c.bf16 %v668, %v666
      %v1664 = vpack.c.bf16 %v1633, %v1632
      %v1665 = vpack.c.bf16 %v673, %v671
      %v1666 = vpack.c.bf16 %v1635, %v1634
      %v1667 = vpack.c.bf16 %v678, %v676
      %v1668 = vpack.c.bf16 %v1637, %v1636
      %v1669 = vpack.c.bf16 %v691, %v689
      %v1670 = vpack.c.bf16 %v1639, %v1638
      %v1671 = vpack.c.bf16 %v704, %v702
      %v1672 = vld [vmem:[%s1] sm:$0xf]
      %v1673 = vld [vmem:[%s1 + $0x4] sm:$0xf]
      %v1674 = vld [vmem:[%s1 + $0x8] sm:$0xf]
      %v1675 = vld [vmem:[%s1 + $0xc] sm:$0xf]
      %v1676 = vld [vmem:[%s1 + $0x10] sm:$0xf]
      %v1677 = vld [vmem:[%s1 + $0x14] sm:$0xf]
      %v1678 = vld [vmem:[%s1 + $0x18] sm:$0xf]
      %v1679 = vld [vmem:[%s1 + $0x1c] sm:$0xf]
      %v1680 = vld [vmem:[%s1 + $0x20] sm:$0xf]
      %v1681 = vld [vmem:[%s1 + $0x24] sm:$0xf]
      %v1682 = vld [vmem:[%s1 + $0x28] sm:$0xf]
      %v1683 = vld [vmem:[%s1 + $0x2c] sm:$0xf]
      %v1684 = vld [vmem:[%s1 + $0x30] sm:$0xf]
      %v1685 = vld [vmem:[%s1 + $0x34] sm:$0xf]
      %v1686 = vld [vmem:[%s1 + $0x38] sm:$0xf]
      %v1687 = vld [vmem:[%s1 + $0x3c] sm:$0xf]
      %v1688 = vld [vmem:[%s1 + $0x40] sm:$0xf]
      %v1689 = vld [vmem:[%s1 + $0x44] sm:$0xf]
      %v1690 = vld [vmem:[%s2] sm:$0x1]
      %v1692 = vlaneseq
      %v1693 = vshrl.u32 %v1692, 7
      %v1694 = vsub.s32 0, %v1693
      %v1695 = vrot.slane %v1690, %v1694
      %v1715 = vunpack.c.l.b16 %v1672
      %v1716 = vunpack.c.l.b16 %v1673
      %v1717 = vunpack.c.l.b16 %v1674
      %v1718 = vunpack.c.l.b16 %v1675
      %v1719 = vunpack.c.l.b16 %v1676
      %v1720 = vunpack.c.l.b16 %v1677
      %v1721 = vunpack.c.l.b16 %v1678
      %v1722 = vunpack.c.l.b16 %v1679
      %v1723 = vunpack.c.l.b16 %v1680
      %v1724 = vunpack.c.l.b16 %v1681
      %v1725 = vunpack.c.l.b16 %v1682
      %v1726 = vunpack.c.l.b16 %v1683
      %v1727 = vunpack.c.l.b16 %v1684
      %v1728 = vunpack.c.l.b16 %v1685
      %v1729 = vunpack.c.l.b16 %v1686
      %v1730 = vunpack.c.l.b16 %v1687
      %v1731 = vunpack.c.l.b16 %v1688
      %v1732 = vunpack.c.l.b16 %v1689
      %v1733 = vpack.c.b16 %v1716, %v1715
      %v1734 = vpack.c.b16 %v1718, %v1717
      %v1735 = vpack.c.b16 %v1720, %v1719
      %v1736 = vpack.c.b16 %v1722, %v1721
      %v1737 = vpack.c.b16 %v1724, %v1723
      %v1738 = vpack.c.b16 %v1726, %v1725
      %v1739 = vpack.c.b16 %v1728, %v1727
      %v1740 = vpack.c.b16 %v1730, %v1729
      %v1741 = vpack.c.b16 %v1732, %v1731
      %v1752 = vsel %vm1409, %v1641, 0
      %v1755 = vsel %vm1409, %v1643, 0
      %v1758 = vsel %vm1409, %v1645, 0
      %v1761 = vsel %vm1409, %v1647, 0
      %v1764 = vsel %vm1409, %v1649, 0
      %v1767 = vsel %vm1409, %v1651, 0
      %v1770 = vsel %vm1409, %v1653, 0
      %v1773 = vsel %vm1409, %v1655, 0
      %v1776 = vsel %vm1409, %v1657, 0
      %v1779 = vsel %vm1409, %v1659, 0
      %v1782 = vsel %vm1409, %v1661, 0
      %v1785 = vsel %vm1409, %v1663, 0
      %v1788 = vsel %vm1409, %v1665, 0
      %v1791 = vsel %vm1409, %v1667, 0
      %v1794 = vsel %vm1409, %v1669, 0
      %v1797 = vsel %vm1409, %v1671, 0
      %1799 = vmatprep.subr.bf16.mxu0 0
      %1800 = vmatpush1.bf16.msra.mxu0 %v1733
      %1801 = vmatprep.subr.bf16.mxu0 0
      %1802 = vmatpush1.bf16.msra.mxu0 %v1734
      %1803 = vmatprep.subr.bf16.mxu0 0
      %1804 = vmatpush1.bf16.msra.mxu0 %v1735
      %1805 = vmatprep.subr.bf16.mxu0 0
      %1806 = vmatpush1.bf16.msra.mxu0 %v1736
      %1807 = vmatprep.subr.bf16.mxu0 0
      %1808 = vmatpush1.bf16.msra.mxu0 %v1737
      %1809 = vmatprep.subr.bf16.mxu0 0
      %1810 = vmatpush1.bf16.msra.mxu0 %v1738
      %1811 = vmatprep.subr.bf16.mxu0 0
      %1812 = vmatpush1.bf16.msra.mxu0 %v1739
      %1813 = vmatprep.subr.bf16.mxu0 0
      %1814 = vmatpush1.bf16.msra.mxu0 %v1740
      %1815 = vmatprep.subr.bf16.mxu0 0
      %1816 = vmatpush1.bf16.msra.mxu0 %v1741
      %1817 = vmatprep.subr.bf16.mxu0 0
      %1818 = vmatpush1.bf16.msra.mxu0 0
      %1819 = vmatprep.subr.bf16.mxu0 0
      %1820 = vmatpush1.bf16.msra.mxu0 0
      %1821 = vmatprep.subr.bf16.mxu0 0
      %1822 = vmatpush1.bf16.msra.mxu0 0
      %1823 = vmatprep.subr.bf16.mxu0 0
      %1824 = vmatpush1.bf16.msra.mxu0 0
      %1825 = vmatprep.subr.bf16.mxu0 0
      %1826 = vmatpush1.bf16.msra.mxu0 0
      %1827 = vmatprep.subr.bf16.mxu0 0
      %1828 = vmatpush1.bf16.msra.mxu0 0
      %1829 = vmatprep.subr.bf16.mxu0 0
      %1830 = vmatpush1.bf16.msra.mxu0 0
      %1831 = vmatprep.mubr.bf16.mxu0 %v1752
      %1832 = vmatmul.mubr.bf16.gmra.mrb[0].mxu0 %v1640
      %v1833 = vpop.f32.mrb[0].mxu0
      %v1834 = vadd.f32 %v1695, %v1833
      %v1835 = vpop.f32.mrb[0].mxu0
      %v1836 = vpop.f32.mrb[0].mxu0
      %v1837 = vadd.f32 %v1695, %v1836
      %v1838 = vpop.f32.mrb[0].mxu0
      %1839 = vmatprep.mubr.bf16.mxu0 %v1755
      %1840 = vmatmul.mubr.bf16.gmra.mrb[0].mxu0 %v1642
      %v1841 = vpop.f32.mrb[0].mxu0
      %v1842 = vadd.f32 %v1695, %v1841
      %v1843 = vpop.f32.mrb[0].mxu0
      %v1844 = vpop.f32.mrb[0].mxu0
      %v1845 = vadd.f32 %v1695, %v1844
      %v1846 = vpop.f32.mrb[0].mxu0
      %1847 = vmatprep.mubr.bf16.mxu0 %v1758
      %1848 = vmatmul.mubr.bf16.gmra.mrb[0].mxu0 %v1644
      %v1849 = vpop.f32.mrb[0].mxu0
      %v1850 = vadd.f32 %v1695, %v1849
      %v1851 = vpop.f32.mrb[0].mxu0
      %v1852 = vpop.f32.mrb[0].mxu0
      %v1853 = vadd.f32 %v1695, %v1852
      %v1854 = vpop.f32.mrb[0].mxu0
      %1855 = vmatprep.mubr.bf16.mxu0 %v1761
      %1856 = vmatmul.mubr.bf16.gmra.mrb[0].mxu0 %v1646
      %v1857 = vpop.f32.mrb[0].mxu0
      %v1858 = vadd.f32 %v1695, %v1857
      %v1859 = vpop.f32.mrb[0].mxu0
      %v1860 = vpop.f32.mrb[0].mxu0
      %v1861 = vadd.f32 %v1695, %v1860
      %v1862 = vpop.f32.mrb[0].mxu0
      %1863 = vmatprep.mubr.bf16.mxu0 %v1764
      %1864 = vmatmul.mubr.bf16.gmra.mrb[0].mxu0 %v1648
      %v1865 = vpop.f32.mrb[0].mxu0
      %v1866 = vadd.f32 %v1695, %v1865
      %v1867 = vpop.f32.mrb[0].mxu0
      %v1868 = vpop.f32.mrb[0].mxu0
      %v1869 = vadd.f32 %v1695, %v1868
      %v1870 = vpop.f32.mrb[0].mxu0
      %1871 = vmatprep.mubr.bf16.mxu0 %v1767
      %1872 = vmatmul.mubr.bf16.gmra.mrb[0].mxu0 %v1650
      %v1873 = vpop.f32.mrb[0].mxu0
      %v1874 = vadd.f32 %v1695, %v1873
      %v1875 = vpop.f32.mrb[0].mxu0
      %v1876 = vpop.f32.mrb[0].mxu0
      %v1877 = vadd.f32 %v1695, %v1876
      %v1878 = vpop.f32.mrb[0].mxu0
      %1879 = vmatprep.mubr.bf16.mxu0 %v1770
      %1880 = vmatmul.mubr.bf16.gmra.mrb[0].mxu0 %v1652
      %v1881 = vpop.f32.mrb[0].mxu0
      %v1882 = vadd.f32 %v1695, %v1881
      %v1883 = vpop.f32.mrb[0].mxu0
      %v1884 = vpop.f32.mrb[0].mxu0
      %v1885 = vadd.f32 %v1695, %v1884
      %v1886 = vpop.f32.mrb[0].mxu0
      %1887 = vmatprep.mubr.bf16.mxu0 %v1773
      %1888 = vmatmul.mubr.bf16.gmra.mrb[0].mxu0 %v1654
      %v1889 = vpop.f32.mrb[0].mxu0
      %v1890 = vadd.f32 %v1695, %v1889
      %v1891 = vpop.f32.mrb[0].mxu0
      %v1892 = vpop.f32.mrb[0].mxu0
      %v1893 = vadd.f32 %v1695, %v1892
      %v1894 = vpop.f32.mrb[0].mxu0
      %1895 = vmatprep.mubr.bf16.mxu0 %v1776
      %1896 = vmatmul.mubr.bf16.gmra.mrb[0].mxu0 %v1656
      %v1897 = vpop.f32.mrb[0].mxu0
      %v1898 = vadd.f32 %v1695, %v1897
      %v1899 = vpop.f32.mrb[0].mxu0
      %v1900 = vpop.f32.mrb[0].mxu0
      %v1901 = vadd.f32 %v1695, %v1900
      %v1902 = vpop.f32.mrb[0].mxu0
      %1903 = vmatprep.mubr.bf16.mxu0 %v1779
      %1904 = vmatmul.mubr.bf16.gmra.mrb[0].mxu0 %v1658
      %v1905 = vpop.f32.mrb[0].mxu0
      %v1906 = vadd.f32 %v1695, %v1905
      %v1907 = vpop.f32.mrb[0].mxu0
      %v1908 = vpop.f32.mrb[0].mxu0
      %v1909 = vadd.f32 %v1695, %v1908
      %v1910 = vpop.f32.mrb[0].mxu0
      %1911 = vmatprep.mubr.bf16.mxu0 %v1782
      %1912 = vmatmul.mubr.bf16.gmra.mrb[0].mxu0 %v1660
      %v1913 = vpop.f32.mrb[0].mxu0
      %v1914 = vadd.f32 %v1695, %v1913
      %v1915 = vpop.f32.mrb[0].mxu0
      %v1916 = vpop.f32.mrb[0].mxu0
      %v1917 = vadd.f32 %v1695, %v1916
      %v1918 = vpop.f32.mrb[0].mxu0
      %1919 = vmatprep.mubr.bf16.mxu0 %v1785
      %1920 = vmatmul.mubr.bf16.gmra.mrb[0].mxu0 %v1662
      %v1921 = vpop.f32.mrb[0].mxu0
      %v1922 = vadd.f32 %v1695, %v1921
      %v1923 = vpop.f32.mrb[0].mxu0
      %v1924 = vpop.f32.mrb[0].mxu0
      %v1925 = vadd.f32 %v1695, %v1924
      %v1926 = vpop.f32.mrb[0].mxu0
      %1927 = vmatprep.mubr.bf16.mxu0 %v1788
      %1928 = vmatmul.mubr.bf16.gmra.mrb[0].mxu0 %v1664
      %v1929 = vpop.f32.mrb[0].mxu0
      %v1930 = vadd.f32 %v1695, %v1929
      %v1931 = vpop.f32.mrb[0].mxu0
      %v1932 = vpop.f32.mrb[0].mxu0
      %v1933 = vadd.f32 %v1695, %v1932
      %v1934 = vpop.f32.mrb[0].mxu0
      %1935 = vmatprep.mubr.bf16.mxu0 %v1791
      %1936 = vmatmul.mubr.bf16.gmra.mrb[0].mxu0 %v1666
      %v1937 = vpop.f32.mrb[0].mxu0
      %v1938 = vadd.f32 %v1695, %v1937
      %v1939 = vpop.f32.mrb[0].mxu0
      %v1940 = vpop.f32.mrb[0].mxu0
      %v1941 = vadd.f32 %v1695, %v1940
      %v1942 = vpop.f32.mrb[0].mxu0
      %1943 = vmatprep.mubr.bf16.mxu0 %v1794
      %1944 = vmatmul.mubr.bf16.gmra.mrb[0].mxu0 %v1668
      %v1945 = vpop.f32.mrb[0].mxu0
      %v1946 = vadd.f32 %v1695, %v1945
      %v1947 = vpop.f32.mrb[0].mxu0
      %v1948 = vpop.f32.mrb[0].mxu0
      %v1949 = vadd.f32 %v1695, %v1948
      %v1950 = vpop.f32.mrb[0].mxu0
      %1951 = vmatprep.mubr.bf16.mxu0 %v1797
      %1952 = vmatmul.mubr.bf16.gmra.mrb[0].mxu0 %v1670
      %v1953 = vpop.f32.mrb[0].mxu0
      %v1954 = vadd.f32 %v1695, %v1953
      %v1955 = vpop.f32.mrb[0].mxu0
      %v1956 = vpop.f32.mrb[0].mxu0
      %v1957 = vadd.f32 %v1695, %v1956
      %v1958 = vpop.f32.mrb[0].mxu0
      %1959 = vdwg.mxu0
      %v1960 = vmax.f32 %v1834, 0.0
      %v1961 = vmax.f32 %v1837, 0.0
      %v1962 = vmax.f32 %v1842, 0.0
      %v1963 = vmax.f32 %v1845, 0.0
      %v1964 = vmax.f32 %v1850, 0.0
      %v1965 = vmax.f32 %v1853, 0.0
      %v1966 = vmax.f32 %v1858, 0.0
      %v1967 = vmax.f32 %v1861, 0.0
      %v1968 = vmax.f32 %v1866, 0.0
      %v1969 = vmax.f32 %v1869, 0.0
      %v1970 = vmax.f32 %v1874, 0.0
      %v1971 = vmax.f32 %v1877, 0.0
      %v1972 = vmax.f32 %v1882, 0.0
      %v1973 = vmax.f32 %v1885, 0.0
      %v1974 = vmax.f32 %v1890, 0.0
      %v1975 = vmax.f32 %v1893, 0.0
      %v1976 = vmax.f32 %v1898, 0.0
      %v1977 = vmax.f32 %v1901, 0.0
      %v1978 = vmax.f32 %v1906, 0.0
      %v1979 = vmax.f32 %v1909, 0.0
      %v1980 = vmax.f32 %v1914, 0.0
      %v1981 = vmax.f32 %v1917, 0.0
      %v1982 = vmax.f32 %v1922, 0.0
      %v1983 = vmax.f32 %v1925, 0.0
      %v1984 = vmax.f32 %v1930, 0.0
      %v1985 = vmax.f32 %v1933, 0.0
      %v1986 = vmax.f32 %v1938, 0.0
      %v1987 = vmax.f32 %v1941, 0.0
      %v1988 = vmax.f32 %v1946, 0.0
      %v1989 = vmax.f32 %v1949, 0.0
      %v1990 = vmax.f32 %v1954, 0.0
      %v1991 = vmax.f32 %v1957, 0.0
      %v1992 = vsel %vm1442, %v1960, 0.0
      %v1993 = vsel %vm1442, %v1961, 0.0
      %v1994 = vadd.f32 %v1992, %v1993
      %v1995 = vsel %vm1442, %v1962, 0.0
      %v1996 = vadd.f32 %v1994, %v1995
      %v1997 = vsel %vm1442, %v1963, 0.0
      %v1998 = vadd.f32 %v1996, %v1997
      %v1999 = vsel %vm1442, %v1964, 0.0
      %v2000 = vadd.f32 %v1998, %v1999
      %v2001 = vsel %vm1442, %v1965, 0.0
      %v2002 = vadd.f32 %v2000, %v2001
      %v2003 = vsel %vm1442, %v1966, 0.0
      %v2004 = vadd.f32 %v2002, %v2003
      %v2005 = vsel %vm1442, %v1967, 0.0
      %v2006 = vadd.f32 %v2004, %v2005
      %v2007 = vsel %vm1442, %v1968, 0.0
      %v2008 = vadd.f32 %v2006, %v2007
      %v2009 = vsel %vm1442, %v1969, 0.0
      %v2010 = vadd.f32 %v2008, %v2009
      %v2011 = vsel %vm1442, %v1970, 0.0
      %v2012 = vadd.f32 %v2010, %v2011
      %v2013 = vsel %vm1442, %v1971, 0.0
      %v2014 = vadd.f32 %v2012, %v2013
      %v2015 = vsel %vm1442, %v1972, 0.0
      %v2016 = vadd.f32 %v2014, %v2015
      %v2017 = vsel %vm1442, %v1973, 0.0
      %v2018 = vadd.f32 %v2016, %v2017
      %v2019 = vsel %vm1442, %v1974, 0.0
      %v2020 = vadd.f32 %v2018, %v2019
      %v2021 = vsel %vm1442, %v1975, 0.0
      %v2022 = vadd.f32 %v2020, %v2021
      %v2023 = vsel %vm1442, %v1976, 0.0
      %v2024 = vadd.f32 %v2022, %v2023
      %v2025 = vsel %vm1442, %v1977, 0.0
      %v2026 = vadd.f32 %v2024, %v2025
      %v2027 = vsel %vm1442, %v1978, 0.0
      %v2028 = vadd.f32 %v2026, %v2027
      %v2029 = vsel %vm1442, %v1979, 0.0
      %v2030 = vadd.f32 %v2028, %v2029
      %v2031 = vsel %vm1442, %v1980, 0.0
      %v2032 = vadd.f32 %v2030, %v2031
      %v2033 = vsel %vm1442, %v1981, 0.0
      %v2034 = vadd.f32 %v2032, %v2033
      %v2035 = vsel %vm1442, %v1982, 0.0
      %v2036 = vadd.f32 %v2034, %v2035
      %v2037 = vsel %vm1442, %v1983, 0.0
      %v2038 = vadd.f32 %v2036, %v2037
      %v2039 = vsel %vm1442, %v1984, 0.0
      %v2040 = vadd.f32 %v2038, %v2039
      %v2041 = vsel %vm1442, %v1985, 0.0
      %v2042 = vadd.f32 %v2040, %v2041
      %v2043 = vsel %vm1442, %v1986, 0.0
      %v2044 = vadd.f32 %v2042, %v2043
      %v2045 = vsel %vm1442, %v1987, 0.0
      %v2046 = vadd.f32 %v2044, %v2045
      %v2047 = vsel %vm1442, %v1988, 0.0
      %v2048 = vadd.f32 %v2046, %v2047
      %v2049 = vsel %vm1442, %v1989, 0.0
      %v2050 = vadd.f32 %v2048, %v2049
      %v2051 = vsel %vm1442, %v1990, 0.0
      %v2052 = vadd.f32 %v2050, %v2051
      %v2053 = vsel %vm1442, %v1991, 0.0
      %v2054 = vadd.f32 %v2052, %v2053
      %v2055 = vrot.slane %v2054, 4
      %v2056 = vadd.f32 %v2054, %v2055
      %v2057 = vrot.slane %v2056, 2
      %v2058 = vadd.f32 %v2056, %v2057
      %v2059 = vrot.slane %v2058, 1
      %v2060 = vadd.f32 %v2058, %v2059
      %v2061 = vrcp.pop 256.0
      %v2062 = vmul.f32 %v2060, %v2061
      %v2063 = vld [vmem:[%s3] sm:$0xff]
      %v2064 = vld [vmem:[%s3 + $0x8] sm:$0xff]
      %v2065 = vld [vmem:[%s3 + $0x10] sm:$0xff]
      %v2066 = vld [vmem:[%s3 + $0x18] sm:$0xff]
      %v2067 = vld [vmem:[%s4] sm:$0x1]
      %v2069 = vsel %vm1442, %v2062, 0
      %2071 = vmatprep.subr.mxu0 0.0
      %2072 = vmatpush1.msra.mxu0 %v2063
      %2073 = vmatprep.subr.mxu0 0.0
      %2074 = vmatpush1.msra.mxu0 %v2064
      %2075 = vmatprep.subr.mxu0 0.0
      %2076 = vmatpush1.msra.mxu0 %v2065
      %2077 = vmatprep.subr.mxu0 0.0
      %2078 = vmatpush1.msra.mxu0 %v2066
      %2079 = vmatprep.subr.mxu0 0.0
      %2080 = vmatpush1.msra.mxu0 0.0
      %2081 = vmatprep.subr.mxu0 0.0
      %2082 = vmatpush1.msra.mxu0 0.0
      %2083 = vmatprep.subr.mxu0 0.0
      %2084 = vmatpush1.msra.mxu0 0.0
      %2085 = vmatprep.subr.mxu0 0.0
      %2086 = vmatpush1.msra.mxu0 0.0
      %2087 = vmatprep.subr.mxu0 0.0
      %2088 = vmatpush1.msra.mxu0 0.0
      %2089 = vmatprep.subr.mxu0 0.0
      %2090 = vmatpush1.msra.mxu0 0.0
      %2091 = vmatprep.subr.mxu0 0.0
      %2092 = vmatpush1.msra.mxu0 0.0
      %2093 = vmatprep.subr.mxu0 0.0
      %2094 = vmatpush1.msra.mxu0 0.0
      %2095 = vmatprep.subr.mxu0 0.0
      %2096 = vmatpush1.msra.mxu0 0.0
      %2097 = vmatprep.subr.mxu0 0.0
      %2098 = vmatpush1.msra.mxu0 0.0
      %2099 = vmatprep.subr.mxu0 0.0
      %2100 = vmatpush1.msra.mxu0 0.0
      %2101 = vmatprep.subr.mxu0 0.0
      %2102 = vmatpush1.msra.mxu0 0.0
      %2103 = vmatprep.subr.mxu0 0.0
      %2104 = vmatpush1.msra.mxu0 0.0
      %2105 = vmatprep.subr.mxu0 0.0
      %2106 = vmatpush1.msra.mxu0 0.0
      %2107 = vmatprep.subr.mxu0 0.0
      %2108 = vmatpush1.msra.mxu0 0.0
      %2109 = vmatprep.subr.mxu0 0.0
      %2110 = vmatpush1.msra.mxu0 0.0
      %2111 = vmatprep.subr.mxu0 0.0
      %2112 = vmatpush1.msra.mxu0 0.0
      %2113 = vmatprep.subr.mxu0 0.0
      %2114 = vmatpush1.msra.mxu0 0.0
      %2115 = vmatprep.subr.mxu0 0.0
      %2116 = vmatpush1.msra.mxu0 0.0
      %2117 = vmatprep.subr.mxu0 0.0
      %2118 = vmatpush1.msra.mxu0 0.0
      %2119 = vmatprep.subr.mxu0 0.0
      %2120 = vmatpush1.msra.mxu0 0.0
      %2121 = vmatprep.subr.mxu0 0.0
      %2122 = vmatpush1.msra.mxu0 0.0
      %2123 = vmatprep.subr.mxu0 0.0
      %2124 = vmatpush1.msra.mxu0 0.0
      %2125 = vmatprep.subr.mxu0 0.0
      %2126 = vmatpush1.msra.mxu0 0.0
      %2127 = vmatprep.subr.mxu0 0.0
      %2128 = vmatpush1.msra.mxu0 0.0
      %2129 = vmatprep.subr.mxu0 0.0
      %2130 = vmatpush1.msra.mxu0 0.0
      %2131 = vmatprep.subr.mxu0 0.0
      %2132 = vmatpush1.msra.mxu0 0.0
      %2133 = vmatprep.subr.mxu0 0.0
      %2134 = vmatpush1.msra.mxu0 0.0
      %2135 = vmatprep.mubr.f32.mxu0 0.0
      %2136 = vmatmul.mubr.f32.gmra.mrb[0].mxu0 %v2069
      %v2137 = vpop.f32.mrb[0].mxu0
      %v2138 = vadd.f32 %v2067, %v2137
      %v2139 = vpop.f32.mrb[0].mxu0
      %2140 = vdwg.mxu0
      %v2141 = vmax.f32 %v2138, 0.0
      %v2142 = vld [vmem:[%s5] sm:$0x3]
      %v2143 = vld [vmem:[%s6] sm:$0x1]
      %vm2144 = vcmask 15360
      %v2146 = vsel %vm2144, %v2141, 0
      %vm2148 = vcmask 1041408
      %v2150 = vsel %vm2148, %v2142, 0
      %2152 = vmatprep.subr.mxu0 0.0
      %2153 = vmatpush1.msra.mxu0 %v2150
      %2154 = vmatprep.subr.mxu0 0.0
      %2155 = vmatpush1.msra.mxu0 0.0
      %2156 = vmatprep.subr.mxu0 0.0
      %2157 = vmatpush1.msra.mxu0 0.0
      %2158 = vmatprep.subr.mxu0 0.0
      %2159 = vmatpush1.msra.mxu0 0.0
      %2160 = vmatprep.subr.mxu0 0.0
      %2161 = vmatpush1.msra.mxu0 0.0
      %2162 = vmatprep.subr.mxu0 0.0
      %2163 = vmatpush1.msra.mxu0 0.0
      %2164 = vmatprep.subr.mxu0 0.0
      %2165 = vmatpush1.msra.mxu0 0.0
      %2166 = vmatprep.subr.mxu0 0.0
      %2167 = vmatpush1.msra.mxu0 0.0
      %2168 = vmatprep.subr.mxu0 0.0
      %2169 = vmatpush1.msra.mxu0 0.0
      %2170 = vmatprep.subr.mxu0 0.0
      %2171 = vmatpush1.msra.mxu0 0.0
      %2172 = vmatprep.subr.mxu0 0.0
      %2173 = vmatpush1.msra.mxu0 0.0
      %2174 = vmatprep.subr.mxu0 0.0
      %2175 = vmatpush1.msra.mxu0 0.0
      %2176 = vmatprep.subr.mxu0 0.0
      %2177 = vmatpush1.msra.mxu0 0.0
      %2178 = vmatprep.subr.mxu0 0.0
      %2179 = vmatpush1.msra.mxu0 0.0
      %2180 = vmatprep.subr.mxu0 0.0
      %2181 = vmatpush1.msra.mxu0 0.0
      %2182 = vmatprep.subr.mxu0 0.0
      %2183 = vmatpush1.msra.mxu0 0.0
      %2184 = vmatprep.subr.mxu0 0.0
      %2185 = vmatpush1.msra.mxu0 0.0
      %2186 = vmatprep.subr.mxu0 0.0
      %2187 = vmatpush1.msra.mxu0 0.0
      %2188 = vmatprep.subr.mxu0 0.0
      %2189 = vmatpush1.msra.mxu0 0.0
      %2190 = vmatprep.subr.mxu0 0.0
      %2191 = vmatpush1.msra.mxu0 0.0
      %2192 = vmatprep.subr.mxu0 0.0
      %2193 = vmatpush1.msra.mxu0 0.0
      %2194 = vmatprep.subr.mxu0 0.0
      %2195 = vmatpush1.msra.mxu0 0.0
      %2196 = vmatprep.subr.mxu0 0.0
      %2197 = vmatpush1.msra.mxu0 0.0
      %2198 = vmatprep.subr.mxu0 0.0
      %2199 = vmatpush1.msra.mxu0 0.0
      %2200 = vmatprep.subr.mxu0 0.0
      %2201 = vmatpush1.msra.mxu0 0.0
      %2202 = vmatprep.subr.mxu0 0.0
      %2203 = vmatpush1.msra.mxu0 0.0
      %2204 = vmatprep.subr.mxu0 0.0
      %2205 = vmatpush1.msra.mxu0 0.0
      %2206 = vmatprep.subr.mxu0 0.0
      %2207 = vmatpush1.msra.mxu0 0.0
      %2208 = vmatprep.subr.mxu0 0.0
      %2209 = vmatpush1.msra.mxu0 0.0
      %2210 = vmatprep.subr.mxu0 0.0
      %2211 = vmatpush1.msra.mxu0 0.0
      %2212 = vmatprep.subr.mxu0 0.0
      %2213 = vmatpush1.msra.mxu0 0.0
      %2214 = vmatprep.subr.mxu0 0.0
      %2215 = vmatpush1.msra.mxu0 0.0
      %2216 = vmatprep.mubr.f32.mxu0 0.0
      %2217 = vmatmul.mubr.f32.gmra.mrb[0].mxu0 %v2146
      %v2218 = vpop.f32.mrb[0].mxu0
      %v2219 = vadd.f32 %v2143, %v2218
      %v2220 = vpop.f32.mrb[0].mxu0
      %2221 = vdwg.mxu0
      %v2222 = vxor.u32 %v2219, 2147483648
      %v2223 = vmul.f32 %v2222, 1.442695
      %v2224 = vpow.pop %v2223
      %v2225 = vadd.f32 %v2224, 1.0
      %v2226 = vrcp.pop %v2225
      %v2227 = vmul.f32 1.0, %v2226
      %v2228 = vld [vmem:[%s7] sm:$0x1]
      %v2230 = vlaneseq
      %v2231 = vshrl.u32 %v2230, 7
      %v2232 = vsub.s32 0, %v2231
      %v2233 = vrot.slane %v2228, %v2232
      %v2235 = vmul.f32 %v1960, %v2233
      %v2236 = vmul.f32 %v1961, %v2233
      %v2237 = vmul.f32 %v1962, %v2233
      %v2238 = vmul.f32 %v1963, %v2233
      %v2239 = vmul.f32 %v1964, %v2233
      %v2240 = vmul.f32 %v1965, %v2233
      %v2241 = vmul.f32 %v1966, %v2233
      %v2242 = vmul.f32 %v1967, %v2233
      %v2243 = vmul.f32 %v1968, %v2233
      %v2244 = vmul.f32 %v1969, %v2233
      %v2245 = vmul.f32 %v1970, %v2233
      %v2246 = vmul.f32 %v1971, %v2233
      %v2247 = vmul.f32 %v1972, %v2233
      %v2248 = vmul.f32 %v1973, %v2233
      %v2249 = vmul.f32 %v1974, %v2233
      %v2250 = vmul.f32 %v1975, %v2233
      %v2251 = vmul.f32 %v1976, %v2233
      %v2252 = vmul.f32 %v1977, %v2233
      %v2253 = vmul.f32 %v1978, %v2233
      %v2254 = vmul.f32 %v1979, %v2233
      %v2255 = vmul.f32 %v1980, %v2233
      %v2256 = vmul.f32 %v1981, %v2233
      %v2257 = vmul.f32 %v1982, %v2233
      %v2258 = vmul.f32 %v1983, %v2233
      %v2259 = vmul.f32 %v1984, %v2233
      %v2260 = vmul.f32 %v1985, %v2233
      %v2261 = vmul.f32 %v1986, %v2233
      %v2262 = vmul.f32 %v1987, %v2233
      %v2263 = vmul.f32 %v1988, %v2233
      %v2264 = vmul.f32 %v1989, %v2233
      %v2265 = vmul.f32 %v1990, %v2233
      %v2266 = vmul.f32 %v1991, %v2233
      %v2267 = vsel %vm1442, %v2235, 0.0
      %2268 = vadd.xlane.f32.xlu0 %v2267
      %v2269 = vpop.xlane.xlu0 %2268
      %v2270 = vsel %vm1442, %v2236, 0.0
      %2271 = vadd.xlane.f32.xlu0 %v2270
      %v2272 = vpop.xlane.xlu0 %2271
      %v2273 = vsel %vm1442, %v2237, 0.0
      %2274 = vadd.xlane.f32.xlu0 %v2273
      %v2275 = vpop.xlane.xlu0 %2274
      %v2276 = vsel %vm1442, %v2238, 0.0
      %2277 = vadd.xlane.f32.xlu0 %v2276
      %v2278 = vpop.xlane.xlu0 %2277
      %v2279 = vsel %vm1442, %v2239, 0.0
      %2280 = vadd.xlane.f32.xlu0 %v2279
      %v2281 = vpop.xlane.xlu0 %2280
      %v2282 = vsel %vm1442, %v2240, 0.0
      %2283 = vadd.xlane.f32.xlu0 %v2282
      %v2284 = vpop.xlane.xlu0 %2283
      %v2285 = vsel %vm1442, %v2241, 0.0
      %2286 = vadd.xlane.f32.xlu0 %v2285
      %v2287 = vpop.xlane.xlu0 %2286
      %v2288 = vsel %vm1442, %v2242, 0.0
      %2289 = vadd.xlane.f32.xlu0 %v2288
      %v2290 = vpop.xlane.xlu0 %2289
      %v2291 = vsel %vm1442, %v2243, 0.0
      %2292 = vadd.xlane.f32.xlu0 %v2291
      %v2293 = vpop.xlane.xlu0 %2292
      %v2294 = vsel %vm1442, %v2244, 0.0
      %2295 = vadd.xlane.f32.xlu0 %v2294
      %v2296 = vpop.xlane.xlu0 %2295
      %v2297 = vsel %vm1442, %v2245, 0.0
      %2298 = vadd.xlane.f32.xlu0 %v2297
      %v2299 = vpop.xlane.xlu0 %2298
      %v2300 = vsel %vm1442, %v2246, 0.0
      %2301 = vadd.xlane.f32.xlu0 %v2300
      %v2302 = vpop.xlane.xlu0 %2301
      %v2303 = vsel %vm1442, %v2247, 0.0
      %2304 = vadd.xlane.f32.xlu0 %v2303
      %v2305 = vpop.xlane.xlu0 %2304
      %v2306 = vsel %vm1442, %v2248, 0.0
      %2307 = vadd.xlane.f32.xlu0 %v2306
      %v2308 = vpop.xlane.xlu0 %2307
      %v2309 = vsel %vm1442, %v2249, 0.0
      %2310 = vadd.xlane.f32.xlu0 %v2309
      %v2311 = vpop.xlane.xlu0 %2310
      %v2312 = vsel %vm1442, %v2250, 0.0
      %2313 = vadd.xlane.f32.xlu0 %v2312
      %v2314 = vpop.xlane.xlu0 %2313
      %v2315 = vsel %vm1442, %v2251, 0.0
      %2316 = vadd.xlane.f32.xlu0 %v2315
      %v2317 = vpop.xlane.xlu0 %2316
      %v2318 = vsel %vm1442, %v2252, 0.0
      %2319 = vadd.xlane.f32.xlu0 %v2318
      %v2320 = vpop.xlane.xlu0 %2319
      %v2321 = vsel %vm1442, %v2253, 0.0
      %2322 = vadd.xlane.f32.xlu0 %v2321
      %v2323 = vpop.xlane.xlu0 %2322
      %v2324 = vsel %vm1442, %v2254, 0.0
      %2325 = vadd.xlane.f32.xlu0 %v2324
      %v2326 = vpop.xlane.xlu0 %2325
      %v2327 = vsel %vm1442, %v2255, 0.0
      %2328 = vadd.xlane.f32.xlu0 %v2327
      %v2329 = vpop.xlane.xlu0 %2328
      %v2330 = vsel %vm1442, %v2256, 0.0
      %2331 = vadd.xlane.f32.xlu0 %v2330
      %v2332 = vpop.xlane.xlu0 %2331
      %v2333 = vsel %vm1442, %v2257, 0.0
      %2334 = vadd.xlane.f32.xlu0 %v2333
      %v2335 = vpop.xlane.xlu0 %2334
      %v2336 = vsel %vm1442, %v2258, 0.0
      %2337 = vadd.xlane.f32.xlu0 %v2336
      %v2338 = vpop.xlane.xlu0 %2337
      %v2339 = vsel %vm1442, %v2259, 0.0
      %2340 = vadd.xlane.f32.xlu0 %v2339
      %v2341 = vpop.xlane.xlu0 %2340
      %v2342 = vsel %vm1442, %v2260, 0.0
      %2343 = vadd.xlane.f32.xlu0 %v2342
      %v2344 = vpop.xlane.xlu0 %2343
      %v2345 = vsel %vm1442, %v2261, 0.0
      %2346 = vadd.xlane.f32.xlu0 %v2345
      %v2347 = vpop.xlane.xlu0 %2346
      %v2348 = vsel %vm1442, %v2262, 0.0
      %2349 = vadd.xlane.f32.xlu0 %v2348
      %v2350 = vpop.xlane.xlu0 %2349
      %v2351 = vsel %vm1442, %v2263, 0.0
      %2352 = vadd.xlane.f32.xlu0 %v2351
      %v2353 = vpop.xlane.xlu0 %2352
      %v2354 = vsel %vm1442, %v2264, 0.0
      %2355 = vadd.xlane.f32.xlu0 %v2354
      %v2356 = vpop.xlane.xlu0 %2355
      %v2357 = vsel %vm1442, %v2265, 0.0
      %2358 = vadd.xlane.f32.xlu0 %v2357
      %v2359 = vpop.xlane.xlu0 %2358
      %v2360 = vsel %vm1442, %v2266, 0.0
      %2361 = vadd.xlane.f32.xlu0 %v2360
      %v2362 = vpop.xlane.xlu0 %2361
      %v2363 = vxor.u32 %v2269, 2147483648
      %v2364 = vxor.u32 %v2272, 2147483648
      %v2365 = vxor.u32 %v2275, 2147483648
      %v2366 = vxor.u32 %v2278, 2147483648
      %v2367 = vxor.u32 %v2281, 2147483648
      %v2368 = vxor.u32 %v2284, 2147483648
      %v2369 = vxor.u32 %v2287, 2147483648
      %v2370 = vxor.u32 %v2290, 2147483648
      %v2371 = vxor.u32 %v2293, 2147483648
      %v2372 = vxor.u32 %v2296, 2147483648
      %v2373 = vxor.u32 %v2299, 2147483648
      %v2374 = vxor.u32 %v2302, 2147483648
      %v2375 = vxor.u32 %v2305, 2147483648
      %v2376 = vxor.u32 %v2308, 2147483648
      %v2377 = vxor.u32 %v2311, 2147483648
      %v2378 = vxor.u32 %v2314, 2147483648
      %v2379 = vxor.u32 %v2317, 2147483648
      %v2380 = vxor.u32 %v2320, 2147483648
      %v2381 = vxor.u32 %v2323, 2147483648
      %v2382 = vxor.u32 %v2326, 2147483648
      %v2383 = vxor.u32 %v2329, 2147483648
      %v2384 = vxor.u32 %v2332, 2147483648
      %v2385 = vxor.u32 %v2335, 2147483648
      %v2386 = vxor.u32 %v2338, 2147483648
      %v2387 = vxor.u32 %v2341, 2147483648
      %v2388 = vxor.u32 %v2344, 2147483648
      %v2389 = vxor.u32 %v2347, 2147483648
      %v2390 = vxor.u32 %v2350, 2147483648
      %v2391 = vxor.u32 %v2353, 2147483648
      %v2392 = vxor.u32 %v2356, 2147483648
      %v2393 = vxor.u32 %v2359, 2147483648
      %v2394 = vxor.u32 %v2362, 2147483648
      %v2395 = vmul.f32 %v2363, 1.442695
      %v2396 = vpow.pop %v2395
      %v2397 = vmul.f32 %v2364, 1.442695
      %v2398 = vpow.pop %v2397
      %v2399 = vmul.f32 %v2365, 1.442695
      %v2400 = vpow.pop %v2399
      %v2401 = vmul.f32 %v2366, 1.442695
      %v2402 = vpow.pop %v2401
      %v2403 = vmul.f32 %v2367, 1.442695
      %v2404 = vpow.pop %v2403
      %v2405 = vmul.f32 %v2368, 1.442695
      %v2406 = vpow.pop %v2405
      %v2407 = vmul.f32 %v2369, 1.442695
      %v2408 = vpow.pop %v2407
      %v2409 = vmul.f32 %v2370, 1.442695
      %v2410 = vpow.pop %v2409
      %v2411 = vmul.f32 %v2371, 1.442695
      %v2412 = vpow.pop %v2411
      %v2413 = vmul.f32 %v2372, 1.442695
      %v2414 = vpow.pop %v2413
      %v2415 = vmul.f32 %v2373, 1.442695
      %v2416 = vpow.pop %v2415
      %v2417 = vmul.f32 %v2374, 1.442695
      %v2418 = vpow.pop %v2417
      %v2419 = vmul.f32 %v2375, 1.442695
      %v2420 = vpow.pop %v2419
      %v2421 = vmul.f32 %v2376, 1.442695
      %v2422 = vpow.pop %v2421
      %v2423 = vmul.f32 %v2377, 1.442695
      %v2424 = vpow.pop %v2423
      %v2425 = vmul.f32 %v2378, 1.442695
      %v2426 = vpow.pop %v2425
      %v2427 = vmul.f32 %v2379, 1.442695
      %v2428 = vpow.pop %v2427
      %v2429 = vmul.f32 %v2380, 1.442695
      %v2430 = vpow.pop %v2429
      %v2431 = vmul.f32 %v2381, 1.442695
      %v2432 = vpow.pop %v2431
      %v2433 = vmul.f32 %v2382, 1.442695
      %v2434 = vpow.pop %v2433
      %v2435 = vmul.f32 %v2383, 1.442695
      %v2436 = vpow.pop %v2435
      %v2437 = vmul.f32 %v2384, 1.442695
      %v2438 = vpow.pop %v2437
      %v2439 = vmul.f32 %v2385, 1.442695
      %v2440 = vpow.pop %v2439
      %v2441 = vmul.f32 %v2386, 1.442695
      %v2442 = vpow.pop %v2441
      %v2443 = vmul.f32 %v2387, 1.442695
      %v2444 = vpow.pop %v2443
      %v2445 = vmul.f32 %v2388, 1.442695
      %v2446 = vpow.pop %v2445
      %v2447 = vmul.f32 %v2389, 1.442695
      %v2448 = vpow.pop %v2447
      %v2449 = vmul.f32 %v2390, 1.442695
      %v2450 = vpow.pop %v2449
      %v2451 = vmul.f32 %v2391, 1.442695
      %v2452 = vpow.pop %v2451
      %v2453 = vmul.f32 %v2392, 1.442695
      %v2454 = vpow.pop %v2453
      %v2455 = vmul.f32 %v2393, 1.442695
      %v2456 = vpow.pop %v2455
      %v2457 = vmul.f32 %v2394, 1.442695
      %v2458 = vpow.pop %v2457
      %v2459 = vadd.f32 %v2396, 1.0
      %v2460 = vadd.f32 %v2398, 1.0
      %v2461 = vadd.f32 %v2400, 1.0
      %v2462 = vadd.f32 %v2402, 1.0
      %v2463 = vadd.f32 %v2404, 1.0
      %v2464 = vadd.f32 %v2406, 1.0
      %v2465 = vadd.f32 %v2408, 1.0
      %v2466 = vadd.f32 %v2410, 1.0
      %v2467 = vadd.f32 %v2412, 1.0
      %v2468 = vadd.f32 %v2414, 1.0
      %v2469 = vadd.f32 %v2416, 1.0
      %v2470 = vadd.f32 %v2418, 1.0
      %v2471 = vadd.f32 %v2420, 1.0
      %v2472 = vadd.f32 %v2422, 1.0
      %v2473 = vadd.f32 %v2424, 1.0
      %v2474 = vadd.f32 %v2426, 1.0
      %v2475 = vadd.f32 %v2428, 1.0
      %v2476 = vadd.f32 %v2430, 1.0
      %v2477 = vadd.f32 %v2432, 1.0
      %v2478 = vadd.f32 %v2434, 1.0
      %v2479 = vadd.f32 %v2436, 1.0
      %v2480 = vadd.f32 %v2438, 1.0
      %v2481 = vadd.f32 %v2440, 1.0
      %v2482 = vadd.f32 %v2442, 1.0
      %v2483 = vadd.f32 %v2444, 1.0
      %v2484 = vadd.f32 %v2446, 1.0
      %v2485 = vadd.f32 %v2448, 1.0
      %v2486 = vadd.f32 %v2450, 1.0
      %v2487 = vadd.f32 %v2452, 1.0
      %v2488 = vadd.f32 %v2454, 1.0
      %v2489 = vadd.f32 %v2456, 1.0
      %v2490 = vadd.f32 %v2458, 1.0
      %v2491 = vrcp.pop %v2459
      %v2492 = vmul.f32 1.0, %v2491
      %v2493 = vrcp.pop %v2460
      %v2494 = vmul.f32 1.0, %v2493
      %v2495 = vrcp.pop %v2461
      %v2496 = vmul.f32 1.0, %v2495
      %v2497 = vrcp.pop %v2462
      %v2498 = vmul.f32 1.0, %v2497
      %v2499 = vrcp.pop %v2463
      %v2500 = vmul.f32 1.0, %v2499
      %v2501 = vrcp.pop %v2464
      %v2502 = vmul.f32 1.0, %v2501
      %v2503 = vrcp.pop %v2465
      %v2504 = vmul.f32 1.0, %v2503
      %v2505 = vrcp.pop %v2466
      %v2506 = vmul.f32 1.0, %v2505
      %v2507 = vrcp.pop %v2467
      %v2508 = vmul.f32 1.0, %v2507
      %v2509 = vrcp.pop %v2468
      %v2510 = vmul.f32 1.0, %v2509
      %v2511 = vrcp.pop %v2469
      %v2512 = vmul.f32 1.0, %v2511
      %v2513 = vrcp.pop %v2470
      %v2514 = vmul.f32 1.0, %v2513
      %v2515 = vrcp.pop %v2471
      %v2516 = vmul.f32 1.0, %v2515
      %v2517 = vrcp.pop %v2472
      %v2518 = vmul.f32 1.0, %v2517
      %v2519 = vrcp.pop %v2473
      %v2520 = vmul.f32 1.0, %v2519
      %v2521 = vrcp.pop %v2474
      %v2522 = vmul.f32 1.0, %v2521
      %v2523 = vrcp.pop %v2475
      %v2524 = vmul.f32 1.0, %v2523
      %v2525 = vrcp.pop %v2476
      %v2526 = vmul.f32 1.0, %v2525
      %v2527 = vrcp.pop %v2477
      %v2528 = vmul.f32 1.0, %v2527
      %v2529 = vrcp.pop %v2478
      %v2530 = vmul.f32 1.0, %v2529
      %v2531 = vrcp.pop %v2479
      %v2532 = vmul.f32 1.0, %v2531
      %v2533 = vrcp.pop %v2480
      %v2534 = vmul.f32 1.0, %v2533
      %v2535 = vrcp.pop %v2481
      %v2536 = vmul.f32 1.0, %v2535
      %v2537 = vrcp.pop %v2482
      %v2538 = vmul.f32 1.0, %v2537
      %v2539 = vrcp.pop %v2483
      %v2540 = vmul.f32 1.0, %v2539
      %v2541 = vrcp.pop %v2484
      %v2542 = vmul.f32 1.0, %v2541
      %v2543 = vrcp.pop %v2485
      %v2544 = vmul.f32 1.0, %v2543
      %v2545 = vrcp.pop %v2486
      %v2546 = vmul.f32 1.0, %v2545
      %v2547 = vrcp.pop %v2487
      %v2548 = vmul.f32 1.0, %v2547
      %v2549 = vrcp.pop %v2488
      %v2550 = vmul.f32 1.0, %v2549
      %v2551 = vrcp.pop %v2489
      %v2552 = vmul.f32 1.0, %v2551
      %v2553 = vrcp.pop %v2490
      %v2554 = vmul.f32 1.0, %v2553
      %v2555 = vlaneseq
      %v2556 = vshrl.u32 %v2555, 7
      %v2557 = vsub.s32 0, %v2556
      %v2558 = vrot.slane %v2227, %v2557
      %v2559 = vadd.f32 %v2558, %v2492
      %v2560 = vadd.f32 %v2558, %v2494
      %v2561 = vadd.f32 %v2558, %v2496
      %v2562 = vadd.f32 %v2558, %v2498
      %v2563 = vadd.f32 %v2558, %v2500
      %v2564 = vadd.f32 %v2558, %v2502
      %v2565 = vadd.f32 %v2558, %v2504
      %v2566 = vadd.f32 %v2558, %v2506
      %v2567 = vadd.f32 %v2558, %v2508
      %v2568 = vadd.f32 %v2558, %v2510
      %v2569 = vadd.f32 %v2558, %v2512
      %v2570 = vadd.f32 %v2558, %v2514
      %v2571 = vadd.f32 %v2558, %v2516
      %v2572 = vadd.f32 %v2558, %v2518
      %v2573 = vadd.f32 %v2558, %v2520
      %v2574 = vadd.f32 %v2558, %v2522
      %v2575 = vadd.f32 %v2558, %v2524
      %v2576 = vadd.f32 %v2558, %v2526
      %v2577 = vadd.f32 %v2558, %v2528
      %v2578 = vadd.f32 %v2558, %v2530
      %v2579 = vadd.f32 %v2558, %v2532
      %v2580 = vadd.f32 %v2558, %v2534
      %v2581 = vadd.f32 %v2558, %v2536
      %v2582 = vadd.f32 %v2558, %v2538
      %v2583 = vadd.f32 %v2558, %v2540
      %v2584 = vadd.f32 %v2558, %v2542
      %v2585 = vadd.f32 %v2558, %v2544
      %v2586 = vadd.f32 %v2558, %v2546
      %v2587 = vadd.f32 %v2558, %v2548
      %v2588 = vadd.f32 %v2558, %v2550
      %v2589 = vadd.f32 %v2558, %v2552
      %v2590 = vadd.f32 %v2558, %v2554
      %v2591 = vmul.f32 %v1960, %v2559
      %v2592 = vmul.f32 %v1961, %v2560
      %v2593 = vmul.f32 %v1962, %v2561
      %v2594 = vmul.f32 %v1963, %v2562
      %v2595 = vmul.f32 %v1964, %v2563
      %v2596 = vmul.f32 %v1965, %v2564
      %v2597 = vmul.f32 %v1966, %v2565
      %v2598 = vmul.f32 %v1967, %v2566
      %v2599 = vmul.f32 %v1968, %v2567
      %v2600 = vmul.f32 %v1969, %v2568
      %v2601 = vmul.f32 %v1970, %v2569
      %v2602 = vmul.f32 %v1971, %v2570
      %v2603 = vmul.f32 %v1972, %v2571
      %v2604 = vmul.f32 %v1973, %v2572
      %v2605 = vmul.f32 %v1974, %v2573
      %v2606 = vmul.f32 %v1975, %v2574
      %v2607 = vmul.f32 %v1976, %v2575
      %v2608 = vmul.f32 %v1977, %v2576
      %v2609 = vmul.f32 %v1978, %v2577
      %v2610 = vmul.f32 %v1979, %v2578
      %v2611 = vmul.f32 %v1980, %v2579
      %v2612 = vmul.f32 %v1981, %v2580
      %v2613 = vmul.f32 %v1982, %v2581
      %v2614 = vmul.f32 %v1983, %v2582
      %v2615 = vmul.f32 %v1984, %v2583
      %v2616 = vmul.f32 %v1985, %v2584
      %v2617 = vmul.f32 %v1986, %v2585
      %v2618 = vmul.f32 %v1987, %v2586
      %v2619 = vmul.f32 %v1988, %v2587
      %v2620 = vmul.f32 %v1989, %v2588
      %v2621 = vmul.f32 %v1990, %v2589
      %v2622 = vmul.f32 %v1991, %v2590
      %2623 = vst.msk [vmem:[#allocation2] sm:$0xff] %vm1442, 0.0
      %2624 = vst.msk [vmem:[#allocation2 + $0x8] sm:$0xff] %vm1442, 0.0
      %vm2625 = vcmask 254976
      %2626 = vst.msk [vmem:[#allocation2 + $0x10] sm:$0x3] %vm2625, 0.0
      %s2627 = scalar_lea.vmem [#allocation2], 408
      %2628 = vst.msk [vmem:[%s2627] sm:$0xff] %vm1442, 0.0
      %2629 = vst.msk [vmem:[%s2627 + $0x8] sm:$0xff] %vm1442, 0.0
      %2630 = vst.msk [vmem:[%s2627 + $0x10] sm:$0x3] %vm2625, 0.0
      %vm2631 = vcmask 253952
      %2632 = vst.msk [vmem:[#allocation2] sm:$0x1] %vm2631, 0.0
      %2633 = vst.msk [vmem:[#allocation2 + $0x18] sm:$0x1] %vm2631, 0.0
      %2634 = vst.msk [vmem:[#allocation2 + $0x30] sm:$0x1] %vm2631, 0.0
      %2635 = vst.msk [vmem:[#allocation2 + $0x48] sm:$0x1] %vm2631, 0.0
      %2636 = vst.msk [vmem:[#allocation2 + $0x60] sm:$0x1] %vm2631, 0.0
      %2637 = vst.msk [vmem:[#allocation2 + $0x78] sm:$0x1] %vm2631, 0.0
      %2638 = vst.msk [vmem:[#allocation2 + $0x90] sm:$0x1] %vm2631, 0.0
      %2639 = vst.msk [vmem:[#allocation2 + $0xa8] sm:$0x1] %vm2631, 0.0
      %2640 = vst.msk [vmem:[#allocation2 + $0xc0] sm:$0x1] %vm2631, 0.0
      %2641 = vst.msk [vmem:[#allocation2 + $0xd8] sm:$0x1] %vm2631, 0.0
      %2642 = vst.msk [vmem:[#allocation2 + $0xf0] sm:$0x1] %vm2631, 0.0
      %2643 = vst.msk [vmem:[#allocation2 + $0x108] sm:$0x1] %vm2631, 0.0
      %2644 = vst.msk [vmem:[#allocation2 + $0x120] sm:$0x1] %vm2631, 0.0
      %2645 = vst.msk [vmem:[#allocation2 + $0x138] sm:$0x1] %vm2631, 0.0
      %2646 = vst.msk [vmem:[#allocation2 + $0x150] sm:$0x1] %vm2631, 0.0
      %2647 = vst.msk [vmem:[#allocation2 + $0x168] sm:$0x1] %vm2631, 0.0
      %2648 = vst.msk [vmem:[#allocation2 + $0x180] sm:$0x1] %vm2631, 0.0
      %2649 = vst.msk [vmem:[#allocation2 + $0x198] sm:$0x1] %vm2631, 0.0
      %2650 = vst.msk [vmem:[#allocation2 + $0x11] sm:$0x1] %vm2631, 0.0
      %2651 = vst.msk [vmem:[#allocation2 + $0x29] sm:$0x1] %vm2631, 0.0
      %2652 = vst.msk [vmem:[#allocation2 + $0x41] sm:$0x1] %vm2631, 0.0
      %2653 = vst.msk [vmem:[#allocation2 + $0x59] sm:$0x1] %vm2631, 0.0
      %2654 = vst.msk [vmem:[#allocation2 + $0x71] sm:$0x1] %vm2631, 0.0
      %2655 = vst.msk [vmem:[#allocation2 + $0x89] sm:$0x1] %vm2631, 0.0
      %2656 = vst.msk [vmem:[#allocation2 + $0xa1] sm:$0x1] %vm2631, 0.0
      %2657 = vst.msk [vmem:[#allocation2 + $0xb9] sm:$0x1] %vm2631, 0.0
      %2658 = vst.msk [vmem:[#allocation2 + $0xd1] sm:$0x1] %vm2631, 0.0
      %2659 = vst.msk [vmem:[#allocation2 + $0xe9] sm:$0x1] %vm2631, 0.0
      %2660 = vst.msk [vmem:[#allocation2 + $0x101] sm:$0x1] %vm2631, 0.0
      %2661 = vst.msk [vmem:[#allocation2 + $0x119] sm:$0x1] %vm2631, 0.0
      %2662 = vst.msk [vmem:[#allocation2 + $0x131] sm:$0x1] %vm2631, 0.0
      %2663 = vst.msk [vmem:[#allocation2 + $0x149] sm:$0x1] %vm2631, 0.0
      %2664 = vst.msk [vmem:[#allocation2 + $0x161] sm:$0x1] %vm2631, 0.0
      %2665 = vst.msk [vmem:[#allocation2 + $0x179] sm:$0x1] %vm2631, 0.0
      %2666 = vst.msk [vmem:[#allocation2 + $0x191] sm:$0x1] %vm2631, 0.0
      %2667 = vst.msk [vmem:[#allocation2 + $0x1a9] sm:$0x1] %vm2631, 0.0
      %s2668 = scalar_lea.vmem [#allocation2], 24
      %2669 = vst.msk [vmem:[%s2668 + $0x1] sm:$0xff] %vm1442, %v2591
      %2670 = vst.msk [vmem:[%s2668 + $0x9] sm:$0xff] %vm1442, %v2592
      %2671 = vst.msk [vmem:[%s2668 + $0x19] sm:$0xff] %vm1442, %v2593
      %2672 = vst.msk [vmem:[%s2668 + $0x21] sm:$0xff] %vm1442, %v2594
      %2673 = vst.msk [vmem:[%s2668 + $0x31] sm:$0xff] %vm1442, %v2595
      %2674 = vst.msk [vmem:[%s2668 + $0x39] sm:$0xff] %vm1442, %v2596
      %2675 = vst.msk [vmem:[%s2668 + $0x49] sm:$0xff] %vm1442, %v2597
      %2676 = vst.msk [vmem:[%s2668 + $0x51] sm:$0xff] %vm1442, %v2598
      %2677 = vst.msk [vmem:[%s2668 + $0x61] sm:$0xff] %vm1442, %v2599
      %2678 = vst.msk [vmem:[%s2668 + $0x69] sm:$0xff] %vm1442, %v2600
      %2679 = vst.msk [vmem:[%s2668 + $0x79] sm:$0xff] %vm1442, %v2601
      %2680 = vst.msk [vmem:[%s2668 + $0x81] sm:$0xff] %vm1442, %v2602
      %2681 = vst.msk [vmem:[%s2668 + $0x91] sm:$0xff] %vm1442, %v2603
      %2682 = vst.msk [vmem:[%s2668 + $0x99] sm:$0xff] %vm1442, %v2604
      %2683 = vst.msk [vmem:[%s2668 + $0xa9] sm:$0xff] %vm1442, %v2605
      %2684 = vst.msk [vmem:[%s2668 + $0xb1] sm:$0xff] %vm1442, %v2606
      %2685 = vst.msk [vmem:[%s2668 + $0xc1] sm:$0xff] %vm1442, %v2607
      %2686 = vst.msk [vmem:[%s2668 + $0xc9] sm:$0xff] %vm1442, %v2608
      %2687 = vst.msk [vmem:[%s2668 + $0xd9] sm:$0xff] %vm1442, %v2609
      %2688 = vst.msk [vmem:[%s2668 + $0xe1] sm:$0xff] %vm1442, %v2610
      %2689 = vst.msk [vmem:[%s2668 + $0xf1] sm:$0xff] %vm1442, %v2611
      %2690 = vst.msk [vmem:[%s2668 + $0xf9] sm:$0xff] %vm1442, %v2612
      %2691 = vst.msk [vmem:[%s2668 + $0x109] sm:$0xff] %vm1442, %v2613
      %2692 = vst.msk [vmem:[%s2668 + $0x111] sm:$0xff] %vm1442, %v2614
      %2693 = vst.msk [vmem:[%s2668 + $0x121] sm:$0xff] %vm1442, %v2615
      %2694 = vst.msk [vmem:[%s2668 + $0x129] sm:$0xff] %vm1442, %v2616
      %2695 = vst.msk [vmem:[%s2668 + $0x139] sm:$0xff] %vm1442, %v2617
      %2696 = vst.msk [vmem:[%s2668 + $0x141] sm:$0xff] %vm1442, %v2618
      %2697 = vst.msk [vmem:[%s2668 + $0x151] sm:$0xff] %vm1442, %v2619
      %2698 = vst.msk [vmem:[%s2668 + $0x159] sm:$0xff] %vm1442, %v2620
      %2699 = vst.msk [vmem:[%s2668 + $0x169] sm:$0xff] %vm1442, %v2621
      %2700 = vst.msk [vmem:[%s2668 + $0x171] sm:$0xff] %vm1442, %v2622
      %v2701 = vld [vmem:[#allocation2] sm:$0xff]
      %v2702 = vld [vmem:[#allocation2 + $0x8] sm:$0xff]
      %v2703 = vld [vmem:[#allocation2 + $0x10] sm:$0x3]
      %v2704 = vld [vmem:[#allocation2 + $0x18] sm:$0xff]
      %v2705 = vld [vmem:[#allocation2 + $0x20] sm:$0xff]
      %v2706 = vld [vmem:[#allocation2 + $0x28] sm:$0x3]
      %v2707 = vld [vmem:[#allocation2 + $0x30] sm:$0xff]
      %v2708 = vld [vmem:[#allocation2 + $0x38] sm:$0xff]
      %v2709 = vld [vmem:[#allocation2 + $0x40] sm:$0x3]
      %v2710 = vld [vmem:[#allocation2 + $0x48] sm:$0xff]
      %v2711 = vld [vmem:[#allocation2 + $0x50] sm:$0xff]
      %v2712 = vld [vmem:[#allocation2 + $0x58] sm:$0x3]
      %v2713 = vld [vmem:[#allocation2 + $0x60] sm:$0xff]
      %v2714 = vld [vmem:[#allocation2 + $0x68] sm:$0xff]
      %v2715 = vld [vmem:[#allocation2 + $0x70] sm:$0x3]
      %v2716 = vld [vmem:[#allocation2 + $0x78] sm:$0xff]
      %v2717 = vld [vmem:[#allocation2 + $0x80] sm:$0xff]
      %v2718 = vld [vmem:[#allocation2 + $0x88] sm:$0x3]
      %v2719 = vld [vmem:[#allocation2 + $0x90] sm:$0xff]
      %v2720 = vld [vmem:[#allocation2 + $0x98] sm:$0xff]
      %v2721 = vld [vmem:[#allocation2 + $0xa0] sm:$0x3]
      %v2722 = vld [vmem:[#allocation2 + $0xa8] sm:$0xff]
      %v2723 = vld [vmem:[#allocation2 + $0xb0] sm:$0xff]
      %v2724 = vld [vmem:[#allocation2 + $0xb8] sm:$0x3]
      %v2725 = vld [vmem:[#allocation2 + $0xc0] sm:$0xff]
      %v2726 = vld [vmem:[#allocation2 + $0xc8] sm:$0xff]
      %v2727 = vld [vmem:[#allocation2 + $0xd0] sm:$0x3]
      %v2728 = vld [vmem:[#allocation2 + $0xd8] sm:$0xff]
      %v2729 = vld [vmem:[#allocation2 + $0xe0] sm:$0xff]
      %v2730 = vld [vmem:[#allocation2 + $0xe8] sm:$0x3]
      %v2731 = vld [vmem:[#allocation2 + $0xf0] sm:$0xff]
      %v2732 = vld [vmem:[#allocation2 + $0xf8] sm:$0xff]
      %v2733 = vld [vmem:[#allocation2 + $0x100] sm:$0x3]
      %v2734 = vld [vmem:[#allocation2 + $0x108] sm:$0xff]
      %v2735 = vld [vmem:[#allocation2 + $0x110] sm:$0xff]
      %v2736 = vld [vmem:[#allocation2 + $0x118] sm:$0x3]
      %v2737 = vld [vmem:[#allocation2 + $0x120] sm:$0xff]
      %v2738 = vld [vmem:[#allocation2 + $0x128] sm:$0xff]
      %v2739 = vld [vmem:[#allocation2 + $0x130] sm:$0x3]
      %v2740 = vld [vmem:[#allocation2 + $0x138] sm:$0xff]
      %v2741 = vld [vmem:[#allocation2 + $0x140] sm:$0xff]
      %v2742 = vld [vmem:[#allocation2 + $0x148] sm:$0x3]
      %v2743 = vld [vmem:[#allocation2 + $0x150] sm:$0xff]
      %v2744 = vld [vmem:[#allocation2 + $0x158] sm:$0xff]
      %v2745 = vld [vmem:[#allocation2 + $0x160] sm:$0x3]
      %v2746 = vld [vmem:[#allocation2 + $0x168] sm:$0xff]
      %v2747 = vld [vmem:[#allocation2 + $0x170] sm:$0xff]
      %v2748 = vld [vmem:[#allocation2 + $0x178] sm:$0x3]
      %v2749 = vld [vmem:[#allocation2 + $0x180] sm:$0xff]
      %v2750 = vld [vmem:[#allocation2 + $0x188] sm:$0xff]
      %v2751 = vld [vmem:[#allocation2 + $0x190] sm:$0x3]
      %v2752 = vld [vmem:[#allocation2 + $0x198] sm:$0xff]
      %v2753 = vld [vmem:[#allocation2 + $0x1a0] sm:$0xff]
      %v2754 = vld [vmem:[#allocation2 + $0x1a8] sm:$0x3]
      %v2803 = vrot.slane %v2701, 1
      %v2804 = vrot.slane %v2702, 1
      %v2805 = vsel %vm517, %v2803, %v2804
      %v2806 = vrot.slane %v2703, 1
      %v2807 = vsel %vm517, %v2804, %v2806
      %v2808 = vrot.slane %v2704, 1
      %v2809 = vrot.slane %v2705, 1
      %v2810 = vsel %vm517, %v2808, %v2809
      %v2811 = vrot.slane %v2706, 1
      %v2812 = vsel %vm517, %v2809, %v2811
      %v2813 = vrot.slane %v2707, 1
      %v2814 = vrot.slane %v2708, 1
      %v2815 = vsel %vm517, %v2813, %v2814
      %v2816 = vrot.slane %v2709, 1
      %v2817 = vsel %vm517, %v2814, %v2816
      %v2818 = vrot.slane %v2710, 1
      %v2819 = vrot.slane %v2711, 1
      %v2820 = vsel %vm517, %v2818, %v2819
      %v2821 = vrot.slane %v2712, 1
      %v2822 = vsel %vm517, %v2819, %v2821
      %v2823 = vrot.slane %v2713, 1
      %v2824 = vrot.slane %v2714, 1
      %v2825 = vsel %vm517, %v2823, %v2824
      %v2826 = vrot.slane %v2715, 1
      %v2827 = vsel %vm517, %v2824, %v2826
      %v2828 = vrot.slane %v2716, 1
      %v2829 = vrot.slane %v2717, 1
      %v2830 = vsel %vm517, %v2828, %v2829
      %v2831 = vrot.slane %v2718, 1
      %v2832 = vsel %vm517, %v2829, %v2831
      %v2833 = vrot.slane %v2719, 1
      %v2834 = vrot.slane %v2720, 1
      %v2835 = vsel %vm517, %v2833, %v2834
      %v2836 = vrot.slane %v2721, 1
      %v2837 = vsel %vm517, %v2834, %v2836
      %v2838 = vrot.slane %v2722, 1
      %v2839 = vrot.slane %v2723, 1
      %v2840 = vsel %vm517, %v2838, %v2839
      %v2841 = vrot.slane %v2724, 1
      %v2842 = vsel %vm517, %v2839, %v2841
      %v2843 = vrot.slane %v2725, 1
      %v2844 = vrot.slane %v2726, 1
      %v2845 = vsel %vm517, %v2843, %v2844
      %v2846 = vrot.slane %v2727, 1
      %v2847 = vsel %vm517, %v2844, %v2846
      %v2848 = vrot.slane %v2728, 1
      %v2849 = vrot.slane %v2729, 1
      %v2850 = vsel %vm517, %v2848, %v2849
      %v2851 = vrot.slane %v2730, 1
      %v2852 = vsel %vm517, %v2849, %v2851
      %v2853 = vrot.slane %v2731, 1
      %v2854 = vrot.slane %v2732, 1
      %v2855 = vsel %vm517, %v2853, %v2854
      %v2856 = vrot.slane %v2733, 1
      %v2857 = vsel %vm517, %v2854, %v2856
      %v2858 = vrot.slane %v2734, 1
      %v2859 = vrot.slane %v2735, 1
      %v2860 = vsel %vm517, %v2858, %v2859
      %v2861 = vrot.slane %v2736, 1
      %v2862 = vsel %vm517, %v2859, %v2861
      %v2863 = vrot.slane %v2737, 1
      %v2864 = vrot.slane %v2738, 1
      %v2865 = vsel %vm517, %v2863, %v2864
      %v2866 = vrot.slane %v2739, 1
      %v2867 = vsel %vm517, %v2864, %v2866
      %v2868 = vrot.slane %v2740, 1
      %v2869 = vrot.slane %v2741, 1
      %v2870 = vsel %vm517, %v2868, %v2869
      %v2871 = vrot.slane %v2742, 1
      %v2872 = vsel %vm517, %v2869, %v2871
      %v2873 = vrot.slane %v2743, 1
      %v2874 = vrot.slane %v2744, 1
      %v2875 = vsel %vm517, %v2873, %v2874
      %v2876 = vrot.slane %v2745, 1
      %v2877 = vsel %vm517, %v2874, %v2876
      %v2878 = vrot.slane %v2746, 1
      %v2879 = vrot.slane %v2747, 1
      %v2880 = vsel %vm517, %v2878, %v2879
      %v2881 = vrot.slane %v2748, 1
      %v2882 = vsel %vm517, %v2879, %v2881
      %v2883 = vrot.slane %v2701, 2
      %v2884 = vrot.slane %v2702, 2
      %v2885 = vsel %vm598, %v2883, %v2884
      %v2886 = vrot.slane %v2703, 2
      %v2887 = vsel %vm598, %v2884, %v2886
      %v2888 = vrot.slane %v2704, 2
      %v2889 = vrot.slane %v2705, 2
      %v2890 = vsel %vm598, %v2888, %v2889
      %v2891 = vrot.slane %v2706, 2
      %v2892 = vsel %vm598, %v2889, %v2891
      %v2893 = vrot.slane %v2707, 2
      %v2894 = vrot.slane %v2708, 2
      %v2895 = vsel %vm598, %v2893, %v2894
      %v2896 = vrot.slane %v2709, 2
      %v2897 = vsel %vm598, %v2894, %v2896
      %v2898 = vrot.slane %v2710, 2
      %v2899 = vrot.slane %v2711, 2
      %v2900 = vsel %vm598, %v2898, %v2899
      %v2901 = vrot.slane %v2712, 2
      %v2902 = vsel %vm598, %v2899, %v2901
      %v2903 = vrot.slane %v2713, 2
      %v2904 = vrot.slane %v2714, 2
      %v2905 = vsel %vm598, %v2903, %v2904
      %v2906 = vrot.slane %v2715, 2
      %v2907 = vsel %vm598, %v2904, %v2906
      %v2908 = vrot.slane %v2716, 2
      %v2909 = vrot.slane %v2717, 2
      %v2910 = vsel %vm598, %v2908, %v2909
      %v2911 = vrot.slane %v2718, 2
      %v2912 = vsel %vm598, %v2909, %v2911
      %v2913 = vrot.slane %v2719, 2
      %v2914 = vrot.slane %v2720, 2
      %v2915 = vsel %vm598, %v2913, %v2914
      %v2916 = vrot.slane %v2721, 2
      %v2917 = vsel %vm598, %v2914, %v2916
      %v2918 = vrot.slane %v2722, 2
      %v2919 = vrot.slane %v2723, 2
      %v2920 = vsel %vm598, %v2918, %v2919
      %v2921 = vrot.slane %v2724, 2
      %v2922 = vsel %vm598, %v2919, %v2921
      %v2923 = vrot.slane %v2725, 2
      %v2924 = vrot.slane %v2726, 2
      %v2925 = vsel %vm598, %v2923, %v2924
      %v2926 = vrot.slane %v2727, 2
      %v2927 = vsel %vm598, %v2924, %v2926
      %v2928 = vrot.slane %v2728, 2
      %v2929 = vrot.slane %v2729, 2
      %v2930 = vsel %vm598, %v2928, %v2929
      %v2931 = vrot.slane %v2730, 2
      %v2932 = vsel %vm598, %v2929, %v2931
      %v2933 = vrot.slane %v2731, 2
      %v2934 = vrot.slane %v2732, 2
      %v2935 = vsel %vm598, %v2933, %v2934
      %v2936 = vrot.slane %v2733, 2
      %v2937 = vsel %vm598, %v2934, %v2936
      %v2938 = vrot.slane %v2734, 2
      %v2939 = vrot.slane %v2735, 2
      %v2940 = vsel %vm598, %v2938, %v2939
      %v2941 = vrot.slane %v2736, 2
      %v2942 = vsel %vm598, %v2939, %v2941
      %v2943 = vrot.slane %v2737, 2
      %v2944 = vrot.slane %v2738, 2
      %v2945 = vsel %vm598, %v2943, %v2944
      %v2946 = vrot.slane %v2739, 2
      %v2947 = vsel %vm598, %v2944, %v2946
      %v2948 = vrot.slane %v2740, 2
      %v2949 = vrot.slane %v2741, 2
      %v2950 = vsel %vm598, %v2948, %v2949
      %v2951 = vrot.slane %v2742, 2
      %v2952 = vsel %vm598, %v2949, %v2951
      %v2953 = vrot.slane %v2743, 2
      %v2954 = vrot.slane %v2744, 2
      %v2955 = vsel %vm598, %v2953, %v2954
      %v2956 = vrot.slane %v2745, 2
      %v2957 = vsel %vm598, %v2954, %v2956
      %v2958 = vrot.slane %v2746, 2
      %v2959 = vrot.slane %v2747, 2
      %v2960 = vsel %vm598, %v2958, %v2959
      %v2961 = vrot.slane %v2748, 2
      %v2962 = vsel %vm598, %v2959, %v2961
      %v2966 = vrot.slane %v2749, 1
      %v2967 = vrot.slane %v2750, 1
      %v2968 = vsel %vm517, %v2966, %v2967
      %v2969 = vrot.slane %v2751, 1
      %v2970 = vsel %vm517, %v2967, %v2969
      %v3003 = vrot.slane %v2749, 2
      %v3004 = vrot.slane %v2750, 2
      %v3005 = vsel %vm598, %v3003, %v3004
      %v3006 = vrot.slane %v2751, 2
      %v3007 = vsel %vm598, %v3004, %v3006
      %v3011 = vrot.slane %v2752, 1
      %v3012 = vrot.slane %v2753, 1
      %v3013 = vsel %vm517, %v3011, %v3012
      %v3014 = vrot.slane %v2754, 1
      %v3015 = vsel %vm517, %v3012, %v3014
      %v3016 = vrot.slane %v2752, 2
      %v3017 = vrot.slane %v2753, 2
      %v3018 = vsel %vm598, %v3016, %v3017
      %v3019 = vrot.slane %v2754, 2
      %v3020 = vsel %vm598, %v3017, %v3019
      %3053 = vrot.lane.b32.xlu0 %v2805, 32
      %v3054 = vpop.permute.xlu0 %3053
      %3055 = vrot.lane.b32.xlu0 %v2807, 32
      %v3056 = vpop.permute.xlu0 %3055
      %3057 = vrot.lane.b32.xlu0 %v2810, 32
      %v3058 = vpop.permute.xlu0 %3057
      %3059 = vrot.lane.b32.xlu0 %v2812, 32
      %v3060 = vpop.permute.xlu0 %3059
      %3061 = vrot.lane.b32.xlu0 %v2815, 32
      %v3062 = vpop.permute.xlu0 %3061
      %3063 = vrot.lane.b32.xlu0 %v2817, 32
      %v3064 = vpop.permute.xlu0 %3063
      %3065 = vrot.lane.b32.xlu0 %v2820, 32
      %v3066 = vpop.permute.xlu0 %3065
      %3067 = vrot.lane.b32.xlu0 %v2822, 32
      %v3068 = vpop.permute.xlu0 %3067
      %3069 = vrot.lane.b32.xlu0 %v2825, 32
      %v3070 = vpop.permute.xlu0 %3069
      %3071 = vrot.lane.b32.xlu0 %v2827, 32
      %v3072 = vpop.permute.xlu0 %3071
      %3073 = vrot.lane.b32.xlu0 %v2830, 32
      %v3074 = vpop.permute.xlu0 %3073
      %3075 = vrot.lane.b32.xlu0 %v2832, 32
      %v3076 = vpop.permute.xlu0 %3075
      %3077 = vrot.lane.b32.xlu0 %v2835, 32
      %v3078 = vpop.permute.xlu0 %3077
      %3079 = vrot.lane.b32.xlu0 %v2837, 32
      %v3080 = vpop.permute.xlu0 %3079
      %3081 = vrot.lane.b32.xlu0 %v2840, 32
      %v3082 = vpop.permute.xlu0 %3081
      %3083 = vrot.lane.b32.xlu0 %v2842, 32
      %v3084 = vpop.permute.xlu0 %3083
      %3085 = vrot.lane.b32.xlu0 %v2845, 32
      %v3086 = vpop.permute.xlu0 %3085
      %3087 = vrot.lane.b32.xlu0 %v2847, 32
      %v3088 = vpop.permute.xlu0 %3087
      %3089 = vrot.lane.b32.xlu0 %v2850, 32
      %v3090 = vpop.permute.xlu0 %3089
      %3091 = vrot.lane.b32.xlu0 %v2852, 32
      %v3092 = vpop.permute.xlu0 %3091
      %3093 = vrot.lane.b32.xlu0 %v2855, 32
      %v3094 = vpop.permute.xlu0 %3093
      %3095 = vrot.lane.b32.xlu0 %v2857, 32
      %v3096 = vpop.permute.xlu0 %3095
      %3097 = vrot.lane.b32.xlu0 %v2860, 32
      %v3098 = vpop.permute.xlu0 %3097
      %3099 = vrot.lane.b32.xlu0 %v2862, 32
      %v3100 = vpop.permute.xlu0 %3099
      %3101 = vrot.lane.b32.xlu0 %v2865, 32
      %v3102 = vpop.permute.xlu0 %3101
      %3103 = vrot.lane.b32.xlu0 %v2867, 32
      %v3104 = vpop.permute.xlu0 %3103
      %3105 = vrot.lane.b32.xlu0 %v2870, 32
      %v3106 = vpop.permute.xlu0 %3105
      %3107 = vrot.lane.b32.xlu0 %v2872, 32
      %v3108 = vpop.permute.xlu0 %3107
      %3109 = vrot.lane.b32.xlu0 %v2875, 32
      %v3110 = vpop.permute.xlu0 %3109
      %3111 = vrot.lane.b32.xlu0 %v2877, 32
      %v3112 = vpop.permute.xlu0 %3111
      %3113 = vrot.lane.b32.xlu0 %v2880, 32
      %v3114 = vpop.permute.xlu0 %3113
      %3115 = vrot.lane.b32.xlu0 %v2882, 32
      %v3116 = vpop.permute.xlu0 %3115
      %3149 = vrot.lane.b32.xlu0 %v2885, 64
      %v3150 = vpop.permute.xlu0 %3149
      %3151 = vrot.lane.b32.xlu0 %v2887, 64
      %v3152 = vpop.permute.xlu0 %3151
      %3153 = vrot.lane.b32.xlu0 %v2890, 64
      %v3154 = vpop.permute.xlu0 %3153
      %3155 = vrot.lane.b32.xlu0 %v2892, 64
      %v3156 = vpop.permute.xlu0 %3155
      %3157 = vrot.lane.b32.xlu0 %v2895, 64
      %v3158 = vpop.permute.xlu0 %3157
      %3159 = vrot.lane.b32.xlu0 %v2897, 64
      %v3160 = vpop.permute.xlu0 %3159
      %3161 = vrot.lane.b32.xlu0 %v2900, 64
      %v3162 = vpop.permute.xlu0 %3161
      %3163 = vrot.lane.b32.xlu0 %v2902, 64
      %v3164 = vpop.permute.xlu0 %3163
      %3165 = vrot.lane.b32.xlu0 %v2905, 64
      %v3166 = vpop.permute.xlu0 %3165
      %3167 = vrot.lane.b32.xlu0 %v2907, 64
      %v3168 = vpop.permute.xlu0 %3167
      %3169 = vrot.lane.b32.xlu0 %v2910, 64
      %v3170 = vpop.permute.xlu0 %3169
      %3171 = vrot.lane.b32.xlu0 %v2912, 64
      %v3172 = vpop.permute.xlu0 %3171
      %3173 = vrot.lane.b32.xlu0 %v2915, 64
      %v3174 = vpop.permute.xlu0 %3173
      %3175 = vrot.lane.b32.xlu0 %v2917, 64
      %v3176 = vpop.permute.xlu0 %3175
      %3177 = vrot.lane.b32.xlu0 %v2920, 64
      %v3178 = vpop.permute.xlu0 %3177
      %3179 = vrot.lane.b32.xlu0 %v2922, 64
      %v3180 = vpop.permute.xlu0 %3179
      %3181 = vrot.lane.b32.xlu0 %v2925, 64
      %v3182 = vpop.permute.xlu0 %3181
      %3183 = vrot.lane.b32.xlu0 %v2927, 64
      %v3184 = vpop.permute.xlu0 %3183
      %3185 = vrot.lane.b32.xlu0 %v2930, 64
      %v3186 = vpop.permute.xlu0 %3185
      %3187 = vrot.lane.b32.xlu0 %v2932, 64
      %v3188 = vpop.permute.xlu0 %3187
      %3189 = vrot.lane.b32.xlu0 %v2935, 64
      %v3190 = vpop.permute.xlu0 %3189
      %3191 = vrot.lane.b32.xlu0 %v2937, 64
      %v3192 = vpop.permute.xlu0 %3191
      %3193 = vrot.lane.b32.xlu0 %v2940, 64
      %v3194 = vpop.permute.xlu0 %3193
      %3195 = vrot.lane.b32.xlu0 %v2942, 64
      %v3196 = vpop.permute.xlu0 %3195
      %3197 = vrot.lane.b32.xlu0 %v2945, 64
      %v3198 = vpop.permute.xlu0 %3197
      %3199 = vrot.lane.b32.xlu0 %v2947, 64
      %v3200 = vpop.permute.xlu0 %3199
      %3201 = vrot.lane.b32.xlu0 %v2950, 64
      %v3202 = vpop.permute.xlu0 %3201
      %3203 = vrot.lane.b32.xlu0 %v2952, 64
      %v3204 = vpop.permute.xlu0 %3203
      %3205 = vrot.lane.b32.xlu0 %v2955, 64
      %v3206 = vpop.permute.xlu0 %3205
      %3207 = vrot.lane.b32.xlu0 %v2957, 64
      %v3208 = vpop.permute.xlu0 %3207
      %3209 = vrot.lane.b32.xlu0 %v2960, 64
      %v3210 = vpop.permute.xlu0 %3209
      %3211 = vrot.lane.b32.xlu0 %v2962, 64
      %v3212 = vpop.permute.xlu0 %3211
      %3245 = vrot.lane.b32.xlu0 %v2704, 96
      %v3246 = vpop.permute.xlu0 %3245
      %3247 = vrot.lane.b32.xlu0 %v2705, 96
      %v3248 = vpop.permute.xlu0 %3247
      %3249 = vrot.lane.b32.xlu0 %v2707, 96
      %v3250 = vpop.permute.xlu0 %3249
      %3251 = vrot.lane.b32.xlu0 %v2708, 96
      %v3252 = vpop.permute.xlu0 %3251
      %3253 = vrot.lane.b32.xlu0 %v2710, 96
      %v3254 = vpop.permute.xlu0 %3253
      %3255 = vrot.lane.b32.xlu0 %v2711, 96
      %v3256 = vpop.permute.xlu0 %3255
      %3257 = vrot.lane.b32.xlu0 %v2713, 96
      %v3258 = vpop.permute.xlu0 %3257
      %3259 = vrot.lane.b32.xlu0 %v2714, 96
      %v3260 = vpop.permute.xlu0 %3259
      %3261 = vrot.lane.b32.xlu0 %v2716, 96
      %v3262 = vpop.permute.xlu0 %3261
      %3263 = vrot.lane.b32.xlu0 %v2717, 96
      %v3264 = vpop.permute.xlu0 %3263
      %3265 = vrot.lane.b32.xlu0 %v2719, 96
      %v3266 = vpop.permute.xlu0 %3265
      %3267 = vrot.lane.b32.xlu0 %v2720, 96
      %v3268 = vpop.permute.xlu0 %3267
      %3269 = vrot.lane.b32.xlu0 %v2722, 96
      %v3270 = vpop.permute.xlu0 %3269
      %3271 = vrot.lane.b32.xlu0 %v2723, 96
      %v3272 = vpop.permute.xlu0 %3271
      %3273 = vrot.lane.b32.xlu0 %v2725, 96
      %v3274 = vpop.permute.xlu0 %3273
      %3275 = vrot.lane.b32.xlu0 %v2726, 96
      %v3276 = vpop.permute.xlu0 %3275
      %3277 = vrot.lane.b32.xlu0 %v2728, 96
      %v3278 = vpop.permute.xlu0 %3277
      %3279 = vrot.lane.b32.xlu0 %v2729, 96
      %v3280 = vpop.permute.xlu0 %3279
      %3281 = vrot.lane.b32.xlu0 %v2731, 96
      %v3282 = vpop.permute.xlu0 %3281
      %3283 = vrot.lane.b32.xlu0 %v2732, 96
      %v3284 = vpop.permute.xlu0 %3283
      %3285 = vrot.lane.b32.xlu0 %v2734, 96
      %v3286 = vpop.permute.xlu0 %3285
      %3287 = vrot.lane.b32.xlu0 %v2735, 96
      %v3288 = vpop.permute.xlu0 %3287
      %3289 = vrot.lane.b32.xlu0 %v2737, 96
      %v3290 = vpop.permute.xlu0 %3289
      %3291 = vrot.lane.b32.xlu0 %v2738, 96
      %v3292 = vpop.permute.xlu0 %3291
      %3293 = vrot.lane.b32.xlu0 %v2740, 96
      %v3294 = vpop.permute.xlu0 %3293
      %3295 = vrot.lane.b32.xlu0 %v2741, 96
      %v3296 = vpop.permute.xlu0 %3295
      %3297 = vrot.lane.b32.xlu0 %v2743, 96
      %v3298 = vpop.permute.xlu0 %3297
      %3299 = vrot.lane.b32.xlu0 %v2744, 96
      %v3300 = vpop.permute.xlu0 %3299
      %3301 = vrot.lane.b32.xlu0 %v2746, 96
      %v3302 = vpop.permute.xlu0 %3301
      %3303 = vrot.lane.b32.xlu0 %v2747, 96
      %v3304 = vpop.permute.xlu0 %3303
      %3305 = vrot.lane.b32.xlu0 %v2749, 96
      %v3306 = vpop.permute.xlu0 %3305
      %3307 = vrot.lane.b32.xlu0 %v2750, 96
      %v3308 = vpop.permute.xlu0 %3307
      %3341 = vrot.lane.b32.xlu0 %v2890, 32
      %v3342 = vpop.permute.xlu0 %3341
      %3343 = vrot.lane.b32.xlu0 %v2892, 32
      %v3344 = vpop.permute.xlu0 %3343
      %3345 = vrot.lane.b32.xlu0 %v2895, 32
      %v3346 = vpop.permute.xlu0 %3345
      %3347 = vrot.lane.b32.xlu0 %v2897, 32
      %v3348 = vpop.permute.xlu0 %3347
      %3349 = vrot.lane.b32.xlu0 %v2900, 32
      %v3350 = vpop.permute.xlu0 %3349
      %3351 = vrot.lane.b32.xlu0 %v2902, 32
      %v3352 = vpop.permute.xlu0 %3351
      %3353 = vrot.lane.b32.xlu0 %v2905, 32
      %v3354 = vpop.permute.xlu0 %3353
      %3355 = vrot.lane.b32.xlu0 %v2907, 32
      %v3356 = vpop.permute.xlu0 %3355
      %3357 = vrot.lane.b32.xlu0 %v2910, 32
      %v3358 = vpop.permute.xlu0 %3357
      %3359 = vrot.lane.b32.xlu0 %v2912, 32
      %v3360 = vpop.permute.xlu0 %3359
      %3361 = vrot.lane.b32.xlu0 %v2915, 32
      %v3362 = vpop.permute.xlu0 %3361
      %3363 = vrot.lane.b32.xlu0 %v2917, 32
      %v3364 = vpop.permute.xlu0 %3363
      %3365 = vrot.lane.b32.xlu0 %v2920, 32
      %v3366 = vpop.permute.xlu0 %3365
      %3367 = vrot.lane.b32.xlu0 %v2922, 32
      %v3368 = vpop.permute.xlu0 %3367
      %3369 = vrot.lane.b32.xlu0 %v2925, 32
      %v3370 = vpop.permute.xlu0 %3369
      %3371 = vrot.lane.b32.xlu0 %v2927, 32
      %v3372 = vpop.permute.xlu0 %3371
      %3373 = vrot.lane.b32.xlu0 %v2930, 32
      %v3374 = vpop.permute.xlu0 %3373
      %3375 = vrot.lane.b32.xlu0 %v2932, 32
      %v3376 = vpop.permute.xlu0 %3375
      %3377 = vrot.lane.b32.xlu0 %v2935, 32
      %v3378 = vpop.permute.xlu0 %3377
      %3379 = vrot.lane.b32.xlu0 %v2937, 32
      %v3380 = vpop.permute.xlu0 %3379
      %3381 = vrot.lane.b32.xlu0 %v2940, 32
      %v3382 = vpop.permute.xlu0 %3381
      %3383 = vrot.lane.b32.xlu0 %v2942, 32
      %v3384 = vpop.permute.xlu0 %3383
      %3385 = vrot.lane.b32.xlu0 %v2945, 32
      %v3386 = vpop.permute.xlu0 %3385
      %3387 = vrot.lane.b32.xlu0 %v2947, 32
      %v3388 = vpop.permute.xlu0 %3387
      %3389 = vrot.lane.b32.xlu0 %v2950, 32
      %v3390 = vpop.permute.xlu0 %3389
      %3391 = vrot.lane.b32.xlu0 %v2952, 32
      %v3392 = vpop.permute.xlu0 %3391
      %3393 = vrot.lane.b32.xlu0 %v2955, 32
      %v3394 = vpop.permute.xlu0 %3393
      %3395 = vrot.lane.b32.xlu0 %v2957, 32
      %v3396 = vpop.permute.xlu0 %3395
      %3397 = vrot.lane.b32.xlu0 %v2960, 32
      %v3398 = vpop.permute.xlu0 %3397
      %3399 = vrot.lane.b32.xlu0 %v2962, 32
      %v3400 = vpop.permute.xlu0 %3399
      %3401 = vrot.lane.b32.xlu0 %v3005, 32
      %v3402 = vpop.permute.xlu0 %3401
      %3403 = vrot.lane.b32.xlu0 %v3007, 32
      %v3404 = vpop.permute.xlu0 %3403
      %3437 = vrot.lane.b32.xlu0 %v2707, 64
      %v3438 = vpop.permute.xlu0 %3437
      %3439 = vrot.lane.b32.xlu0 %v2708, 64
      %v3440 = vpop.permute.xlu0 %3439
      %3441 = vrot.lane.b32.xlu0 %v2710, 64
      %v3442 = vpop.permute.xlu0 %3441
      %3443 = vrot.lane.b32.xlu0 %v2711, 64
      %v3444 = vpop.permute.xlu0 %3443
      %3445 = vrot.lane.b32.xlu0 %v2713, 64
      %v3446 = vpop.permute.xlu0 %3445
      %3447 = vrot.lane.b32.xlu0 %v2714, 64
      %v3448 = vpop.permute.xlu0 %3447
      %3449 = vrot.lane.b32.xlu0 %v2716, 64
      %v3450 = vpop.permute.xlu0 %3449
      %3451 = vrot.lane.b32.xlu0 %v2717, 64
      %v3452 = vpop.permute.xlu0 %3451
      %3453 = vrot.lane.b32.xlu0 %v2719, 64
      %v3454 = vpop.permute.xlu0 %3453
      %3455 = vrot.lane.b32.xlu0 %v2720, 64
      %v3456 = vpop.permute.xlu0 %3455
      %3457 = vrot.lane.b32.xlu0 %v2722, 64
      %v3458 = vpop.permute.xlu0 %3457
      %3459 = vrot.lane.b32.xlu0 %v2723, 64
      %v3460 = vpop.permute.xlu0 %3459
      %3461 = vrot.lane.b32.xlu0 %v2725, 64
      %v3462 = vpop.permute.xlu0 %3461
      %3463 = vrot.lane.b32.xlu0 %v2726, 64
      %v3464 = vpop.permute.xlu0 %3463
      %3465 = vrot.lane.b32.xlu0 %v2728, 64
      %v3466 = vpop.permute.xlu0 %3465
      %3467 = vrot.lane.b32.xlu0 %v2729, 64
      %v3468 = vpop.permute.xlu0 %3467
      %3469 = vrot.lane.b32.xlu0 %v2731, 64
      %v3470 = vpop.permute.xlu0 %3469
      %3471 = vrot.lane.b32.xlu0 %v2732, 64
      %v3472 = vpop.permute.xlu0 %3471
      %3473 = vrot.lane.b32.xlu0 %v2734, 64
      %v3474 = vpop.permute.xlu0 %3473
      %3475 = vrot.lane.b32.xlu0 %v2735, 64
      %v3476 = vpop.permute.xlu0 %3475
      %3477 = vrot.lane.b32.xlu0 %v2737, 64
      %v3478 = vpop.permute.xlu0 %3477
      %3479 = vrot.lane.b32.xlu0 %v2738, 64
      %v3480 = vpop.permute.xlu0 %3479
      %3481 = vrot.lane.b32.xlu0 %v2740, 64
      %v3482 = vpop.permute.xlu0 %3481
      %3483 = vrot.lane.b32.xlu0 %v2741, 64
      %v3484 = vpop.permute.xlu0 %3483
      %3485 = vrot.lane.b32.xlu0 %v2743, 64
      %v3486 = vpop.permute.xlu0 %3485
      %3487 = vrot.lane.b32.xlu0 %v2744, 64
      %v3488 = vpop.permute.xlu0 %3487
      %3489 = vrot.lane.b32.xlu0 %v2746, 64
      %v3490 = vpop.permute.xlu0 %3489
      %3491 = vrot.lane.b32.xlu0 %v2747, 64
      %v3492 = vpop.permute.xlu0 %3491
      %3493 = vrot.lane.b32.xlu0 %v2749, 64
      %v3494 = vpop.permute.xlu0 %3493
      %3495 = vrot.lane.b32.xlu0 %v2750, 64
      %v3496 = vpop.permute.xlu0 %3495
      %3497 = vrot.lane.b32.xlu0 %v2752, 64
      %v3498 = vpop.permute.xlu0 %3497
      %3499 = vrot.lane.b32.xlu0 %v2753, 64
      %v3500 = vpop.permute.xlu0 %3499
      %3533 = vrot.lane.b32.xlu0 %v2815, 96
      %v3534 = vpop.permute.xlu0 %3533
      %3535 = vrot.lane.b32.xlu0 %v2817, 96
      %v3536 = vpop.permute.xlu0 %3535
      %3537 = vrot.lane.b32.xlu0 %v2820, 96
      %v3538 = vpop.permute.xlu0 %3537
      %3539 = vrot.lane.b32.xlu0 %v2822, 96
      %v3540 = vpop.permute.xlu0 %3539
      %3541 = vrot.lane.b32.xlu0 %v2825, 96
      %v3542 = vpop.permute.xlu0 %3541
      %3543 = vrot.lane.b32.xlu0 %v2827, 96
      %v3544 = vpop.permute.xlu0 %3543
      %3545 = vrot.lane.b32.xlu0 %v2830, 96
      %v3546 = vpop.permute.xlu0 %3545
      %3547 = vrot.lane.b32.xlu0 %v2832, 96
      %v3548 = vpop.permute.xlu0 %3547
      %3549 = vrot.lane.b32.xlu0 %v2835, 96
      %v3550 = vpop.permute.xlu0 %3549
      %3551 = vrot.lane.b32.xlu0 %v2837, 96
      %v3552 = vpop.permute.xlu0 %3551
      %3553 = vrot.lane.b32.xlu0 %v2840, 96
      %v3554 = vpop.permute.xlu0 %3553
      %3555 = vrot.lane.b32.xlu0 %v2842, 96
      %v3556 = vpop.permute.xlu0 %3555
      %3557 = vrot.lane.b32.xlu0 %v2845, 96
      %v3558 = vpop.permute.xlu0 %3557
      %3559 = vrot.lane.b32.xlu0 %v2847, 96
      %v3560 = vpop.permute.xlu0 %3559
      %3561 = vrot.lane.b32.xlu0 %v2850, 96
      %v3562 = vpop.permute.xlu0 %3561
      %3563 = vrot.lane.b32.xlu0 %v2852, 96
      %v3564 = vpop.permute.xlu0 %3563
      %3565 = vrot.lane.b32.xlu0 %v2855, 96
      %v3566 = vpop.permute.xlu0 %3565
      %3567 = vrot.lane.b32.xlu0 %v2857, 96
      %v3568 = vpop.permute.xlu0 %3567
      %3569 = vrot.lane.b32.xlu0 %v2860, 96
      %v3570 = vpop.permute.xlu0 %3569
      %3571 = vrot.lane.b32.xlu0 %v2862, 96
      %v3572 = vpop.permute.xlu0 %3571
      %3573 = vrot.lane.b32.xlu0 %v2865, 96
      %v3574 = vpop.permute.xlu0 %3573
      %3575 = vrot.lane.b32.xlu0 %v2867, 96
      %v3576 = vpop.permute.xlu0 %3575
      %3577 = vrot.lane.b32.xlu0 %v2870, 96
      %v3578 = vpop.permute.xlu0 %3577
      %3579 = vrot.lane.b32.xlu0 %v2872, 96
      %v3580 = vpop.permute.xlu0 %3579
      %3581 = vrot.lane.b32.xlu0 %v2875, 96
      %v3582 = vpop.permute.xlu0 %3581
      %3583 = vrot.lane.b32.xlu0 %v2877, 96
      %v3584 = vpop.permute.xlu0 %3583
      %3585 = vrot.lane.b32.xlu0 %v2880, 96
      %v3586 = vpop.permute.xlu0 %3585
      %3587 = vrot.lane.b32.xlu0 %v2882, 96
      %v3588 = vpop.permute.xlu0 %3587
      %3589 = vrot.lane.b32.xlu0 %v2968, 96
      %v3590 = vpop.permute.xlu0 %3589
      %3591 = vrot.lane.b32.xlu0 %v2970, 96
      %v3592 = vpop.permute.xlu0 %3591
      %3593 = vrot.lane.b32.xlu0 %v3013, 96
      %v3594 = vpop.permute.xlu0 %3593
      %3595 = vrot.lane.b32.xlu0 %v3015, 96
      %v3596 = vpop.permute.xlu0 %3595
      %v3629 = vsel %vm1442, %v2701, %v3054
      %v3630 = vsel %vm1442, %v2702, %v3056
      %v3631 = vsel %vm1442, %v2704, %v3058
      %v3632 = vsel %vm1442, %v2705, %v3060
      %v3633 = vsel %vm1442, %v2707, %v3062
      %v3634 = vsel %vm1442, %v2708, %v3064
      %v3635 = vsel %vm1442, %v2710, %v3066
      %v3636 = vsel %vm1442, %v2711, %v3068
      %v3637 = vsel %vm1442, %v2713, %v3070
      %v3638 = vsel %vm1442, %v2714, %v3072
      %v3639 = vsel %vm1442, %v2716, %v3074
      %v3640 = vsel %vm1442, %v2717, %v3076
      %v3641 = vsel %vm1442, %v2719, %v3078
      %v3642 = vsel %vm1442, %v2720, %v3080
      %v3643 = vsel %vm1442, %v2722, %v3082
      %v3644 = vsel %vm1442, %v2723, %v3084
      %v3645 = vsel %vm1442, %v2725, %v3086
      %v3646 = vsel %vm1442, %v2726, %v3088
      %v3647 = vsel %vm1442, %v2728, %v3090
      %v3648 = vsel %vm1442, %v2729, %v3092
      %v3649 = vsel %vm1442, %v2731, %v3094
      %v3650 = vsel %vm1442, %v2732, %v3096
      %v3651 = vsel %vm1442, %v2734, %v3098
      %v3652 = vsel %vm1442, %v2735, %v3100
      %v3653 = vsel %vm1442, %v2737, %v3102
      %v3654 = vsel %vm1442, %v2738, %v3104
      %v3655 = vsel %vm1442, %v2740, %v3106
      %v3656 = vsel %vm1442, %v2741, %v3108
      %v3657 = vsel %vm1442, %v2743, %v3110
      %v3658 = vsel %vm1442, %v2744, %v3112
      %v3659 = vsel %vm1442, %v2746, %v3114
      %v3660 = vsel %vm1442, %v2747, %v3116
      %v3661 = vsel %vm1508, %v3629, %v3150
      %v3662 = vsel %vm1508, %v3630, %v3152
      %v3663 = vsel %vm1508, %v3631, %v3154
      %v3664 = vsel %vm1508, %v3632, %v3156
      %v3665 = vsel %vm1508, %v3633, %v3158
      %v3666 = vsel %vm1508, %v3634, %v3160
      %v3667 = vsel %vm1508, %v3635, %v3162
      %v3668 = vsel %vm1508, %v3636, %v3164
      %v3669 = vsel %vm1508, %v3637, %v3166
      %v3670 = vsel %vm1508, %v3638, %v3168
      %v3671 = vsel %vm1508, %v3639, %v3170
      %v3672 = vsel %vm1508, %v3640, %v3172
      %v3673 = vsel %vm1508, %v3641, %v3174
      %v3674 = vsel %vm1508, %v3642, %v3176
      %v3675 = vsel %vm1508, %v3643, %v3178
      %v3676 = vsel %vm1508, %v3644, %v3180
      %v3677 = vsel %vm1508, %v3645, %v3182
      %v3678 = vsel %vm1508, %v3646, %v3184
      %v3679 = vsel %vm1508, %v3647, %v3186
      %v3680 = vsel %vm1508, %v3648, %v3188
      %v3681 = vsel %vm1508, %v3649, %v3190
      %v3682 = vsel %vm1508, %v3650, %v3192
      %v3683 = vsel %vm1508, %v3651, %v3194
      %v3684 = vsel %vm1508, %v3652, %v3196
      %v3685 = vsel %vm1508, %v3653, %v3198
      %v3686 = vsel %vm1508, %v3654, %v3200
      %v3687 = vsel %vm1508, %v3655, %v3202
      %v3688 = vsel %vm1508, %v3656, %v3204
      %v3689 = vsel %vm1508, %v3657, %v3206
      %v3690 = vsel %vm1508, %v3658, %v3208
      %v3691 = vsel %vm1508, %v3659, %v3210
      %v3692 = vsel %vm1508, %v3660, %v3212
      %v3693 = vsel %vm1574, %v3661, %v3246
      %v3694 = vsel %vm1574, %v3662, %v3248
      %v3695 = vsel %vm1574, %v3663, %v3250
      %v3696 = vsel %vm1574, %v3664, %v3252
      %v3697 = vsel %vm1574, %v3665, %v3254
      %v3698 = vsel %vm1574, %v3666, %v3256
      %v3699 = vsel %vm1574, %v3667, %v3258
      %v3700 = vsel %vm1574, %v3668, %v3260
      %v3701 = vsel %vm1574, %v3669, %v3262
      %v3702 = vsel %vm1574, %v3670, %v3264
      %v3703 = vsel %vm1574, %v3671, %v3266
      %v3704 = vsel %vm1574, %v3672, %v3268
      %v3705 = vsel %vm1574, %v3673, %v3270
      %v3706 = vsel %vm1574, %v3674, %v3272
      %v3707 = vsel %vm1574, %v3675, %v3274
      %v3708 = vsel %vm1574, %v3676, %v3276
      %v3709 = vsel %vm1574, %v3677, %v3278
      %v3710 = vsel %vm1574, %v3678, %v3280
      %v3711 = vsel %vm1574, %v3679, %v3282
      %v3712 = vsel %vm1574, %v3680, %v3284
      %v3713 = vsel %vm1574, %v3681, %v3286
      %v3714 = vsel %vm1574, %v3682, %v3288
      %v3715 = vsel %vm1574, %v3683, %v3290
      %v3716 = vsel %vm1574, %v3684, %v3292
      %v3717 = vsel %vm1574, %v3685, %v3294
      %v3718 = vsel %vm1574, %v3686, %v3296
      %v3719 = vsel %vm1574, %v3687, %v3298
      %v3720 = vsel %vm1574, %v3688, %v3300
      %v3721 = vsel %vm1574, %v3689, %v3302
      %v3722 = vsel %vm1574, %v3690, %v3304
      %v3723 = vsel %vm1574, %v3691, %v3306
      %v3724 = vsel %vm1574, %v3692, %v3308
      %v3725 = vsel %vm1442, %v2810, %v3342
      %v3726 = vsel %vm1442, %v2812, %v3344
      %v3727 = vsel %vm1442, %v2815, %v3346
      %v3728 = vsel %vm1442, %v2817, %v3348
      %v3729 = vsel %vm1442, %v2820, %v3350
      %v3730 = vsel %vm1442, %v2822, %v3352
      %v3731 = vsel %vm1442, %v2825, %v3354
      %v3732 = vsel %vm1442, %v2827, %v3356
      %v3733 = vsel %vm1442, %v2830, %v3358
      %v3734 = vsel %vm1442, %v2832, %v3360
      %v3735 = vsel %vm1442, %v2835, %v3362
      %v3736 = vsel %vm1442, %v2837, %v3364
      %v3737 = vsel %vm1442, %v2840, %v3366
      %v3738 = vsel %vm1442, %v2842, %v3368
      %v3739 = vsel %vm1442, %v2845, %v3370
      %v3740 = vsel %vm1442, %v2847, %v3372
      %v3741 = vsel %vm1442, %v2850, %v3374
      %v3742 = vsel %vm1442, %v2852, %v3376
      %v3743 = vsel %vm1442, %v2855, %v3378
      %v3744 = vsel %vm1442, %v2857, %v3380
      %v3745 = vsel %vm1442, %v2860, %v3382
      %v3746 = vsel %vm1442, %v2862, %v3384
      %v3747 = vsel %vm1442, %v2865, %v3386
      %v3748 = vsel %vm1442, %v2867, %v3388
      %v3749 = vsel %vm1442, %v2870, %v3390
      %v3750 = vsel %vm1442, %v2872, %v3392
      %v3751 = vsel %vm1442, %v2875, %v3394
      %v3752 = vsel %vm1442, %v2877, %v3396
      %v3753 = vsel %vm1442, %v2880, %v3398
      %v3754 = vsel %vm1442, %v2882, %v3400
      %v3755 = vsel %vm1442, %v2968, %v3402
      %v3756 = vsel %vm1442, %v2970, %v3404
      %v3757 = vsel %vm1508, %v3725, %v3438
      %v3758 = vsel %vm1508, %v3726, %v3440
      %v3759 = vsel %vm1508, %v3727, %v3442
      %v3760 = vsel %vm1508, %v3728, %v3444
      %v3761 = vsel %vm1508, %v3729, %v3446
      %v3762 = vsel %vm1508, %v3730, %v3448
      %v3763 = vsel %vm1508, %v3731, %v3450
      %v3764 = vsel %vm1508, %v3732, %v3452
      %v3765 = vsel %vm1508, %v3733, %v3454
      %v3766 = vsel %vm1508, %v3734, %v3456
      %v3767 = vsel %vm1508, %v3735, %v3458
      %v3768 = vsel %vm1508, %v3736, %v3460
      %v3769 = vsel %vm1508, %v3737, %v3462
      %v3770 = vsel %vm1508, %v3738, %v3464
      %v3771 = vsel %vm1508, %v3739, %v3466
      %v3772 = vsel %vm1508, %v3740, %v3468
      %v3773 = vsel %vm1508, %v3741, %v3470
      %v3774 = vsel %vm1508, %v3742, %v3472
      %v3775 = vsel %vm1508, %v3743, %v3474
      %v3776 = vsel %vm1508, %v3744, %v3476
      %v3777 = vsel %vm1508, %v3745, %v3478
      %v3778 = vsel %vm1508, %v3746, %v3480
      %v3779 = vsel %vm1508, %v3747, %v3482
      %v3780 = vsel %vm1508, %v3748, %v3484
      %v3781 = vsel %vm1508, %v3749, %v3486
      %v3782 = vsel %vm1508, %v3750, %v3488
      %v3783 = vsel %vm1508, %v3751, %v3490
      %v3784 = vsel %vm1508, %v3752, %v3492
      %v3785 = vsel %vm1508, %v3753, %v3494
      %v3786 = vsel %vm1508, %v3754, %v3496
      %v3787 = vsel %vm1508, %v3755, %v3498
      %v3788 = vsel %vm1508, %v3756, %v3500
      %v3789 = vsel %vm1574, %v3757, %v3534
      %v3790 = vsel %vm1574, %v3758, %v3536
      %v3791 = vsel %vm1574, %v3759, %v3538
      %v3792 = vsel %vm1574, %v3760, %v3540
      %v3793 = vsel %vm1574, %v3761, %v3542
      %v3794 = vsel %vm1574, %v3762, %v3544
      %v3795 = vsel %vm1574, %v3763, %v3546
      %v3796 = vsel %vm1574, %v3764, %v3548
      %v3797 = vsel %vm1574, %v3765, %v3550
      %v3798 = vsel %vm1574, %v3766, %v3552
      %v3799 = vsel %vm1574, %v3767, %v3554
      %v3800 = vsel %vm1574, %v3768, %v3556
      %v3801 = vsel %vm1574, %v3769, %v3558
      %v3802 = vsel %vm1574, %v3770, %v3560
      %v3803 = vsel %vm1574, %v3771, %v3562
      %v3804 = vsel %vm1574, %v3772, %v3564
      %v3805 = vsel %vm1574, %v3773, %v3566
      %v3806 = vsel %vm1574, %v3774, %v3568
      %v3807 = vsel %vm1574, %v3775, %v3570
      %v3808 = vsel %vm1574, %v3776, %v3572
      %v3809 = vsel %vm1574, %v3777, %v3574
      %v3810 = vsel %vm1574, %v3778, %v3576
      %v3811 = vsel %vm1574, %v3779, %v3578
      %v3812 = vsel %vm1574, %v3780, %v3580
      %v3813 = vsel %vm1574, %v3781, %v3582
      %v3814 = vsel %vm1574, %v3782, %v3584
      %v3815 = vsel %vm1574, %v3783, %v3586
      %v3816 = vsel %vm1574, %v3784, %v3588
      %v3817 = vsel %vm1574, %v3785, %v3590
      %v3818 = vsel %vm1574, %v3786, %v3592
      %v3819 = vsel %vm1574, %v3787, %v3594
      %v3820 = vsel %vm1574, %v3788, %v3596
      %v3821 = vpack.c.bf16 %v3694, %v3693
      %v3822 = vpack.c.bf16 %v3790, %v3789
      %v3823 = vpack.c.bf16 %v2897, %v2895
      %v3824 = vpack.c.bf16 %v3696, %v3695
      %v3825 = vpack.c.bf16 %v3792, %v3791
      %v3826 = vpack.c.bf16 %v2902, %v2900
      %v3827 = vpack.c.bf16 %v3698, %v3697
      %v3828 = vpack.c.bf16 %v3794, %v3793
      %v3829 = vpack.c.bf16 %v2907, %v2905
      %v3830 = vpack.c.bf16 %v3700, %v3699
      %v3831 = vpack.c.bf16 %v3796, %v3795
      %v3832 = vpack.c.bf16 %v2912, %v2910
      %v3833 = vpack.c.bf16 %v3702, %v3701
      %v3834 = vpack.c.bf16 %v3798, %v3797
      %v3835 = vpack.c.bf16 %v2917, %v2915
      %v3836 = vpack.c.bf16 %v3704, %v3703
      %v3837 = vpack.c.bf16 %v3800, %v3799
      %v3838 = vpack.c.bf16 %v2922, %v2920
      %v3839 = vpack.c.bf16 %v3706, %v3705
      %v3840 = vpack.c.bf16 %v3802, %v3801
      %v3841 = vpack.c.bf16 %v2927, %v2925
      %v3842 = vpack.c.bf16 %v3708, %v3707
      %v3843 = vpack.c.bf16 %v3804, %v3803
      %v3844 = vpack.c.bf16 %v2932, %v2930
      %v3845 = vpack.c.bf16 %v3710, %v3709
      %v3846 = vpack.c.bf16 %v3806, %v3805
      %v3847 = vpack.c.bf16 %v2937, %v2935
      %v3848 = vpack.c.bf16 %v3712, %v3711
      %v3849 = vpack.c.bf16 %v3808, %v3807
      %v3850 = vpack.c.bf16 %v2942, %v2940
      %v3851 = vpack.c.bf16 %v3714, %v3713
      %v3852 = vpack.c.bf16 %v3810, %v3809
      %v3853 = vpack.c.bf16 %v2947, %v2945
      %v3854 = vpack.c.bf16 %v3716, %v3715
      %v3855 = vpack.c.bf16 %v3812, %v3811
      %v3856 = vpack.c.bf16 %v2952, %v2950
      %v3857 = vpack.c.bf16 %v3718, %v3717
      %v3858 = vpack.c.bf16 %v3814, %v3813
      %v3859 = vpack.c.bf16 %v2957, %v2955
      %v3860 = vpack.c.bf16 %v3720, %v3719
      %v3861 = vpack.c.bf16 %v3816, %v3815
      %v3862 = vpack.c.bf16 %v2962, %v2960
      %v3863 = vpack.c.bf16 %v3722, %v3721
      %v3864 = vpack.c.bf16 %v3818, %v3817
      %v3865 = vpack.c.bf16 %v3007, %v3005
      %v3866 = vpack.c.bf16 %v3724, %v3723
      %v3867 = vpack.c.bf16 %v3820, %v3819
      %v3868 = vpack.c.bf16 %v3020, %v3018
      %v3869 = vld [vmem:[%s8] sm:$0xf]
      %v3870 = vld [vmem:[%s8 + $0x4] sm:$0xf]
      %v3871 = vld [vmem:[%s8 + $0x8] sm:$0xf]
      %v3872 = vld [vmem:[%s8 + $0xc] sm:$0xf]
      %v3873 = vld [vmem:[%s8 + $0x10] sm:$0xf]
      %v3874 = vld [vmem:[%s8 + $0x14] sm:$0xf]
      %v3875 = vld [vmem:[%s8 + $0x18] sm:$0xf]
      %v3876 = vld [vmem:[%s8 + $0x1c] sm:$0xf]
      %v3877 = vld [vmem:[%s8 + $0x20] sm:$0xf]
      %v3878 = vld [vmem:[%s8 + $0x24] sm:$0xf]
      %v3879 = vld [vmem:[%s8 + $0x28] sm:$0xf]
      %v3880 = vld [vmem:[%s8 + $0x2c] sm:$0xf]
      %v3881 = vld [vmem:[%s8 + $0x30] sm:$0xf]
      %v3882 = vld [vmem:[%s8 + $0x34] sm:$0xf]
      %v3883 = vld [vmem:[%s8 + $0x38] sm:$0xf]
      %v3884 = vld [vmem:[%s8 + $0x3c] sm:$0xf]
      %v3885 = vld [vmem:[%s8 + $0x40] sm:$0xf]
      %v3886 = vld [vmem:[%s8 + $0x44] sm:$0xf]
      %v3887 = vld [vmem:[%s8 + $0x48] sm:$0xf]
      %v3888 = vld [vmem:[%s8 + $0x4c] sm:$0xf]
      %v3889 = vld [vmem:[%s8 + $0x50] sm:$0xf]
      %v3890 = vld [vmem:[%s8 + $0x54] sm:$0xf]
      %v3891 = vld [vmem:[%s8 + $0x58] sm:$0xf]
      %v3892 = vld [vmem:[%s8 + $0x5c] sm:$0xf]
      %v3893 = vld [vmem:[%s8 + $0x60] sm:$0xf]
      %v3894 = vld [vmem:[%s8 + $0x64] sm:$0xf]
      %v3895 = vld [vmem:[%s8 + $0x68] sm:$0xf]
      %v3896 = vld [vmem:[%s8 + $0x6c] sm:$0xf]
      %v3897 = vld [vmem:[%s8 + $0x70] sm:$0xf]
      %v3898 = vld [vmem:[%s8 + $0x74] sm:$0xf]
      %v3899 = vld [vmem:[%s8 + $0x78] sm:$0xf]
      %v3900 = vld [vmem:[%s8 + $0x7c] sm:$0xf]
      %v3901 = vld [vmem:[%s8 + $0x80] sm:$0xf]
      %v3902 = vld [vmem:[%s8 + $0x84] sm:$0xf]
      %v3903 = vld [vmem:[%s8 + $0x88] sm:$0xf]
      %v3904 = vld [vmem:[%s8 + $0x8c] sm:$0xf]
      %v3905 = vld [vmem:[%s9] sm:$0x1]
      %v3907 = vlaneseq
      %v3908 = vshrl.u32 %v3907, 7
      %v3909 = vsub.s32 0, %v3908
      %v3910 = vrot.slane %v3905, %v3909
      %v3948 = vunpack.c.l.b16 %v3869
      %v3949 = vunpack.c.l.b16 %v3870
      %v3950 = vunpack.c.l.b16 %v3871
      %v3951 = vunpack.c.l.b16 %v3872
      %v3952 = vunpack.c.l.b16 %v3873
      %v3953 = vunpack.c.l.b16 %v3874
      %v3954 = vunpack.c.l.b16 %v3875
      %v3955 = vunpack.c.l.b16 %v3876
      %v3956 = vunpack.c.l.b16 %v3877
      %v3957 = vunpack.c.l.b16 %v3878
      %v3958 = vunpack.c.l.b16 %v3879
      %v3959 = vunpack.c.l.b16 %v3880
      %v3960 = vunpack.c.l.b16 %v3881
      %v3961 = vunpack.c.l.b16 %v3882
      %v3962 = vunpack.c.l.b16 %v3883
      %v3963 = vunpack.c.l.b16 %v3884
      %v3964 = vunpack.c.l.b16 %v3885
      %v3965 = vunpack.c.l.b16 %v3886
      %v3966 = vunpack.c.l.b16 %v3887
      %v3967 = vunpack.c.l.b16 %v3888
      %v3968 = vunpack.c.l.b16 %v3889
      %v3969 = vunpack.c.l.b16 %v3890
      %v3970 = vunpack.c.l.b16 %v3891
      %v3971 = vunpack.c.l.b16 %v3892
      %v3972 = vunpack.c.l.b16 %v3893
      %v3973 = vunpack.c.l.b16 %v3894
      %v3974 = vunpack.c.l.b16 %v3895
      %v3975 = vunpack.c.l.b16 %v3896
      %v3976 = vunpack.c.l.b16 %v3897
      %v3977 = vunpack.c.l.b16 %v3898
      %v3978 = vunpack.c.l.b16 %v3899
      %v3979 = vunpack.c.l.b16 %v3900
      %v3980 = vunpack.c.l.b16 %v3901
      %v3981 = vunpack.c.l.b16 %v3902
      %v3982 = vunpack.c.l.b16 %v3903
      %v3983 = vunpack.c.l.b16 %v3904
      %v3984 = vpack.c.b16 %v3949, %v3948
      %v3985 = vpack.c.b16 %v3951, %v3950
      %v3986 = vpack.c.b16 %v3953, %v3952
      %v3987 = vpack.c.b16 %v3955, %v3954
      %v3988 = vpack.c.b16 %v3957, %v3956
      %v3989 = vpack.c.b16 %v3959, %v3958
      %v3990 = vpack.c.b16 %v3961, %v3960
      %v3991 = vpack.c.b16 %v3963, %v3962
      %v3992 = vpack.c.b16 %v3965, %v3964
      %v3993 = vpack.c.b16 %v3967, %v3966
      %v3994 = vpack.c.b16 %v3969, %v3968
      %v3995 = vpack.c.b16 %v3971, %v3970
      %v3996 = vpack.c.b16 %v3973, %v3972
      %v3997 = vpack.c.b16 %v3975, %v3974
      %v3998 = vpack.c.b16 %v3977, %v3976
      %v3999 = vpack.c.b16 %v3979, %v3978
      %v4000 = vpack.c.b16 %v3981, %v3980
      %v4001 = vpack.c.b16 %v3983, %v3982
      %v4021 = vsel %vm1442, %v3823, 0
      %v4024 = vsel %vm1442, %v3826, 0
      %v4027 = vsel %vm1442, %v3829, 0
      %v4030 = vsel %vm1442, %v3832, 0
      %v4033 = vsel %vm1442, %v3835, 0
      %v4036 = vsel %vm1442, %v3838, 0
      %v4039 = vsel %vm1442, %v3841, 0
      %v4042 = vsel %vm1442, %v3844, 0
      %v4045 = vsel %vm1442, %v3847, 0
      %v4048 = vsel %vm1442, %v3850, 0
      %v4051 = vsel %vm1442, %v3853, 0
      %v4054 = vsel %vm1442, %v3856, 0
      %v4057 = vsel %vm1442, %v3859, 0
      %v4060 = vsel %vm1442, %v3862, 0
      %v4063 = vsel %vm1442, %v3865, 0
      %v4066 = vsel %vm1442, %v3868, 0
      %4068 = vmatprep.subr.bf16.mxu0 0
      %4069 = vmatpush1.bf16.msra.mxu0 %v3984
      %4070 = vmatprep.subr.bf16.mxu0 0
      %4071 = vmatpush1.bf16.msra.mxu0 %v3985
      %4072 = vmatprep.subr.bf16.mxu0 0
      %4073 = vmatpush1.bf16.msra.mxu0 %v3986
      %4074 = vmatprep.subr.bf16.mxu0 0
      %4075 = vmatpush1.bf16.msra.mxu0 %v3987
      %4076 = vmatprep.subr.bf16.mxu0 0
      %4077 = vmatpush1.bf16.msra.mxu0 %v3988
      %4078 = vmatprep.subr.bf16.mxu0 0
      %4079 = vmatpush1.bf16.msra.mxu0 %v3989
      %4080 = vmatprep.subr.bf16.mxu0 0
      %4081 = vmatpush1.bf16.msra.mxu0 %v3990
      %4082 = vmatprep.subr.bf16.mxu0 0
      %4083 = vmatpush1.bf16.msra.mxu0 %v3991
      %4084 = vmatprep.subr.bf16.mxu0 0
      %4085 = vmatpush1.bf16.msra.mxu0 %v3992
      %4086 = vmatprep.subr.bf16.mxu0 0
      %4087 = vmatpush1.bf16.msra.mxu0 %v3993
      %4088 = vmatprep.subr.bf16.mxu0 0
      %4089 = vmatpush1.bf16.msra.mxu0 %v3994
      %4090 = vmatprep.subr.bf16.mxu0 0
      %4091 = vmatpush1.bf16.msra.mxu0 %v3995
      %4092 = vmatprep.subr.bf16.mxu0 0
      %4093 = vmatpush1.bf16.msra.mxu0 %v3996
      %4094 = vmatprep.subr.bf16.mxu0 0
      %4095 = vmatpush1.bf16.msra.mxu0 %v3997
      %4096 = vmatprep.subr.bf16.mxu0 0
      %4097 = vmatpush1.bf16.msra.mxu0 %v3998
      %4098 = vmatprep.subr.bf16.mxu0 0
      %4099 = vmatpush1.bf16.msra.mxu0 %v3999
      %4100 = vmatprep.mubr.bf16.mxu0 %v3822
      %4101 = vmatmul.mubr.bf16.gmra.mrb[0].mxu0 %v3821
      %v4102 = vpop.f32.mrb[0].mxu0
      %v4103 = vadd.f32 %v3910, %v4102
      %v4104 = vpop.f32.mrb[0].mxu0
      %v4105 = vpop.f32.mrb[0].mxu0
      %v4106 = vadd.f32 %v3910, %v4105
      %v4107 = vpop.f32.mrb[0].mxu0
      %4108 = vmatprep.mubr.bf16.mxu0 %v3825
      %4109 = vmatmul.mubr.bf16.gmra.mrb[0].mxu0 %v3824
      %v4110 = vpop.f32.mrb[0].mxu0
      %v4111 = vadd.f32 %v3910, %v4110
      %v4112 = vpop.f32.mrb[0].mxu0
      %v4113 = vpop.f32.mrb[0].mxu0
      %v4114 = vadd.f32 %v3910, %v4113
      %v4115 = vpop.f32.mrb[0].mxu0
      %4116 = vmatprep.mubr.bf16.mxu0 %v3828
      %4117 = vmatmul.mubr.bf16.gmra.mrb[0].mxu0 %v3827
      %v4118 = vpop.f32.mrb[0].mxu0
      %v4119 = vadd.f32 %v3910, %v4118
      %v4120 = vpop.f32.mrb[0].mxu0
      %v4121 = vpop.f32.mrb[0].mxu0
      %v4122 = vadd.f32 %v3910, %v4121
      %v4123 = vpop.f32.mrb[0].mxu0
      %4124 = vmatprep.mubr.bf16.mxu0 %v3831
      %4125 = vmatmul.mubr.bf16.gmra.mrb[0].mxu0 %v3830
      %v4126 = vpop.f32.mrb[0].mxu0
      %v4127 = vadd.f32 %v3910, %v4126
      %v4128 = vpop.f32.mrb[0].mxu0
      %v4129 = vpop.f32.mrb[0].mxu0
      %v4130 = vadd.f32 %v3910, %v4129
      %v4131 = vpop.f32.mrb[0].mxu0
      %4132 = vmatprep.mubr.bf16.mxu0 %v3834
      %4133 = vmatmul.mubr.bf16.gmra.mrb[0].mxu0 %v3833
      %v4134 = vpop.f32.mrb[0].mxu0
      %v4135 = vadd.f32 %v3910, %v4134
      %v4136 = vpop.f32.mrb[0].mxu0
      %v4137 = vpop.f32.mrb[0].mxu0
      %v4138 = vadd.f32 %v3910, %v4137
      %v4139 = vpop.f32.mrb[0].mxu0
      %4140 = vmatprep.mubr.bf16.mxu0 %v3837
      %4141 = vmatmul.mubr.bf16.gmra.mrb[0].mxu0 %v3836
      %v4142 = vpop.f32.mrb[0].mxu0
      %v4143 = vadd.f32 %v3910, %v4142
      %v4144 = vpop.f32.mrb[0].mxu0
      %v4145 = vpop.f32.mrb[0].mxu0
      %v4146 = vadd.f32 %v3910, %v4145
      %v4147 = vpop.f32.mrb[0].mxu0
      %4148 = vmatprep.mubr.bf16.mxu0 %v3840
      %4149 = vmatmul.mubr.bf16.gmra.mrb[0].mxu0 %v3839
      %v4150 = vpop.f32.mrb[0].mxu0
      %v4151 = vadd.f32 %v3910, %v4150
      %v4152 = vpop.f32.mrb[0].mxu0
      %v4153 = vpop.f32.mrb[0].mxu0
      %v4154 = vadd.f32 %v3910, %v4153
      %v4155 = vpop.f32.mrb[0].mxu0
      %4156 = vmatprep.mubr.bf16.mxu0 %v3843
      %4157 = vmatmul.mubr.bf16.gmra.mrb[0].mxu0 %v3842
      %v4158 = vpop.f32.mrb[0].mxu0
      %v4159 = vadd.f32 %v3910, %v4158
      %v4160 = vpop.f32.mrb[0].mxu0
      %v4161 = vpop.f32.mrb[0].mxu0
      %v4162 = vadd.f32 %v3910, %v4161
      %v4163 = vpop.f32.mrb[0].mxu0
      %4164 = vmatprep.mubr.bf16.mxu0 %v3846
      %4165 = vmatmul.mubr.bf16.gmra.mrb[0].mxu0 %v3845
      %v4166 = vpop.f32.mrb[0].mxu0
      %v4167 = vadd.f32 %v3910, %v4166
      %v4168 = vpop.f32.mrb[0].mxu0
      %v4169 = vpop.f32.mrb[0].mxu0
      %v4170 = vadd.f32 %v3910, %v4169
      %v4171 = vpop.f32.mrb[0].mxu0
      %4172 = vmatprep.mubr.bf16.mxu0 %v3849
      %4173 = vmatmul.mubr.bf16.gmra.mrb[0].mxu0 %v3848
      %v4174 = vpop.f32.mrb[0].mxu0
      %v4175 = vadd.f32 %v3910, %v4174
      %v4176 = vpop.f32.mrb[0].mxu0
      %v4177 = vpop.f32.mrb[0].mxu0
      %v4178 = vadd.f32 %v3910, %v4177
      %v4179 = vpop.f32.mrb[0].mxu0
      %4180 = vmatprep.mubr.bf16.mxu0 %v3852
      %4181 = vmatmul.mubr.bf16.gmra.mrb[0].mxu0 %v3851
      %v4182 = vpop.f32.mrb[0].mxu0
      %v4183 = vadd.f32 %v3910, %v4182
      %v4184 = vpop.f32.mrb[0].mxu0
      %v4185 = vpop.f32.mrb[0].mxu0
      %v4186 = vadd.f32 %v3910, %v4185
      %v4187 = vpop.f32.mrb[0].mxu0
      %4188 = vmatprep.mubr.bf16.mxu0 %v3855
      %4189 = vmatmul.mubr.bf16.gmra.mrb[0].mxu0 %v3854
      %v4190 = vpop.f32.mrb[0].mxu0
      %v4191 = vadd.f32 %v3910, %v4190
      %v4192 = vpop.f32.mrb[0].mxu0
      %v4193 = vpop.f32.mrb[0].mxu0
      %v4194 = vadd.f32 %v3910, %v4193
      %v4195 = vpop.f32.mrb[0].mxu0
      %4196 = vmatprep.mubr.bf16.mxu0 %v3858
      %4197 = vmatmul.mubr.bf16.gmra.mrb[0].mxu0 %v3857
      %v4198 = vpop.f32.mrb[0].mxu0
      %v4199 = vadd.f32 %v3910, %v4198
      %v4200 = vpop.f32.mrb[0].mxu0
      %v4201 = vpop.f32.mrb[0].mxu0
      %v4202 = vadd.f32 %v3910, %v4201
      %v4203 = vpop.f32.mrb[0].mxu0
      %4204 = vmatprep.mubr.bf16.mxu0 %v3861
      %4205 = vmatmul.mubr.bf16.gmra.mrb[0].mxu0 %v3860
      %v4206 = vpop.f32.mrb[0].mxu0
      %v4207 = vadd.f32 %v3910, %v4206
      %v4208 = vpop.f32.mrb[0].mxu0
      %v4209 = vpop.f32.mrb[0].mxu0
      %v4210 = vadd.f32 %v3910, %v4209
      %v4211 = vpop.f32.mrb[0].mxu0
      %4212 = vmatprep.mubr.bf16.mxu0 %v3864
      %4213 = vmatmul.mubr.bf16.gmra.mrb[0].mxu0 %v3863
      %v4214 = vpop.f32.mrb[0].mxu0
      %v4215 = vadd.f32 %v3910, %v4214
      %v4216 = vpop.f32.mrb[0].mxu0
      %v4217 = vpop.f32.mrb[0].mxu0
      %v4218 = vadd.f32 %v3910, %v4217
      %v4219 = vpop.f32.mrb[0].mxu0
      %4220 = vmatprep.mubr.bf16.mxu0 %v3867
      %4221 = vmatmul.mubr.bf16.gmra.mrb[0].mxu0 %v3866
      %v4222 = vpop.f32.mrb[0].mxu0
      %v4223 = vadd.f32 %v3910, %v4222
      %v4224 = vpop.f32.mrb[0].mxu0
      %v4225 = vpop.f32.mrb[0].mxu0
      %v4226 = vadd.f32 %v3910, %v4225
      %v4227 = vpop.f32.mrb[0].mxu0
      %4228 = vdwg.mxu0
      %4229 = vmatprep.subr.bf16.mxu0 0
      %4230 = vmatpush1.bf16.msra.mxu0 %v4000
      %4231 = vmatprep.subr.bf16.mxu0 0
      %4232 = vmatpush1.bf16.msra.mxu0 %v4001
      %4233 = vmatprep.subr.bf16.mxu0 0
      %4234 = vmatpush1.bf16.msra.mxu0 0
      %4235 = vmatprep.subr.bf16.mxu0 0
      %4236 = vmatpush1.bf16.msra.mxu0 0
      %4237 = vmatprep.subr.bf16.mxu0 0
      %4238 = vmatpush1.bf16.msra.mxu0 0
      %4239 = vmatprep.subr.bf16.mxu0 0
      %4240 = vmatpush1.bf16.msra.mxu0 0
      %4241 = vmatprep.subr.bf16.mxu0 0
      %4242 = vmatpush1.bf16.msra.mxu0 0
      %4243 = vmatprep.subr.bf16.mxu0 0
      %4244 = vmatpush1.bf16.msra.mxu0 0
      %4245 = vmatprep.subr.bf16.mxu0 0
      %4246 = vmatpush1.bf16.msra.mxu0 0
      %4247 = vmatprep.subr.bf16.mxu0 0
      %4248 = vmatpush1.bf16.msra.mxu0 0
      %4249 = vmatprep.subr.bf16.mxu0 0
      %4250 = vmatpush1.bf16.msra.mxu0 0
      %4251 = vmatprep.subr.bf16.mxu0 0
      %4252 = vmatpush1.bf16.msra.mxu0 0
      %4253 = vmatprep.subr.bf16.mxu0 0
      %4254 = vmatpush1.bf16.msra.mxu0 0
      %4255 = vmatprep.subr.bf16.mxu0 0
      %4256 = vmatpush1.bf16.msra.mxu0 0
      %4257 = vmatprep.subr.bf16.mxu0 0
      %4258 = vmatpush1.bf16.msra.mxu0 0
      %4259 = vmatprep.subr.bf16.mxu0 0
      %4260 = vmatpush1.bf16.msra.mxu0 0
      %4261 = vmatprep.mubr.bf16.mxu0 0
      %4262 = vmatmul.mubr.bf16.gmra.mrb[0].mxu0 %v4021
      %v4263 = vpop.f32.mrb[0].mxu0
      %v4264 = vadd.f32 %v4103, %v4263
      %v4265 = vpop.f32.mrb[0].mxu0
      %v4266 = vpop.f32.mrb[0].mxu0
      %v4267 = vadd.f32 %v4106, %v4266
      %v4268 = vpop.f32.mrb[0].mxu0
      %4269 = vmatprep.mubr.bf16.mxu0 0
      %4270 = vmatmul.mubr.bf16.gmra.mrb[0].mxu0 %v4024
      %v4271 = vpop.f32.mrb[0].mxu0
      %v4272 = vadd.f32 %v4111, %v4271
      %v4273 = vpop.f32.mrb[0].mxu0
      %v4274 = vpop.f32.mrb[0].mxu0
      %v4275 = vadd.f32 %v4114, %v4274
      %v4276 = vpop.f32.mrb[0].mxu0
      %4277 = vmatprep.mubr.bf16.mxu0 0
      %4278 = vmatmul.mubr.bf16.gmra.mrb[0].mxu0 %v4027
      %v4279 = vpop.f32.mrb[0].mxu0
      %v4280 = vadd.f32 %v4119, %v4279
      %v4281 = vpop.f32.mrb[0].mxu0
      %v4282 = vpop.f32.mrb[0].mxu0
      %v4283 = vadd.f32 %v4122, %v4282
      %v4284 = vpop.f32.mrb[0].mxu0
      %4285 = vmatprep.mubr.bf16.mxu0 0
      %4286 = vmatmul.mubr.bf16.gmra.mrb[0].mxu0 %v4030
      %v4287 = vpop.f32.mrb[0].mxu0
      %v4288 = vadd.f32 %v4127, %v4287
      %v4289 = vpop.f32.mrb[0].mxu0
      %v4290 = vpop.f32.mrb[0].mxu0
      %v4291 = vadd.f32 %v4130, %v4290
      %v4292 = vpop.f32.mrb[0].mxu0
      %4293 = vmatprep.mubr.bf16.mxu0 0
      %4294 = vmatmul.mubr.bf16.gmra.mrb[0].mxu0 %v4033
      %v4295 = vpop.f32.mrb[0].mxu0
      %v4296 = vadd.f32 %v4135, %v4295
      %v4297 = vpop.f32.mrb[0].mxu0
      %v4298 = vpop.f32.mrb[0].mxu0
      %v4299 = vadd.f32 %v4138, %v4298
      %v4300 = vpop.f32.mrb[0].mxu0
      %4301 = vmatprep.mubr.bf16.mxu0 0
      %4302 = vmatmul.mubr.bf16.gmra.mrb[0].mxu0 %v4036
      %v4303 = vpop.f32.mrb[0].mxu0
      %v4304 = vadd.f32 %v4143, %v4303
      %v4305 = vpop.f32.mrb[0].mxu0
      %v4306 = vpop.f32.mrb[0].mxu0
      %v4307 = vadd.f32 %v4146, %v4306
      %v4308 = vpop.f32.mrb[0].mxu0
      %4309 = vmatprep.mubr.bf16.mxu0 0
      %4310 = vmatmul.mubr.bf16.gmra.mrb[0].mxu0 %v4039
      %v4311 = vpop.f32.mrb[0].mxu0
      %v4312 = vadd.f32 %v4151, %v4311
      %v4313 = vpop.f32.mrb[0].mxu0
      %v4314 = vpop.f32.mrb[0].mxu0
      %v4315 = vadd.f32 %v4154, %v4314
      %v4316 = vpop.f32.mrb[0].mxu0
      %4317 = vmatprep.mubr.bf16.mxu0 0
      %4318 = vmatmul.mubr.bf16.gmra.mrb[0].mxu0 %v4042
      %v4319 = vpop.f32.mrb[0].mxu0
      %v4320 = vadd.f32 %v4159, %v4319
      %v4321 = vpop.f32.mrb[0].mxu0
      %v4322 = vpop.f32.mrb[0].mxu0
      %v4323 = vadd.f32 %v4162, %v4322
      %v4324 = vpop.f32.mrb[0].mxu0
      %4325 = vmatprep.mubr.bf16.mxu0 0
      %4326 = vmatmul.mubr.bf16.gmra.mrb[0].mxu0 %v4045
      %v4327 = vpop.f32.mrb[0].mxu0
      %v4328 = vadd.f32 %v4167, %v4327
      %v4329 = vpop.f32.mrb[0].mxu0
      %v4330 = vpop.f32.mrb[0].mxu0
      %v4331 = vadd.f32 %v4170, %v4330
      %v4332 = vpop.f32.mrb[0].mxu0
      %4333 = vmatprep.mubr.bf16.mxu0 0
      %4334 = vmatmul.mubr.bf16.gmra.mrb[0].mxu0 %v4048
      %v4335 = vpop.f32.mrb[0].mxu0
      %v4336 = vadd.f32 %v4175, %v4335
      %v4337 = vpop.f32.mrb[0].mxu0
      %v4338 = vpop.f32.mrb[0].mxu0
      %v4339 = vadd.f32 %v4178, %v4338
      %v4340 = vpop.f32.mrb[0].mxu0
      %4341 = vmatprep.mubr.bf16.mxu0 0
      %4342 = vmatmul.mubr.bf16.gmra.mrb[0].mxu0 %v4051
      %v4343 = vpop.f32.mrb[0].mxu0
      %v4344 = vadd.f32 %v4183, %v4343
      %v4345 = vpop.f32.mrb[0].mxu0
      %v4346 = vpop.f32.mrb[0].mxu0
      %v4347 = vadd.f32 %v4186, %v4346
      %v4348 = vpop.f32.mrb[0].mxu0
      %4349 = vmatprep.mubr.bf16.mxu0 0
      %4350 = vmatmul.mubr.bf16.gmra.mrb[0].mxu0 %v4054
      %v4351 = vpop.f32.mrb[0].mxu0
      %v4352 = vadd.f32 %v4191, %v4351
      %v4353 = vpop.f32.mrb[0].mxu0
      %v4354 = vpop.f32.mrb[0].mxu0
      %v4355 = vadd.f32 %v4194, %v4354
      %v4356 = vpop.f32.mrb[0].mxu0
      %4357 = vmatprep.mubr.bf16.mxu0 0
      %4358 = vmatmul.mubr.bf16.gmra.mrb[0].mxu0 %v4057
      %v4359 = vpop.f32.mrb[0].mxu0
      %v4360 = vadd.f32 %v4199, %v4359
      %v4361 = vpop.f32.mrb[0].mxu0
      %v4362 = vpop.f32.mrb[0].mxu0
      %v4363 = vadd.f32 %v4202, %v4362
      %v4364 = vpop.f32.mrb[0].mxu0
      %4365 = vmatprep.mubr.bf16.mxu0 0
      %4366 = vmatmul.mubr.bf16.gmra.mrb[0].mxu0 %v4060
      %v4367 = vpop.f32.mrb[0].mxu0
      %v4368 = vadd.f32 %v4207, %v4367
      %v4369 = vpop.f32.mrb[0].mxu0
      %v4370 = vpop.f32.mrb[0].mxu0
      %v4371 = vadd.f32 %v4210, %v4370
      %v4372 = vpop.f32.mrb[0].mxu0
      %4373 = vmatprep.mubr.bf16.mxu0 0
      %4374 = vmatmul.mubr.bf16.gmra.mrb[0].mxu0 %v4063
      %v4375 = vpop.f32.mrb[0].mxu0
      %v4376 = vadd.f32 %v4215, %v4375
      %v4377 = vpop.f32.mrb[0].mxu0
      %v4378 = vpop.f32.mrb[0].mxu0
      %v4379 = vadd.f32 %v4218, %v4378
      %v4380 = vpop.f32.mrb[0].mxu0
      %4381 = vmatprep.mubr.bf16.mxu0 0
      %4382 = vmatmul.mubr.bf16.gmra.mrb[0].mxu0 %v4066
      %v4383 = vpop.f32.mrb[0].mxu0
      %v4384 = vadd.f32 %v4223, %v4383
      %v4385 = vpop.f32.mrb[0].mxu0
      %v4386 = vpop.f32.mrb[0].mxu0
      %v4387 = vadd.f32 %v4226, %v4386
      %v4388 = vpop.f32.mrb[0].mxu0
      %4389 = vdwg.mxu0
      %4390 = vxpose.xlu0.b32.start [1/16] %v4264, 128
      %4391 = vxpose.xlu0.b32.cont [2/16] %v4267, 128
      %4392 = vxpose.xlu0.b32.cont [3/16] %v4272, 128
      %4393 = vxpose.xlu0.b32.cont [4/16] %v4275, 128
      %4394 = vxpose.xlu0.b32.cont [5/16] %v4280, 128
      %4395 = vxpose.xlu0.b32.cont [6/16] %v4283, 128
      %4396 = vxpose.xlu0.b32.cont [7/16] %v4288, 128
      %4397 = vxpose.xlu0.b32.cont [8/16] %v4291, 128
      %4398 = vxpose.xlu0.b32.cont [9/16] %v4296, 128
      %4399 = vxpose.xlu0.b32.cont [10/16] %v4299, 128
      %4400 = vxpose.xlu0.b32.cont [11/16] %v4304, 128
      %4401 = vxpose.xlu0.b32.cont [12/16] %v4307, 128
      %4402 = vxpose.xlu0.b32.cont [13/16] %v4312, 128
      %4403 = vxpose.xlu0.b32.cont [14/16] %v4315, 128
      %4404 = vxpose.xlu0.b32.cont [15/16] %v4320, 128
      %4405 = vxpose.xlu0.b32.end [16/16] %v4323, 128
      %v4406 = vpop.trf.xlu0
      %v4407 = vpop.trf.xlu0
      %v4408 = vpop.trf.xlu0
      %v4409 = vpop.trf.xlu0
      %v4410 = vpop.trf.xlu0
      %v4411 = vpop.trf.xlu0
      %v4412 = vpop.trf.xlu0
      %v4413 = vpop.trf.xlu0
      %v4414 = vpop.trf.xlu0
      %v4415 = vpop.trf.xlu0
      %v4416 = vpop.trf.xlu0
      %v4417 = vpop.trf.xlu0
      %v4418 = vpop.trf.xlu0
      %v4419 = vpop.trf.xlu0
      %v4420 = vpop.trf.xlu0
      %v4421 = vpop.trf.xlu0
      %4422 = vxpose.xlu0.b32.start [1/16] %v4328, 128
      %4423 = vxpose.xlu0.b32.cont [2/16] %v4331, 128
      %4424 = vxpose.xlu0.b32.cont [3/16] %v4336, 128
      %4425 = vxpose.xlu0.b32.cont [4/16] %v4339, 128
      %4426 = vxpose.xlu0.b32.cont [5/16] %v4344, 128
      %4427 = vxpose.xlu0.b32.cont [6/16] %v4347, 128
      %4428 = vxpose.xlu0.b32.cont [7/16] %v4352, 128
      %4429 = vxpose.xlu0.b32.cont [8/16] %v4355, 128
      %4430 = vxpose.xlu0.b32.cont [9/16] %v4360, 128
      %4431 = vxpose.xlu0.b32.cont [10/16] %v4363, 128
      %4432 = vxpose.xlu0.b32.cont [11/16] %v4368, 128
      %4433 = vxpose.xlu0.b32.cont [12/16] %v4371, 128
      %4434 = vxpose.xlu0.b32.cont [13/16] %v4376, 128
      %4435 = vxpose.xlu0.b32.cont [14/16] %v4379, 128
      %4436 = vxpose.xlu0.b32.cont [15/16] %v4384, 128
      %4437 = vxpose.xlu0.b32.end [16/16] %v4387, 128
      %v4438 = vpop.trf.xlu0
      %v4439 = vpop.trf.xlu0
      %v4440 = vpop.trf.xlu0
      %v4441 = vpop.trf.xlu0
      %v4442 = vpop.trf.xlu0
      %v4443 = vpop.trf.xlu0
      %v4444 = vpop.trf.xlu0
      %v4445 = vpop.trf.xlu0
      %v4446 = vpop.trf.xlu0
      %v4447 = vpop.trf.xlu0
      %v4448 = vpop.trf.xlu0
      %v4449 = vpop.trf.xlu0
      %v4450 = vpop.trf.xlu0
      %v4451 = vpop.trf.xlu0
      %v4452 = vpop.trf.xlu0
      %v4453 = vpop.trf.xlu0
      %v4454 = vpack.c.bf16 %v4407, %v4406
      %v4455 = vpack.c.bf16 %v4439, %v4438
      %v4456 = vpack.c.bf16 %v4409, %v4408
      %v4457 = vpack.c.bf16 %v4441, %v4440
      %v4462 = vunpack.c.l.b16 %v4454
      %v4463 = vunpack.c.l.b16 %v4455
      %v4464 = vunpack.c.h.b16 %v4454
      %v4465 = vunpack.c.h.b16 %v4455
      %v4466 = vunpack.c.l.b16 %v4456
      %v4467 = vunpack.c.l.b16 %v4457
      %v4468 = vunpack.c.h.b16 %v4456
      %v4469 = vunpack.c.h.b16 %v4457
      %v4470 = vpack.c.b16 %v4463, %v4462
      %v4471 = vpack.c.b16 %v4465, %v4464
      %v4472 = vpack.c.b16 %v4467, %v4466
      %v4473 = vpack.c.b16 %v4469, %v4468
      %4478 = vst [vmem:[%s359] sm:$0xff] %v4470
      %4479 = vst [vmem:[%s359 + $0x8] sm:$0xff] %v4471
      %4480 = vst [vmem:[%s359 + $0x10] sm:$0xff] %v4472
      %4481 = vst [vmem:[%s359 + $0x18] sm:$0xff] %v4473
      %p4482 = scmp.lt.s32.totalorder %s21, 1
      %s4483 = scalar_select %p4482, %s21, 1
      %s4484 = smul.addr %s4483, 8
      %s4485 = smul.addr %s4484, 4
      %s4486 = scalar_lea.vmem %s10, %s4485
      // Predicated region
      $region61: #{decoder_unet_scse_forward.1} parent=59 // pred_check
        %p4487 = pneg %p254
      $region62: #{decoder_unet_scse_forward.1} parent=59 // pred_check_branch
        %4489 = sbr.rel (%p4487) target = $region64
      $region63: #{decoder_unet_scse_forward.1} parent=59 // pred_region
        _
      $region64: #{decoder_unet_scse_forward.1} parent=59 // pred_fallthru
        _
    $region60: #{decoder_unet_scse_forward.1} parent=5 // pred_fallthru
      _
    %p4490 = scmp.le.s32.totalorder 2, %s16
    // Predicated region
    $region65: #{decoder_unet_scse_forward.1} parent=5 // pred_check
      %p4491 = pneg %p4490
    $region66: #{decoder_unet_scse_forward.1} parent=5 // pred_check_branch
      %4493 = sbr.rel (%p4491) target = $region68
    $region67: #{decoder_unet_scse_forward.1} parent=5 // pred_region
      %s4494 = ssub.s32 %s16, 2
      // Predicated region
      $region69: #{decoder_unet_scse_forward.1} parent=67 // pred_check
        %p4495 = pneg %p260
      $region70: #{decoder_unet_scse_forward.1} parent=67 // pred_check_branch
        %4497 = sbr.rel (%p4495) target = $region72
      $region71: #{decoder_unet_scse_forward.1} parent=67 // pred_region
        %p4498 = scmp.lt.s32.totalorder %s22, 1
        %s4499 = scalar_select %p4498, %s22, 1
        %s4500 = smul.addr %s4499, 8
        %s4501 = smul.addr %s4500, 4
        %s4502 = scalar_lea.vmem %s10, %s4501
      $region72: #{decoder_unet_scse_forward.1} parent=67 // pred_fallthru
        _
    $region68: #{decoder_unet_scse_forward.1} parent=5 // pred_fallthru
      _
  $region6: #{decoder_unet_scse_forward.1} parent=0 // loop_footer
    %s20 = sadd.s32 1, %s16
  $region7: #{decoder_unet_scse_forward.1} parent=0 // loop_footer_branch
    %15 = sbr.rel target = $region3
  $region8: #{decoder_unet_scse_forward.1} parent=0 // loop_exit
    _

</llo_original>
